<compile_context>
chip_gen: v7x
topology: tpu7x:2x2x1
jax: 0.10.0
libtpu: 0.0.40
codegen_flags: <defaults>
</compile_context>

<pallas_src>
import math

import jax
import jax.numpy as jnp
from jax.experimental import pallas as pl
from jax.experimental.pallas import tpu as pltpu

# ---------------- synthetic, small config (shapes implied by T3.__init__) ----
DIM = 128            # cfg.hidden_size
N_HEADS = 4
HEAD_DIM = DIM // N_HEADS
N_LAYERS = 2         # small Llama backbone
FFN_DIM = 256        # intermediate size
EPS = 1e-5           # rms_norm_eps
TEXT_VOCAB = 64      # hp.text_tokens_dict_size
SPEECH_VOCAB = 80    # hp.speech_tokens_dict_size
VPAD = 128           # lane-dense padded vocab per head
START_TEXT_TOKEN = 1
STOP_TEXT_TOKEN = 2
LEN_COND = 2         # length of conditioning prefix emitted by T3CondEnc
SPK_DIM = 32
MAX_TEXT = 32        # hp.max_text_tokens
MAX_SPEECH = 32      # hp.max_speech_tokens
NEG_INF = -1e30


def _ensure_BOT_EOT(text_tokens):
    B = text_tokens.shape[0]
    assert int((text_tokens == START_TEXT_TOKEN).sum()) >= B, "missing start_text_token"
    assert int((text_tokens == STOP_TEXT_TOKEN).sum()) >= B, "missing stop_text_token"


# ----------------------------- fused Pallas kernel ----------------------------
def t3_fused_kernel(x_ref, cos_ref, sin_ref, rmask_ref,
                    ln1_ref, wqkv_ref, wo_ref,
                    ln2_ref, wgu_ref, wd_ref,
                    fnorm_ref, head_ref,
                    hs_ref, logits_ref):
    """One batch example: Llama layers -> final RMSNorm -> masked fused heads."""
    f32 = jnp.float32
    bf16 = jnp.bfloat16

    x = x_ref[0]                         # (Tp, D) f32 activations, VMEM-resident
    cos = cos_ref[...]                   # (Tp, D) f32, shared across batch
    sin = sin_ref[...]
    Tp = x.shape[0]

    # causal additive bias, generated in-kernel (no (S,S) DMA)
    row = jax.lax.broadcasted_iota(jnp.int32, (Tp, Tp), 0)
    col = jax.lax.broadcasted_iota(jnp.int32, (Tp, Tp), 1)
    bias = jnp.where(col <= row, 0.0, NEG_INF).astype(f32)

    def rmsnorm(v, w):                   # f32 statistics
        ms = jnp.mean(v * v, axis=-1, keepdims=True)
        return v * jax.lax.rsqrt(ms + EPS) * w

    for l in range(N_LAYERS):
        # --------------- attention sub-block ---------------
        h = rmsnorm(x, ln1_ref[l]).astype(bf16)
        # single fused projection: [q | rot(q) | k | rot(k) | v], (Tp, 5*D)
        qkv = jnp.dot(h, wqkv_ref[l], preferred_element_type=f32)

        q = qkv[:, 0 * DIM:1 * DIM]
        qr = qkv[:, 1 * DIM:2 * DIM]
        qro = (q * cos + qr * sin).astype(bf16)        # full-width RoPE (scale folded)

        k = qkv[:, 2 * DIM:3 * DIM]
        kr = qkv[:, 3 * DIM:4 * DIM]
        kro = (k * cos + kr * sin).astype(bf16)

        v = qkv[:, 4 * DIM:5 * DIM].astype(bf16)

        wo_l = wo_ref[l]                                # (H, head_dim, D) bf16
        attn_out = jnp.zeros((Tp, DIM), f32)
        for hh in range(N_HEADS):
            sl = slice(hh * HEAD_DIM, (hh + 1) * HEAD_DIM)
            s = jax.lax.dot_general(qro[:, sl], kro[:, sl],
                                    (((1,), (1,)), ((), ())),
                                    preferred_element_type=f32) + bias
            m = jnp.max(s, axis=-1, keepdims=True)
            e = jnp.exp(s - m)
            denom = jnp.sum(e, axis=-1, keepdims=True)
            p = (e * pl.reciprocal(denom, approx=True)).astype(bf16)
            ctx = jnp.dot(p, v[:, sl], preferred_element_type=f32)      # (Tp, hd)
            # fold head output straight into the residual: no scratch, no slice-store
            attn_out = attn_out + jnp.dot(ctx.astype(bf16), wo_l[hh],
                                          preferred_element_type=f32)
        x = x + attn_out

        # --------------- SwiGLU MLP sub-block ---------------
        h2 = rmsnorm(x, ln2_ref[l]).astype(bf16)
        gu = jnp.dot(h2, wgu_ref[l], preferred_element_type=f32)        # (Tp, 2*FFN)
        g = gu[:, :FFN_DIM]
        u = gu[:, FFN_DIM:]
        act = (jax.nn.silu(g) * u).astype(bf16)
        x = x + jnp.dot(act, wd_ref[l], preferred_element_type=f32)

    # final RMSNorm (hidden_states[-1])
    hidden = rmsnorm(x, fnorm_ref[...])
    hs_ref[0] = hidden

    # per-row latent mask + fused (text|speech) heads, lane-dense 256-wide output
    # NOTE: head matmul runs in bf16 (reference nn.Linear is f32) -> ~1e-2 rel tol.
    latents = (hidden * rmask_ref[0]).astype(jnp.bfloat16)
    logits_ref[0] = jnp.dot(latents, head_ref[...], preferred_element_type=f32)


def run_t3_backbone(x, cos, sin, row_mask, packed):
    B, Tp, D = x.shape
    Vo = packed["head"].shape[1]

    def const_spec(a):
        nd = a.ndim
        return pl.BlockSpec(a.shape, lambda b, _nd=nd: (0,) * _nd)

    def batch_spec(a):
        nd = a.ndim
        return pl.BlockSpec((1,) + a.shape[1:],
                            lambda b, _nd=nd: (b,) + (0,) * (_nd - 1))

    args = (x, cos, sin, row_mask,
            packed["ln1"], packed["wqkv"], packed["wo"],
            packed["ln2"], packed["wgu"], packed["wd"],
            packed["final_norm"], packed["head"])
    in_specs = [batch_spec(x), const_spec(cos), const_spec(sin), batch_spec(row_mask)]
    in_specs += [const_spec(a) for a in args[4:]]

    # advisory cost estimate (per example, times B)
    per_ex = N_LAYERS * (2 * Tp * D * (5 * D)
                         + N_HEADS * (2 * Tp * Tp * HEAD_DIM * 2 + 2 * Tp * HEAD_DIM * D)
                         + 2 * Tp * D * (2 * FFN_DIM) + 2 * Tp * FFN_DIM * D) \
        + 2 * Tp * D * Vo
    flops = B * per_ex
    transcendentals = B * (N_LAYERS * (N_HEADS * Tp * Tp + Tp * FFN_DIM + 2 * Tp) + Tp)
    bytes_accessed = sum(a.size * a.dtype.itemsize for a in args) \
        + B * Tp * D * 4 + B * Tp * Vo * 4

    hs, logits = pl.pallas_call(
        t3_fused_kernel,
        out_shape=(jax.ShapeDtypeStruct((B, Tp, D), jnp.float32),
                   jax.ShapeDtypeStruct((B, Tp, Vo), jnp.float32)),
        grid=(B,),
        in_specs=in_specs,
        out_specs=(pl.BlockSpec((1, Tp, D), lambda b: (b, 0, 0)),
                   pl.BlockSpec((1, Tp, Vo), lambda b: (b, 0, 0))),
        compiler_params=pltpu.CompilerParams(
            dimension_semantics=("parallel",)),
        cost_estimate=pl.CostEstimate(flops=int(flops),
                                      transcendentals=int(transcendentals),
                                      bytes_accessed=int(bytes_accessed)),
    )(*args)
    return hs, logits


# ----------------------------- parameters ------------------------------------
def init_params(key):
    keys = jax.random.split(key, 16)

    def w(k, shape, scale=0.02):
        return scale * jax.random.normal(k, shape, dtype=jnp.float32)

    params = {
        "text_emb": w(keys[0], (TEXT_VOCAB, DIM)),
        "speech_emb": w(keys[1], (SPEECH_VOCAB, DIM)),
        "text_pos": w(keys[2], (MAX_TEXT + 2, DIM)),       # LearnedPositionEmbeddings
        "speech_pos": w(keys[3], (MAX_SPEECH + 4, DIM)),
        "cond_proj": w(keys[4], (SPK_DIM, LEN_COND * DIM)),
        "text_head": w(keys[5], (DIM, TEXT_VOCAB)),         # nn.Linear, bias=False
        "speech_head": w(keys[6], (DIM, SPEECH_VOCAB)),
        "final_norm": jnp.ones((1, DIM), jnp.float32),
    }
    layers = []
    for l in range(N_LAYERS):
        ks = jax.random.split(keys[8 + l], 8)
        layers.append(dict(
            ln1=jnp.ones((1, DIM), jnp.float32),
            wq=w(ks[0], (DIM, DIM)), wk=w(ks[1], (DIM, DIM)),
            wv=w(ks[2], (DIM, DIM)), wo=w(ks[3], (DIM, DIM)),
            ln2=jnp.ones((1, DIM), jnp.float32),
            wg=w(ks[4], (DIM, FFN_DIM)), wu=w(ks[5], (DIM, FFN_DIM)),
            wd=w(ks[6], (FFN_DIM, DIM)),
        ))
    params["layers"] = layers
    return params


def _rotate_cols(wp):
    """Columns permuted/negated so that  x @ W_rot == rotate_half(x @ W)  per head."""
    d_in = wp.shape[0]
    w4 = wp.reshape(d_in, N_HEADS, 2, HEAD_DIM // 2)
    w_rot = jnp.stack([-w4[:, :, 1, :], w4[:, :, 0, :]], axis=2)
    return w_rot.reshape(d_in, N_HEADS * HEAD_DIM)


def pack_params(params):
    """Fused / rotated / scaled / padded bf16 weights for the fused kernel."""
    bf16 = jnp.bfloat16
    scale = 1.0 / math.sqrt(HEAD_DIM)

    def stack(name):
        return jnp.stack([lyr[name] for lyr in params["layers"]])

    wq = stack("wq") * scale                      # score scale folded into q
    wk = stack("wk")
    wqr = jnp.stack([_rotate_cols(wq[l]) for l in range(N_LAYERS)])
    wkr = jnp.stack([_rotate_cols(wk[l]) for l in range(N_LAYERS)])
    wv = stack("wv")
    # one wide matmul per layer: [q | rot(q) | k | rot(k) | v] -> (L, D, 5*D)
    wqkv = jnp.concatenate([wq, wqr, wk, wkr, wv], axis=2)
    # gate/up fused: (L, D, 2*FFN)
    wgu = jnp.concatenate([stack("wg"), stack("wu")], axis=2)
    # per-head output projection: (L, H, head_dim, D) -> no in-kernel sublane slicing
    wo = stack("wo").reshape(N_LAYERS, N_HEADS, HEAD_DIM, DIM)
    head = jnp.concatenate([
        jnp.pad(params["text_head"], ((0, 0), (0, VPAD - TEXT_VOCAB))),
        jnp.pad(params["speech_head"], ((0, 0), (0, VPAD - SPEECH_VOCAB))),
    ], axis=1)                                    # (D, 2*VPAD) lane-dense fused head
    return dict(
        ln1=stack("ln1"), ln2=stack("ln2"),       # (L, 1, D) f32
        wqkv=wqkv.astype(bf16),
        wo=wo.astype(bf16),
        wgu=wgu.astype(bf16),
        wd=stack("wd").astype(bf16),
        final_norm=params["final_norm"],          # (1, D) f32
        head=head.astype(bf16),
    )


# ----------------------------- forward pass -----------------------------------
def t3_forward(params, packed, speaker_emb, text_tokens, text_token_lens,
               speech_tokens, speech_token_lens):
    B, len_text = text_tokens.shape
    len_speech = speech_tokens.shape[1]
    T = LEN_COND + len_text + len_speech
    Tp = ((T + 7) // 8) * 8          # pad sequence to a sublane-aligned multiple of 8

    # conditioning prefix (T3CondEnc simplified to a linear projection)
    # TODO(synk): full T3CondEnc (perceiver resampler, emotion-adv, prompt tokens) not replicated
    cond_emb = (speaker_emb @ params["cond_proj"]).reshape(B, LEN_COND, DIM)

    # token + learned positional embeddings (hp.input_pos_emb == 'learned')
    text_emb = params["text_emb"][text_tokens] + params["text_pos"][:len_text][None]
    speech_emb = params["speech_emb"][speech_tokens] + params["speech_pos"][:len_speech][None]
    embeds = jnp.concatenate([cond_emb, text_emb, speech_emb], axis=1)   # (B, T, D)
    embeds = jnp.pad(embeds, ((0, 0), (0, Tp - T), (0, 0)))              # (B, Tp, D)

    # RoPE tables (HF Llama convention), shared across batch / heads: (Tp, D)
    pos = jnp.arange(Tp, dtype=jnp.float32)
    inv_freq = 1.0 / (10000.0 ** (jnp.arange(0, HEAD_DIM, 2, dtype=jnp.float32) / HEAD_DIM))
    freqs = pos[:, None] * inv_freq[None, :]
    emb = jnp.concatenate([freqs, freqs], axis=-1)        # (Tp, HEAD_DIM)
    cos = jnp.tile(jnp.cos(emb), (1, N_HEADS))            # (Tp, D)
    sin = jnp.tile(jnp.sin(emb), (1, N_HEADS))

    # per-row validity mask (replaces the torch per-example latent copy loop)
    ti = jnp.arange(Tp, dtype=jnp.int32)[None, :]
    t_in = ti - LEN_COND
    s_in = ti - (LEN_COND + len_text)
    tvalid = (t_in >= 0) & (t_in < len_text) & (t_in < text_token_lens[:, None])
    svalid = (s_in >= 0) & (s_in < len_speech) & (s_in < speech_token_lens[:, None])
    row_mask = (tvalid | svalid).astype(jnp.float32)[..., None]          # (B, Tp, 1)

    hs, logits = run_t3_backbone(embeds, cos, sin, row_mask, packed)

    hidden_states = hs[:, :T]                                            # post final norm

    # latents (zeros past token lens, exactly as in the reference)
    text_slice = hidden_states[:, LEN_COND:LEN_COND + len_text]
    speech_slice = hidden_states[:, LEN_COND + len_text:LEN_COND + len_text + len_speech]
    tmask = (jnp.arange(len_text)[None, :] < text_token_lens[:, None])[..., None]
    smask = (jnp.arange(len_speech)[None, :] < speech_token_lens[:, None])[..., None]
    text_latents = jnp.where(tmask, text_slice, 0.0)
    speech_latents = jnp.where(smask, speech_slice, 0.0)

    # logits were computed in-kernel from masked latents; slice padded vocab away
    text_logits = logits[:, LEN_COND:LEN_COND + len_text, :TEXT_VOCAB]
    speech_logits = logits[:, LEN_COND + len_text:LEN_COND + len_text + len_speech,
                           VPAD:VPAD + SPEECH_VOCAB]

    return dict(text_logits=text_logits, text_latents=text_latents,
                speech_logits=speech_logits, speech_latents=speech_latents,
                hidden_states=hidden_states)


# ----------------------------- main -------------------------------------------
if __name__ == "__main__":
    key = jax.random.PRNGKey(0)
    pkey, skey, tkey, spkey = jax.random.split(key, 4)
    params = init_params(pkey)
    packed = pack_params(params)

    B = 2
    len_text, len_speech = 8, 8
    speaker_emb = jax.random.normal(skey, (B, SPK_DIM), dtype=jnp.float32)
    text_tokens = jax.random.randint(tkey, (B, len_text), 3, TEXT_VOCAB, dtype=jnp.int32)
    text_tokens = text_tokens.at[:, 0].set(START_TEXT_TOKEN)
    text_tokens = text_tokens.at[:, -1].set(STOP_TEXT_TOKEN)
    speech_tokens = jax.random.randint(spkey, (B, len_speech), 3, SPEECH_VOCAB, dtype=jnp.int32)
    text_token_lens = jnp.array([8, 6], dtype=jnp.int32)
    speech_token_lens = jnp.array([8, 5], dtype=jnp.int32)

    _ensure_BOT_EOT(text_tokens)

    fwd = jax.jit(t3_forward)
    out = fwd(params, packed, speaker_emb, text_tokens, text_token_lens,
              speech_tokens, speech_token_lens)
    jax.block_until_ready(out)

    T = LEN_COND + len_text + len_speech
    assert out["text_logits"].shape == (B, len_text, TEXT_VOCAB)
    assert out["speech_logits"].shape == (B, len_speech, SPEECH_VOCAB)
    assert out["text_latents"].shape == (B, len_text, DIM)
    assert out["speech_latents"].shape == (B, len_speech, DIM)
    assert out["hidden_states"].shape == (B, T, DIM)
    assert bool(jnp.all(jnp.isfinite(out["text_logits"]))), "non-finite logits"
    assert bool(jnp.all(jnp.isfinite(out["speech_logits"]))), "non-finite logits"
    print("KERNEL_OK")
</pallas_src>

<mosaic_0001>
module attributes {stable_mosaic.version = 11 : i64} {
  func.func @t3_fused_kernel(%arg0: i32, %arg1: memref<1x24x128xf32, #tpu.memory_space<vmem>>, %arg2: memref<24x128xf32, #tpu.memory_space<vmem>>, %arg3: memref<24x128xf32, #tpu.memory_space<vmem>>, %arg4: memref<1x24x1xf32, #tpu.memory_space<vmem>>, %arg5: memref<2x1x128xf32, #tpu.memory_space<vmem>>, %arg6: memref<2x128x640xbf16, #tpu.memory_space<vmem>>, %arg7: memref<2x4x32x128xbf16, #tpu.memory_space<vmem>>, %arg8: memref<2x1x128xf32, #tpu.memory_space<vmem>>, %arg9: memref<2x128x512xbf16, #tpu.memory_space<vmem>>, %arg10: memref<2x256x128xbf16, #tpu.memory_space<vmem>>, %arg11: memref<1x128xf32, #tpu.memory_space<vmem>>, %arg12: memref<128x256xbf16, #tpu.memory_space<vmem>>, %arg13: memref<1x24x128xf32, #tpu.memory_space<vmem>>, %arg14: memref<1x24x256xf32, #tpu.memory_space<vmem>>) attributes {dimension_semantics = [#tpu.dimension_semantics<parallel>], iteration_bounds = array<i64: 2>, scalar_prefetch = 0 : i64, scratch_operands = 0 : i64, tpu.core_type = #tpu.core_type<tc>, window_params = [{transform_indices = @transform_0, window_bounds = array<i64: 1, 24, 128>}, {pipeline_mode = #tpu.pipeline_mode<synchronous>, transform_indices = @transform_1, window_bounds = array<i64: 24, 128>}, {pipeline_mode = #tpu.pipeline_mode<synchronous>, transform_indices = @transform_2, window_bounds = array<i64: 24, 128>}, {transform_indices = @transform_3, window_bounds = array<i64: 1, 24, 1>}, {pipeline_mode = #tpu.pipeline_mode<synchronous>, transform_indices = @transform_4, window_bounds = array<i64: 2, 1, 128>}, {pipeline_mode = #tpu.pipeline_mode<synchronous>, transform_indices = @transform_5, window_bounds = array<i64: 2, 128, 640>}, {pipeline_mode = #tpu.pipeline_mode<synchronous>, transform_indices = @transform_6, window_bounds = array<i64: 2, 4, 32, 128>}, {pipeline_mode = #tpu.pipeline_mode<synchronous>, transform_indices = @transform_7, window_bounds = array<i64: 2, 1, 128>}, {pipeline_mode = #tpu.pipeline_mode<synchronous>, transform_indices = @transform_8, window_bounds = array<i64: 2, 128, 512>}, {pipeline_mode = #tpu.pipeline_mode<synchronous>, transform_indices = @transform_9, window_bounds = array<i64: 2, 256, 128>}, {pipeline_mode = #tpu.pipeline_mode<synchronous>, transform_indices = @transform_10, window_bounds = array<i64: 1, 128>}, {pipeline_mode = #tpu.pipeline_mode<synchronous>, transform_indices = @transform_11, window_bounds = array<i64: 128, 256>}, {transform_indices = @transform_12, window_bounds = array<i64: 1, 24, 128>}, {transform_indices = @transform_13, window_bounds = array<i64: 1, 24, 256>}]} {
    %c0 = arith.constant 0 : index
    %c0_0 = arith.constant 0 : index
    %c0_1 = arith.constant 0 : index
    %0 = vector.load %arg1[%c0, %c0_0, %c0_1] : memref<1x24x128xf32, #tpu.memory_space<vmem>>, vector<1x24x128xf32>
    %1 = vector.shape_cast %0 : vector<1x24x128xf32> to vector<24x128xf32>
    %c0_2 = arith.constant 0 : index
    %c0_3 = arith.constant 0 : index
    %2 = vector.load %arg2[%c0_2, %c0_3] : memref<24x128xf32, #tpu.memory_space<vmem>>, vector<24x128xf32>
    %c0_4 = arith.constant 0 : index
    %c0_5 = arith.constant 0 : index
    %3 = vector.load %arg3[%c0_4, %c0_5] : memref<24x128xf32, #tpu.memory_space<vmem>>, vector<24x128xf32>
    %4 = tpu.iota {dimensions = array<i32: 0>} : vector<24x24xi32>
    %5 = tpu.iota {dimensions = array<i32: 1>} : vector<24x24xi32>
    %6 = arith.cmpi sle, %5, %4 : vector<24x24xi32>
    %cst = arith.constant 0.000000e+00 : f32
    %cst_6 = arith.constant -1.000000e+30 : f32
    %7 = vector.broadcast %cst : f32 to vector<24x24xf32>
    %8 = vector.broadcast %cst_6 : f32 to vector<24x24xf32>
    %9 = arith.select %6, %7, %8 : vector<24x24xi1>, vector<24x24xf32>
    %c0_7 = arith.constant 0 : index
    %c0_8 = arith.constant 0 : index
    %c0_9 = arith.constant 0 : index
    %10 = vector.load %arg5[%c0_7, %c0_8, %c0_9] : memref<2x1x128xf32, #tpu.memory_space<vmem>>, vector<1x1x128xf32>
    %11 = vector.shape_cast %10 : vector<1x1x128xf32> to vector<1x128xf32>
    %12 = arith.mulf %1, %1 : vector<24x128xf32>
    %cst_10 = arith.constant dense<0.000000e+00> : vector<24xf32>
    %13 = vector.multi_reduction <add>, %12, %cst_10 [1] : vector<24x128xf32> to vector<24xf32>
    %14 = vector.shape_cast %13 : vector<24xf32> to vector<24x1xf32>
    %cst_11 = arith.constant 1.280000e+02 : f32
    %15 = vector.broadcast %cst_11 : f32 to vector<24x1xf32>
    %16 = arith.divf %14, %15 : vector<24x1xf32>
    %cst_12 = arith.constant 9.99999974E-6 : f32
    %17 = vector.broadcast %cst_12 : f32 to vector<24x1xf32>
    %18 = arith.addf %16, %17 : vector<24x1xf32>
    %19 = math.rsqrt %18 : vector<24x1xf32>
    %20 = vector.broadcast %19 : vector<24x1xf32> to vector<24x128xf32>
    %21 = arith.mulf %1, %20 : vector<24x128xf32>
    %22 = vector.broadcast %11 : vector<1x128xf32> to vector<24x128xf32>
    %23 = arith.mulf %21, %22 : vector<24x128xf32>
    %24 = arith.truncf %23 : vector<24x128xf32> to vector<24x128xbf16>
    %c0_13 = arith.constant 0 : index
    %c0_14 = arith.constant 0 : index
    %c0_15 = arith.constant 0 : index
    %25 = vector.load %arg6[%c0_13, %c0_14, %c0_15] : memref<2x128x640xbf16, #tpu.memory_space<vmem>>, vector<1x128x640xbf16>
    %26 = vector.shape_cast %25 : vector<1x128x640xbf16> to vector<128x640xbf16>
    %cst_16 = arith.constant dense<0.000000e+00> : vector<24x640xf32>
    %27 = tpu.matmul %24, %26, %cst_16 {dimension_numbers = #tpu.dot_dimension_numbers<[1], [0], [0], [1], [0, 0, 1, 1], [], []>} : vector<24x128xbf16>, vector<128x640xbf16>, vector<24x640xf32> -> vector<24x640xf32>
    %28 = vector.extract_strided_slice %27 {offsets = [0, 0], sizes = [24, 128], strides = [1, 1]} : vector<24x640xf32> to vector<24x128xf32>
    %29 = vector.extract_strided_slice %27 {offsets = [0, 128], sizes = [24, 128], strides = [1, 1]} : vector<24x640xf32> to vector<24x128xf32>
    %30 = arith.mulf %28, %2 : vector<24x128xf32>
    %31 = arith.mulf %29, %3 : vector<24x128xf32>
    %32 = arith.addf %30, %31 : vector<24x128xf32>
    %33 = arith.truncf %32 : vector<24x128xf32> to vector<24x128xbf16>
    %34 = vector.extract_strided_slice %27 {offsets = [0, 256], sizes = [24, 128], strides = [1, 1]} : vector<24x640xf32> to vector<24x128xf32>
    %35 = vector.extract_strided_slice %27 {offsets = [0, 384], sizes = [24, 128], strides = [1, 1]} : vector<24x640xf32> to vector<24x128xf32>
    %36 = arith.mulf %34, %2 : vector<24x128xf32>
    %37 = arith.mulf %35, %3 : vector<24x128xf32>
    %38 = arith.addf %36, %37 : vector<24x128xf32>
    %39 = arith.truncf %38 : vector<24x128xf32> to vector<24x128xbf16>
    %40 = vector.extract_strided_slice %27 {offsets = [0, 512], sizes = [24, 128], strides = [1, 1]} : vector<24x640xf32> to vector<24x128xf32>
    %41 = arith.truncf %40 : vector<24x128xf32> to vector<24x128xbf16>
    %c0_17 = arith.constant 0 : index
    %c0_18 = arith.constant 0 : index
    %c0_19 = arith.constant 0 : index
    %c0_20 = arith.constant 0 : index
    %42 = vector.load %arg7[%c0_17, %c0_18, %c0_19, %c0_20] : memref<2x4x32x128xbf16, #tpu.memory_space<vmem>>, vector<1x4x32x128xbf16>
    %43 = vector.shape_cast %42 : vector<1x4x32x128xbf16> to vector<4x32x128xbf16>
    %cst_21 = arith.constant 0.000000e+00 : f32
    %44 = vector.broadcast %cst_21 : f32 to vector<24x128xf32>
    %45 = vector.extract_strided_slice %33 {offsets = [0, 0], sizes = [24, 32], strides = [1, 1]} : vector<24x128xbf16> to vector<24x32xbf16>
    %46 = vector.extract_strided_slice %39 {offsets = [0, 0], sizes = [24, 32], strides = [1, 1]} : vector<24x128xbf16> to vector<24x32xbf16>
    %cst_22 = arith.constant dense<0.000000e+00> : vector<24x24xf32>
    %47 = tpu.matmul %45, %46, %cst_22 {dimension_numbers = #tpu.dot_dimension_numbers<[1], [1], [0], [0], [0, 0, 1, 0], [], []>} : vector<24x32xbf16>, vector<24x32xbf16>, vector<24x24xf32> -> vector<24x24xf32>
    %48 = arith.addf %47, %9 : vector<24x24xf32>
    %cst_23 = arith.constant dense<0xFF800000> : vector<24xf32>
    %49 = vector.multi_reduction <maximumf>, %48, %cst_23 [1] : vector<24x24xf32> to vector<24xf32>
    %50 = vector.shape_cast %49 : vector<24xf32> to vector<24x1xf32>
    %51 = vector.broadcast %50 : vector<24x1xf32> to vector<24x24xf32>
    %52 = arith.subf %48, %51 : vector<24x24xf32>
    %53 = math.exp %52 : vector<24x24xf32>
    %cst_24 = arith.constant dense<0.000000e+00> : vector<24xf32>
    %54 = vector.multi_reduction <add>, %53, %cst_24 [1] : vector<24x24xf32> to vector<24xf32>
    %55 = vector.shape_cast %54 : vector<24xf32> to vector<24x1xf32>
    %56 = tpu.reciprocal %55 {approx = true} : vector<24x1xf32> -> vector<24x1xf32>
    %57 = vector.broadcast %56 : vector<24x1xf32> to vector<24x24xf32>
    %58 = arith.mulf %53, %57 : vector<24x24xf32>
    %59 = arith.truncf %58 : vector<24x24xf32> to vector<24x24xbf16>
    %60 = vector.extract_strided_slice %41 {offsets = [0, 0], sizes = [24, 32], strides = [1, 1]} : vector<24x128xbf16> to vector<24x32xbf16>
    %cst_25 = arith.constant dense<0.000000e+00> : vector<24x32xf32>
    %61 = tpu.matmul %59, %60, %cst_25 {dimension_numbers = #tpu.dot_dimension_numbers<[1], [0], [0], [1], [0, 0, 1, 1], [], []>} : vector<24x24xbf16>, vector<24x32xbf16>, vector<24x32xf32> -> vector<24x32xf32>
    %62 = arith.truncf %61 : vector<24x32xf32> to vector<24x32xbf16>
    %63 = vector.extract_strided_slice %43 {offsets = [0, 0, 0], sizes = [1, 32, 128], strides = [1, 1, 1]} : vector<4x32x128xbf16> to vector<1x32x128xbf16>
    %64 = vector.shape_cast %63 : vector<1x32x128xbf16> to vector<32x128xbf16>
    %cst_26 = arith.constant dense<0.000000e+00> : vector<24x128xf32>
    %65 = tpu.matmul %62, %64, %cst_26 {dimension_numbers = #tpu.dot_dimension_numbers<[1], [0], [0], [1], [0, 0, 1, 1], [], []>} : vector<24x32xbf16>, vector<32x128xbf16>, vector<24x128xf32> -> vector<24x128xf32>
    %66 = arith.addf %44, %65 : vector<24x128xf32>
    %67 = vector.extract_strided_slice %33 {offsets = [0, 32], sizes = [24, 32], strides = [1, 1]} : vector<24x128xbf16> to vector<24x32xbf16>
    %68 = vector.extract_strided_slice %39 {offsets = [0, 32], sizes = [24, 32], strides = [1, 1]} : vector<24x128xbf16> to vector<24x32xbf16>
    %cst_27 = arith.constant dense<0.000000e+00> : vector<24x24xf32>
    %69 = tpu.matmul %67, %68, %cst_27 {dimension_numbers = #tpu.dot_dimension_numbers<[1], [1], [0], [0], [0, 0, 1, 0], [], []>} : vector<24x32xbf16>, vector<24x32xbf16>, vector<24x24xf32> -> vector<24x24xf32>
    %70 = arith.addf %69, %9 : vector<24x24xf32>
    %cst_28 = arith.constant dense<0xFF800000> : vector<24xf32>
    %71 = vector.multi_reduction <maximumf>, %70, %cst_28 [1] : vector<24x24xf32> to vector<24xf32>
    %72 = vector.shape_cast %71 : vector<24xf32> to vector<24x1xf32>
    %73 = vector.broadcast %72 : vector<24x1xf32> to vector<24x24xf32>
    %74 = arith.subf %70, %73 : vector<24x24xf32>
    %75 = math.exp %74 : vector<24x24xf32>
    %cst_29 = arith.constant dense<0.000000e+00> : vector<24xf32>
    %76 = vector.multi_reduction <add>, %75, %cst_29 [1] : vector<24x24xf32> to vector<24xf32>
    %77 = vector.shape_cast %76 : vector<24xf32> to vector<24x1xf32>
    %78 = tpu.reciprocal %77 {approx = true} : vector<24x1xf32> -> vector<24x1xf32>
    %79 = vector.broadcast %78 : vector<24x1xf32> to vector<24x24xf32>
    %80 = arith.mulf %75, %79 : vector<24x24xf32>
    %81 = arith.truncf %80 : vector<24x24xf32> to vector<24x24xbf16>
    %82 = vector.extract_strided_slice %41 {offsets = [0, 32], sizes = [24, 32], strides = [1, 1]} : vector<24x128xbf16> to vector<24x32xbf16>
    %cst_30 = arith.constant dense<0.000000e+00> : vector<24x32xf32>
    %83 = tpu.matmul %81, %82, %cst_30 {dimension_numbers = #tpu.dot_dimension_numbers<[1], [0], [0], [1], [0, 0, 1, 1], [], []>} : vector<24x24xbf16>, vector<24x32xbf16>, vector<24x32xf32> -> vector<24x32xf32>
    %84 = arith.truncf %83 : vector<24x32xf32> to vector<24x32xbf16>
    %85 = vector.extract_strided_slice %43 {offsets = [1, 0, 0], sizes = [1, 32, 128], strides = [1, 1, 1]} : vector<4x32x128xbf16> to vector<1x32x128xbf16>
    %86 = vector.shape_cast %85 : vector<1x32x128xbf16> to vector<32x128xbf16>
    %cst_31 = arith.constant dense<0.000000e+00> : vector<24x128xf32>
    %87 = tpu.matmul %84, %86, %cst_31 {dimension_numbers = #tpu.dot_dimension_numbers<[1], [0], [0], [1], [0, 0, 1, 1], [], []>} : vector<24x32xbf16>, vector<32x128xbf16>, vector<24x128xf32> -> vector<24x128xf32>
    %88 = arith.addf %66, %87 : vector<24x128xf32>
    %89 = vector.extract_strided_slice %33 {offsets = [0, 64], sizes = [24, 32], strides = [1, 1]} : vector<24x128xbf16> to vector<24x32xbf16>
    %90 = vector.extract_strided_slice %39 {offsets = [0, 64], sizes = [24, 32], strides = [1, 1]} : vector<24x128xbf16> to vector<24x32xbf16>
    %cst_32 = arith.constant dense<0.000000e+00> : vector<24x24xf32>
    %91 = tpu.matmul %89, %90, %cst_32 {dimension_numbers = #tpu.dot_dimension_numbers<[1], [1], [0], [0], [0, 0, 1, 0], [], []>} : vector<24x32xbf16>, vector<24x32xbf16>, vector<24x24xf32> -> vector<24x24xf32>
    %92 = arith.addf %91, %9 : vector<24x24xf32>
    %cst_33 = arith.constant dense<0xFF800000> : vector<24xf32>
    %93 = vector.multi_reduction <maximumf>, %92, %cst_33 [1] : vector<24x24xf32> to vector<24xf32>
    %94 = vector.shape_cast %93 : vector<24xf32> to vector<24x1xf32>
    %95 = vector.broadcast %94 : vector<24x1xf32> to vector<24x24xf32>
    %96 = arith.subf %92, %95 : vector<24x24xf32>
    %97 = math.exp %96 : vector<24x24xf32>
    %cst_34 = arith.constant dense<0.000000e+00> : vector<24xf32>
    %98 = vector.multi_reduction <add>, %97, %cst_34 [1] : vector<24x24xf32> to vector<24xf32>
    %99 = vector.shape_cast %98 : vector<24xf32> to vector<24x1xf32>
    %100 = tpu.reciprocal %99 {approx = true} : vector<24x1xf32> -> vector<24x1xf32>
    %101 = vector.broadcast %100 : vector<24x1xf32> to vector<24x24xf32>
    %102 = arith.mulf %97, %101 : vector<24x24xf32>
    %103 = arith.truncf %102 : vector<24x24xf32> to vector<24x24xbf16>
    %104 = vector.extract_strided_slice %41 {offsets = [0, 64], sizes = [24, 32], strides = [1, 1]} : vector<24x128xbf16> to vector<24x32xbf16>
    %cst_35 = arith.constant dense<0.000000e+00> : vector<24x32xf32>
    %105 = tpu.matmul %103, %104, %cst_35 {dimension_numbers = #tpu.dot_dimension_numbers<[1], [0], [0], [1], [0, 0, 1, 1], [], []>} : vector<24x24xbf16>, vector<24x32xbf16>, vector<24x32xf32> -> vector<24x32xf32>
    %106 = arith.truncf %105 : vector<24x32xf32> to vector<24x32xbf16>
    %107 = vector.extract_strided_slice %43 {offsets = [2, 0, 0], sizes = [1, 32, 128], strides = [1, 1, 1]} : vector<4x32x128xbf16> to vector<1x32x128xbf16>
    %108 = vector.shape_cast %107 : vector<1x32x128xbf16> to vector<32x128xbf16>
    %cst_36 = arith.constant dense<0.000000e+00> : vector<24x128xf32>
    %109 = tpu.matmul %106, %108, %cst_36 {dimension_numbers = #tpu.dot_dimension_numbers<[1], [0], [0], [1], [0, 0, 1, 1], [], []>} : vector<24x32xbf16>, vector<32x128xbf16>, vector<24x128xf32> -> vector<24x128xf32>
    %110 = arith.addf %88, %109 : vector<24x128xf32>
    %111 = vector.extract_strided_slice %33 {offsets = [0, 96], sizes = [24, 32], strides = [1, 1]} : vector<24x128xbf16> to vector<24x32xbf16>
    %112 = vector.extract_strided_slice %39 {offsets = [0, 96], sizes = [24, 32], strides = [1, 1]} : vector<24x128xbf16> to vector<24x32xbf16>
    %cst_37 = arith.constant dense<0.000000e+00> : vector<24x24xf32>
    %113 = tpu.matmul %111, %112, %cst_37 {dimension_numbers = #tpu.dot_dimension_numbers<[1], [1], [0], [0], [0, 0, 1, 0], [], []>} : vector<24x32xbf16>, vector<24x32xbf16>, vector<24x24xf32> -> vector<24x24xf32>
    %114 = arith.addf %113, %9 : vector<24x24xf32>
    %cst_38 = arith.constant dense<0xFF800000> : vector<24xf32>
    %115 = vector.multi_reduction <maximumf>, %114, %cst_38 [1] : vector<24x24xf32> to vector<24xf32>
    %116 = vector.shape_cast %115 : vector<24xf32> to vector<24x1xf32>
    %117 = vector.broadcast %116 : vector<24x1xf32> to vector<24x24xf32>
    %118 = arith.subf %114, %117 : vector<24x24xf32>
    %119 = math.exp %118 : vector<24x24xf32>
    %cst_39 = arith.constant dense<0.000000e+00> : vector<24xf32>
    %120 = vector.multi_reduction <add>, %119, %cst_39 [1] : vector<24x24xf32> to vector<24xf32>
    %121 = vector.shape_cast %120 : vector<24xf32> to vector<24x1xf32>
    %122 = tpu.reciprocal %121 {approx = true} : vector<24x1xf32> -> vector<24x1xf32>
    %123 = vector.broadcast %122 : vector<24x1xf32> to vector<24x24xf32>
    %124 = arith.mulf %119, %123 : vector<24x24xf32>
    %125 = arith.truncf %124 : vector<24x24xf32> to vector<24x24xbf16>
    %126 = vector.extract_strided_slice %41 {offsets = [0, 96], sizes = [24, 32], strides = [1, 1]} : vector<24x128xbf16> to vector<24x32xbf16>
    %cst_40 = arith.constant dense<0.000000e+00> : vector<24x32xf32>
    %127 = tpu.matmul %125, %126, %cst_40 {dimension_numbers = #tpu.dot_dimension_numbers<[1], [0], [0], [1], [0, 0, 1, 1], [], []>} : vector<24x24xbf16>, vector<24x32xbf16>, vector<24x32xf32> -> vector<24x32xf32>
    %128 = arith.truncf %127 : vector<24x32xf32> to vector<24x32xbf16>
    %129 = vector.extract_strided_slice %43 {offsets = [3, 0, 0], sizes = [1, 32, 128], strides = [1, 1, 1]} : vector<4x32x128xbf16> to vector<1x32x128xbf16>
    %130 = vector.shape_cast %129 : vector<1x32x128xbf16> to vector<32x128xbf16>
    %cst_41 = arith.constant dense<0.000000e+00> : vector<24x128xf32>
    %131 = tpu.matmul %128, %130, %cst_41 {dimension_numbers = #tpu.dot_dimension_numbers<[1], [0], [0], [1], [0, 0, 1, 1], [], []>} : vector<24x32xbf16>, vector<32x128xbf16>, vector<24x128xf32> -> vector<24x128xf32>
    %132 = arith.addf %110, %131 : vector<24x128xf32>
    %133 = arith.addf %1, %132 : vector<24x128xf32>
    %c0_42 = arith.constant 0 : index
    %c0_43 = arith.constant 0 : index
    %c0_44 = arith.constant 0 : index
    %134 = vector.load %arg8[%c0_42, %c0_43, %c0_44] : memref<2x1x128xf32, #tpu.memory_space<vmem>>, vector<1x1x128xf32>
    %135 = vector.shape_cast %134 : vector<1x1x128xf32> to vector<1x128xf32>
    %136 = arith.mulf %133, %133 : vector<24x128xf32>
    %cst_45 = arith.constant dense<0.000000e+00> : vector<24xf32>
    %137 = vector.multi_reduction <add>, %136, %cst_45 [1] : vector<24x128xf32> to vector<24xf32>
    %138 = vector.shape_cast %137 : vector<24xf32> to vector<24x1xf32>
    %cst_46 = arith.constant 1.280000e+02 : f32
    %139 = vector.broadcast %cst_46 : f32 to vector<24x1xf32>
    %140 = arith.divf %138, %139 : vector<24x1xf32>
    %cst_47 = arith.constant 9.99999974E-6 : f32
    %141 = vector.broadcast %cst_47 : f32 to vector<24x1xf32>
    %142 = arith.addf %140, %141 : vector<24x1xf32>
    %143 = math.rsqrt %142 : vector<24x1xf32>
    %144 = vector.broadcast %143 : vector<24x1xf32> to vector<24x128xf32>
    %145 = arith.mulf %133, %144 : vector<24x128xf32>
    %146 = vector.broadcast %135 : vector<1x128xf32> to vector<24x128xf32>
    %147 = arith.mulf %145, %146 : vector<24x128xf32>
    %148 = arith.truncf %147 : vector<24x128xf32> to vector<24x128xbf16>
    %c0_48 = arith.constant 0 : index
    %c0_49 = arith.constant 0 : index
    %c0_50 = arith.constant 0 : index
    %149 = vector.load %arg9[%c0_48, %c0_49, %c0_50] : memref<2x128x512xbf16, #tpu.memory_space<vmem>>, vector<1x128x512xbf16>
    %150 = vector.shape_cast %149 : vector<1x128x512xbf16> to vector<128x512xbf16>
    %cst_51 = arith.constant dense<0.000000e+00> : vector<24x512xf32>
    %151 = tpu.matmul %148, %150, %cst_51 {dimension_numbers = #tpu.dot_dimension_numbers<[1], [0], [0], [1], [0, 0, 1, 1], [], []>} : vector<24x128xbf16>, vector<128x512xbf16>, vector<24x512xf32> -> vector<24x512xf32>
    %152 = vector.extract_strided_slice %151 {offsets = [0, 0], sizes = [24, 256], strides = [1, 1]} : vector<24x512xf32> to vector<24x256xf32>
    %153 = vector.extract_strided_slice %151 {offsets = [0, 256], sizes = [24, 256], strides = [1, 1]} : vector<24x512xf32> to vector<24x256xf32>
    %154 = arith.negf %152 : vector<24x256xf32>
    %155 = math.exp %154 : vector<24x256xf32>
    %cst_52 = arith.constant 1.000000e+00 : f32
    %156 = vector.broadcast %cst_52 : f32 to vector<24x256xf32>
    %157 = arith.addf %156, %155 : vector<24x256xf32>
    %158 = arith.divf %156, %157 : vector<24x256xf32>
    %159 = arith.mulf %152, %158 : vector<24x256xf32>
    %160 = arith.mulf %159, %153 : vector<24x256xf32>
    %161 = arith.truncf %160 : vector<24x256xf32> to vector<24x256xbf16>
    %c0_53 = arith.constant 0 : index
    %c0_54 = arith.constant 0 : index
    %c0_55 = arith.constant 0 : index
    %162 = vector.load %arg10[%c0_53, %c0_54, %c0_55] : memref<2x256x128xbf16, #tpu.memory_space<vmem>>, vector<1x256x128xbf16>
    %163 = vector.shape_cast %162 : vector<1x256x128xbf16> to vector<256x128xbf16>
    %cst_56 = arith.constant dense<0.000000e+00> : vector<24x128xf32>
    %164 = tpu.matmul %161, %163, %cst_56 {dimension_numbers = #tpu.dot_dimension_numbers<[1], [0], [0], [1], [0, 0, 1, 1], [], []>} : vector<24x256xbf16>, vector<256x128xbf16>, vector<24x128xf32> -> vector<24x128xf32>
    %165 = arith.addf %133, %164 : vector<24x128xf32>
    %c1 = arith.constant 1 : index
    %c0_57 = arith.constant 0 : index
    %c0_58 = arith.constant 0 : index
    %166 = vector.load %arg5[%c1, %c0_57, %c0_58] : memref<2x1x128xf32, #tpu.memory_space<vmem>>, vector<1x1x128xf32>
    %167 = vector.shape_cast %166 : vector<1x1x128xf32> to vector<1x128xf32>
    %168 = arith.mulf %165, %165 : vector<24x128xf32>
    %cst_59 = arith.constant dense<0.000000e+00> : vector<24xf32>
    %169 = vector.multi_reduction <add>, %168, %cst_59 [1] : vector<24x128xf32> to vector<24xf32>
    %170 = vector.shape_cast %169 : vector<24xf32> to vector<24x1xf32>
    %cst_60 = arith.constant 1.280000e+02 : f32
    %171 = vector.broadcast %cst_60 : f32 to vector<24x1xf32>
    %172 = arith.divf %170, %171 : vector<24x1xf32>
    %cst_61 = arith.constant 9.99999974E-6 : f32
    %173 = vector.broadcast %cst_61 : f32 to vector<24x1xf32>
    %174 = arith.addf %172, %173 : vector<24x1xf32>
    %175 = math.rsqrt %174 : vector<24x1xf32>
    %176 = vector.broadcast %175 : vector<24x1xf32> to vector<24x128xf32>
    %177 = arith.mulf %165, %176 : vector<24x128xf32>
    %178 = vector.broadcast %167 : vector<1x128xf32> to vector<24x128xf32>
    %179 = arith.mulf %177, %178 : vector<24x128xf32>
    %180 = arith.truncf %179 : vector<24x128xf32> to vector<24x128xbf16>
    %c1_62 = arith.constant 1 : index
    %c0_63 = arith.constant 0 : index
    %c0_64 = arith.constant 0 : index
    %181 = vector.load %arg6[%c1_62, %c0_63, %c0_64] : memref<2x128x640xbf16, #tpu.memory_space<vmem>>, vector<1x128x640xbf16>
    %182 = vector.shape_cast %181 : vector<1x128x640xbf16> to vector<128x640xbf16>
    %cst_65 = arith.constant dense<0.000000e+00> : vector<24x640xf32>
    %183 = tpu.matmul %180, %182, %cst_65 {dimension_numbers = #tpu.dot_dimension_numbers<[1], [0], [0], [1], [0, 0, 1, 1], [], []>} : vector<24x128xbf16>, vector<128x640xbf16>, vector<24x640xf32> -> vector<24x640xf32>
    %184 = vector.extract_strided_slice %183 {offsets = [0, 0], sizes = [24, 128], strides = [1, 1]} : vector<24x640xf32> to vector<24x128xf32>
    %185 = vector.extract_strided_slice %183 {offsets = [0, 128], sizes = [24, 128], strides = [1, 1]} : vector<24x640xf32> to vector<24x128xf32>
    %186 = arith.mulf %184, %2 : vector<24x128xf32>
    %187 = arith.mulf %185, %3 : vector<24x128xf32>
    %188 = arith.addf %186, %187 : vector<24x128xf32>
    %189 = arith.truncf %188 : vector<24x128xf32> to vector<24x128xbf16>
    %190 = vector.extract_strided_slice %183 {offsets = [0, 256], sizes = [24, 128], strides = [1, 1]} : vector<24x640xf32> to vector<24x128xf32>
    %191 = vector.extract_strided_slice %183 {offsets = [0, 384], sizes = [24, 128], strides = [1, 1]} : vector<24x640xf32> to vector<24x128xf32>
    %192 = arith.mulf %190, %2 : vector<24x128xf32>
    %193 = arith.mulf %191, %3 : vector<24x128xf32>
    %194 = arith.addf %192, %193 : vector<24x128xf32>
    %195 = arith.truncf %194 : vector<24x128xf32> to vector<24x128xbf16>
    %196 = vector.extract_strided_slice %183 {offsets = [0, 512], sizes = [24, 128], strides = [1, 1]} : vector<24x640xf32> to vector<24x128xf32>
    %197 = arith.truncf %196 : vector<24x128xf32> to vector<24x128xbf16>
    %c1_66 = arith.constant 1 : index
    %c0_67 = arith.constant 0 : index
    %c0_68 = arith.constant 0 : index
    %c0_69 = arith.constant 0 : index
    %198 = vector.load %arg7[%c1_66, %c0_67, %c0_68, %c0_69] : memref<2x4x32x128xbf16, #tpu.memory_space<vmem>>, vector<1x4x32x128xbf16>
    %199 = vector.shape_cast %198 : vector<1x4x32x128xbf16> to vector<4x32x128xbf16>
    %cst_70 = arith.constant 0.000000e+00 : f32
    %200 = vector.broadcast %cst_70 : f32 to vector<24x128xf32>
    %201 = vector.extract_strided_slice %189 {offsets = [0, 0], sizes = [24, 32], strides = [1, 1]} : vector<24x128xbf16> to vector<24x32xbf16>
    %202 = vector.extract_strided_slice %195 {offsets = [0, 0], sizes = [24, 32], strides = [1, 1]} : vector<24x128xbf16> to vector<24x32xbf16>
    %cst_71 = arith.constant dense<0.000000e+00> : vector<24x24xf32>
    %203 = tpu.matmul %201, %202, %cst_71 {dimension_numbers = #tpu.dot_dimension_numbers<[1], [1], [0], [0], [0, 0, 1, 0], [], []>} : vector<24x32xbf16>, vector<24x32xbf16>, vector<24x24xf32> -> vector<24x24xf32>
    %204 = arith.addf %203, %9 : vector<24x24xf32>
    %cst_72 = arith.constant dense<0xFF800000> : vector<24xf32>
    %205 = vector.multi_reduction <maximumf>, %204, %cst_72 [1] : vector<24x24xf32> to vector<24xf32>
    %206 = vector.shape_cast %205 : vector<24xf32> to vector<24x1xf32>
    %207 = vector.broadcast %206 : vector<24x1xf32> to vector<24x24xf32>
    %208 = arith.subf %204, %207 : vector<24x24xf32>
    %209 = math.exp %208 : vector<24x24xf32>
    %cst_73 = arith.constant dense<0.000000e+00> : vector<24xf32>
    %210 = vector.multi_reduction <add>, %209, %cst_73 [1] : vector<24x24xf32> to vector<24xf32>
    %211 = vector.shape_cast %210 : vector<24xf32> to vector<24x1xf32>
    %212 = tpu.reciprocal %211 {approx = true} : vector<24x1xf32> -> vector<24x1xf32>
    %213 = vector.broadcast %212 : vector<24x1xf32> to vector<24x24xf32>
    %214 = arith.mulf %209, %213 : vector<24x24xf32>
    %215 = arith.truncf %214 : vector<24x24xf32> to vector<24x24xbf16>
    %216 = vector.extract_strided_slice %197 {offsets = [0, 0], sizes = [24, 32], strides = [1, 1]} : vector<24x128xbf16> to vector<24x32xbf16>
    %cst_74 = arith.constant dense<0.000000e+00> : vector<24x32xf32>
    %217 = tpu.matmul %215, %216, %cst_74 {dimension_numbers = #tpu.dot_dimension_numbers<[1], [0], [0], [1], [0, 0, 1, 1], [], []>} : vector<24x24xbf16>, vector<24x32xbf16>, vector<24x32xf32> -> vector<24x32xf32>
    %218 = arith.truncf %217 : vector<24x32xf32> to vector<24x32xbf16>
    %219 = vector.extract_strided_slice %199 {offsets = [0, 0, 0], sizes = [1, 32, 128], strides = [1, 1, 1]} : vector<4x32x128xbf16> to vector<1x32x128xbf16>
    %220 = vector.shape_cast %219 : vector<1x32x128xbf16> to vector<32x128xbf16>
    %cst_75 = arith.constant dense<0.000000e+00> : vector<24x128xf32>
    %221 = tpu.matmul %218, %220, %cst_75 {dimension_numbers = #tpu.dot_dimension_numbers<[1], [0], [0], [1], [0, 0, 1, 1], [], []>} : vector<24x32xbf16>, vector<32x128xbf16>, vector<24x128xf32> -> vector<24x128xf32>
    %222 = arith.addf %200, %221 : vector<24x128xf32>
    %223 = vector.extract_strided_slice %189 {offsets = [0, 32], sizes = [24, 32], strides = [1, 1]} : vector<24x128xbf16> to vector<24x32xbf16>
    %224 = vector.extract_strided_slice %195 {offsets = [0, 32], sizes = [24, 32], strides = [1, 1]} : vector<24x128xbf16> to vector<24x32xbf16>
    %cst_76 = arith.constant dense<0.000000e+00> : vector<24x24xf32>
    %225 = tpu.matmul %223, %224, %cst_76 {dimension_numbers = #tpu.dot_dimension_numbers<[1], [1], [0], [0], [0, 0, 1, 0], [], []>} : vector<24x32xbf16>, vector<24x32xbf16>, vector<24x24xf32> -> vector<24x24xf32>
    %226 = arith.addf %225, %9 : vector<24x24xf32>
    %cst_77 = arith.constant dense<0xFF800000> : vector<24xf32>
    %227 = vector.multi_reduction <maximumf>, %226, %cst_77 [1] : vector<24x24xf32> to vector<24xf32>
    %228 = vector.shape_cast %227 : vector<24xf32> to vector<24x1xf32>
    %229 = vector.broadcast %228 : vector<24x1xf32> to vector<24x24xf32>
    %230 = arith.subf %226, %229 : vector<24x24xf32>
    %231 = math.exp %230 : vector<24x24xf32>
    %cst_78 = arith.constant dense<0.000000e+00> : vector<24xf32>
    %232 = vector.multi_reduction <add>, %231, %cst_78 [1] : vector<24x24xf32> to vector<24xf32>
    %233 = vector.shape_cast %232 : vector<24xf32> to vector<24x1xf32>
    %234 = tpu.reciprocal %233 {approx = true} : vector<24x1xf32> -> vector<24x1xf32>
    %235 = vector.broadcast %234 : vector<24x1xf32> to vector<24x24xf32>
    %236 = arith.mulf %231, %235 : vector<24x24xf32>
    %237 = arith.truncf %236 : vector<24x24xf32> to vector<24x24xbf16>
    %238 = vector.extract_strided_slice %197 {offsets = [0, 32], sizes = [24, 32], strides = [1, 1]} : vector<24x128xbf16> to vector<24x32xbf16>
    %cst_79 = arith.constant dense<0.000000e+00> : vector<24x32xf32>
    %239 = tpu.matmul %237, %238, %cst_79 {dimension_numbers = #tpu.dot_dimension_numbers<[1], [0], [0], [1], [0, 0, 1, 1], [], []>} : vector<24x24xbf16>, vector<24x32xbf16>, vector<24x32xf32> -> vector<24x32xf32>
    %240 = arith.truncf %239 : vector<24x32xf32> to vector<24x32xbf16>
    %241 = vector.extract_strided_slice %199 {offsets = [1, 0, 0], sizes = [1, 32, 128], strides = [1, 1, 1]} : vector<4x32x128xbf16> to vector<1x32x128xbf16>
    %242 = vector.shape_cast %241 : vector<1x32x128xbf16> to vector<32x128xbf16>
    %cst_80 = arith.constant dense<0.000000e+00> : vector<24x128xf32>
    %243 = tpu.matmul %240, %242, %cst_80 {dimension_numbers = #tpu.dot_dimension_numbers<[1], [0], [0], [1], [0, 0, 1, 1], [], []>} : vector<24x32xbf16>, vector<32x128xbf16>, vector<24x128xf32> -> vector<24x128xf32>
    %244 = arith.addf %222, %243 : vector<24x128xf32>
    %245 = vector.extract_strided_slice %189 {offsets = [0, 64], sizes = [24, 32], strides = [1, 1]} : vector<24x128xbf16> to vector<24x32xbf16>
    %246 = vector.extract_strided_slice %195 {offsets = [0, 64], sizes = [24, 32], strides = [1, 1]} : vector<24x128xbf16> to vector<24x32xbf16>
    %cst_81 = arith.constant dense<0.000000e+00> : vector<24x24xf32>
    %247 = tpu.matmul %245, %246, %cst_81 {dimension_numbers = #tpu.dot_dimension_numbers<[1], [1], [0], [0], [0, 0, 1, 0], [], []>} : vector<24x32xbf16>, vector<24x32xbf16>, vector<24x24xf32> -> vector<24x24xf32>
    %248 = arith.addf %247, %9 : vector<24x24xf32>
    %cst_82 = arith.constant dense<0xFF800000> : vector<24xf32>
    %249 = vector.multi_reduction <maximumf>, %248, %cst_82 [1] : vector<24x24xf32> to vector<24xf32>
    %250 = vector.shape_cast %249 : vector<24xf32> to vector<24x1xf32>
    %251 = vector.broadcast %250 : vector<24x1xf32> to vector<24x24xf32>
    %252 = arith.subf %248, %251 : vector<24x24xf32>
    %253 = math.exp %252 : vector<24x24xf32>
    %cst_83 = arith.constant dense<0.000000e+00> : vector<24xf32>
    %254 = vector.multi_reduction <add>, %253, %cst_83 [1] : vector<24x24xf32> to vector<24xf32>
    %255 = vector.shape_cast %254 : vector<24xf32> to vector<24x1xf32>
    %256 = tpu.reciprocal %255 {approx = true} : vector<24x1xf32> -> vector<24x1xf32>
    %257 = vector.broadcast %256 : vector<24x1xf32> to vector<24x24xf32>
    %258 = arith.mulf %253, %257 : vector<24x24xf32>
    %259 = arith.truncf %258 : vector<24x24xf32> to vector<24x24xbf16>
    %260 = vector.extract_strided_slice %197 {offsets = [0, 64], sizes = [24, 32], strides = [1, 1]} : vector<24x128xbf16> to vector<24x32xbf16>
    %cst_84 = arith.constant dense<0.000000e+00> : vector<24x32xf32>
    %261 = tpu.matmul %259, %260, %cst_84 {dimension_numbers = #tpu.dot_dimension_numbers<[1], [0], [0], [1], [0, 0, 1, 1], [], []>} : vector<24x24xbf16>, vector<24x32xbf16>, vector<24x32xf32> -> vector<24x32xf32>
    %262 = arith.truncf %261 : vector<24x32xf32> to vector<24x32xbf16>
    %263 = vector.extract_strided_slice %199 {offsets = [2, 0, 0], sizes = [1, 32, 128], strides = [1, 1, 1]} : vector<4x32x128xbf16> to vector<1x32x128xbf16>
    %264 = vector.shape_cast %263 : vector<1x32x128xbf16> to vector<32x128xbf16>
    %cst_85 = arith.constant dense<0.000000e+00> : vector<24x128xf32>
    %265 = tpu.matmul %262, %264, %cst_85 {dimension_numbers = #tpu.dot_dimension_numbers<[1], [0], [0], [1], [0, 0, 1, 1], [], []>} : vector<24x32xbf16>, vector<32x128xbf16>, vector<24x128xf32> -> vector<24x128xf32>
    %266 = arith.addf %244, %265 : vector<24x128xf32>
    %267 = vector.extract_strided_slice %189 {offsets = [0, 96], sizes = [24, 32], strides = [1, 1]} : vector<24x128xbf16> to vector<24x32xbf16>
    %268 = vector.extract_strided_slice %195 {offsets = [0, 96], sizes = [24, 32], strides = [1, 1]} : vector<24x128xbf16> to vector<24x32xbf16>
    %cst_86 = arith.constant dense<0.000000e+00> : vector<24x24xf32>
    %269 = tpu.matmul %267, %268, %cst_86 {dimension_numbers = #tpu.dot_dimension_numbers<[1], [1], [0], [0], [0, 0, 1, 0], [], []>} : vector<24x32xbf16>, vector<24x32xbf16>, vector<24x24xf32> -> vector<24x24xf32>
    %270 = arith.addf %269, %9 : vector<24x24xf32>
    %cst_87 = arith.constant dense<0xFF800000> : vector<24xf32>
    %271 = vector.multi_reduction <maximumf>, %270, %cst_87 [1] : vector<24x24xf32> to vector<24xf32>
    %272 = vector.shape_cast %271 : vector<24xf32> to vector<24x1xf32>
    %273 = vector.broadcast %272 : vector<24x1xf32> to vector<24x24xf32>
    %274 = arith.subf %270, %273 : vector<24x24xf32>
    %275 = math.exp %274 : vector<24x24xf32>
    %cst_88 = arith.constant dense<0.000000e+00> : vector<24xf32>
    %276 = vector.multi_reduction <add>, %275, %cst_88 [1] : vector<24x24xf32> to vector<24xf32>
    %277 = vector.shape_cast %276 : vector<24xf32> to vector<24x1xf32>
    %278 = tpu.reciprocal %277 {approx = true} : vector<24x1xf32> -> vector<24x1xf32>
    %279 = vector.broadcast %278 : vector<24x1xf32> to vector<24x24xf32>
    %280 = arith.mulf %275, %279 : vector<24x24xf32>
    %281 = arith.truncf %280 : vector<24x24xf32> to vector<24x24xbf16>
    %282 = vector.extract_strided_slice %197 {offsets = [0, 96], sizes = [24, 32], strides = [1, 1]} : vector<24x128xbf16> to vector<24x32xbf16>
    %cst_89 = arith.constant dense<0.000000e+00> : vector<24x32xf32>
    %283 = tpu.matmul %281, %282, %cst_89 {dimension_numbers = #tpu.dot_dimension_numbers<[1], [0], [0], [1], [0, 0, 1, 1], [], []>} : vector<24x24xbf16>, vector<24x32xbf16>, vector<24x32xf32> -> vector<24x32xf32>
    %284 = arith.truncf %283 : vector<24x32xf32> to vector<24x32xbf16>
    %285 = vector.extract_strided_slice %199 {offsets = [3, 0, 0], sizes = [1, 32, 128], strides = [1, 1, 1]} : vector<4x32x128xbf16> to vector<1x32x128xbf16>
    %286 = vector.shape_cast %285 : vector<1x32x128xbf16> to vector<32x128xbf16>
    %cst_90 = arith.constant dense<0.000000e+00> : vector<24x128xf32>
    %287 = tpu.matmul %284, %286, %cst_90 {dimension_numbers = #tpu.dot_dimension_numbers<[1], [0], [0], [1], [0, 0, 1, 1], [], []>} : vector<24x32xbf16>, vector<32x128xbf16>, vector<24x128xf32> -> vector<24x128xf32>
    %288 = arith.addf %266, %287 : vector<24x128xf32>
    %289 = arith.addf %165, %288 : vector<24x128xf32>
    %c1_91 = arith.constant 1 : index
    %c0_92 = arith.constant 0 : index
    %c0_93 = arith.constant 0 : index
    %290 = vector.load %arg8[%c1_91, %c0_92, %c0_93] : memref<2x1x128xf32, #tpu.memory_space<vmem>>, vector<1x1x128xf32>
    %291 = vector.shape_cast %290 : vector<1x1x128xf32> to vector<1x128xf32>
    %292 = arith.mulf %289, %289 : vector<24x128xf32>
    %cst_94 = arith.constant dense<0.000000e+00> : vector<24xf32>
    %293 = vector.multi_reduction <add>, %292, %cst_94 [1] : vector<24x128xf32> to vector<24xf32>
    %294 = vector.shape_cast %293 : vector<24xf32> to vector<24x1xf32>
    %cst_95 = arith.constant 1.280000e+02 : f32
    %295 = vector.broadcast %cst_95 : f32 to vector<24x1xf32>
    %296 = arith.divf %294, %295 : vector<24x1xf32>
    %cst_96 = arith.constant 9.99999974E-6 : f32
    %297 = vector.broadcast %cst_96 : f32 to vector<24x1xf32>
    %298 = arith.addf %296, %297 : vector<24x1xf32>
    %299 = math.rsqrt %298 : vector<24x1xf32>
    %300 = vector.broadcast %299 : vector<24x1xf32> to vector<24x128xf32>
    %301 = arith.mulf %289, %300 : vector<24x128xf32>
    %302 = vector.broadcast %291 : vector<1x128xf32> to vector<24x128xf32>
    %303 = arith.mulf %301, %302 : vector<24x128xf32>
    %304 = arith.truncf %303 : vector<24x128xf32> to vector<24x128xbf16>
    %c1_97 = arith.constant 1 : index
    %c0_98 = arith.constant 0 : index
    %c0_99 = arith.constant 0 : index
    %305 = vector.load %arg9[%c1_97, %c0_98, %c0_99] : memref<2x128x512xbf16, #tpu.memory_space<vmem>>, vector<1x128x512xbf16>
    %306 = vector.shape_cast %305 : vector<1x128x512xbf16> to vector<128x512xbf16>
    %cst_100 = arith.constant dense<0.000000e+00> : vector<24x512xf32>
    %307 = tpu.matmul %304, %306, %cst_100 {dimension_numbers = #tpu.dot_dimension_numbers<[1], [0], [0], [1], [0, 0, 1, 1], [], []>} : vector<24x128xbf16>, vector<128x512xbf16>, vector<24x512xf32> -> vector<24x512xf32>
    %308 = vector.extract_strided_slice %307 {offsets = [0, 0], sizes = [24, 256], strides = [1, 1]} : vector<24x512xf32> to vector<24x256xf32>
    %309 = vector.extract_strided_slice %307 {offsets = [0, 256], sizes = [24, 256], strides = [1, 1]} : vector<24x512xf32> to vector<24x256xf32>
    %310 = arith.negf %308 : vector<24x256xf32>
    %311 = math.exp %310 : vector<24x256xf32>
    %cst_101 = arith.constant 1.000000e+00 : f32
    %312 = vector.broadcast %cst_101 : f32 to vector<24x256xf32>
    %313 = arith.addf %312, %311 : vector<24x256xf32>
    %314 = arith.divf %312, %313 : vector<24x256xf32>
    %315 = arith.mulf %308, %314 : vector<24x256xf32>
    %316 = arith.mulf %315, %309 : vector<24x256xf32>
    %317 = arith.truncf %316 : vector<24x256xf32> to vector<24x256xbf16>
    %c1_102 = arith.constant 1 : index
    %c0_103 = arith.constant 0 : index
    %c0_104 = arith.constant 0 : index
    %318 = vector.load %arg10[%c1_102, %c0_103, %c0_104] : memref<2x256x128xbf16, #tpu.memory_space<vmem>>, vector<1x256x128xbf16>
    %319 = vector.shape_cast %318 : vector<1x256x128xbf16> to vector<256x128xbf16>
    %cst_105 = arith.constant dense<0.000000e+00> : vector<24x128xf32>
    %320 = tpu.matmul %317, %319, %cst_105 {dimension_numbers = #tpu.dot_dimension_numbers<[1], [0], [0], [1], [0, 0, 1, 1], [], []>} : vector<24x256xbf16>, vector<256x128xbf16>, vector<24x128xf32> -> vector<24x128xf32>
    %321 = arith.addf %289, %320 : vector<24x128xf32>
    %c0_106 = arith.constant 0 : index
    %c0_107 = arith.constant 0 : index
    %322 = vector.load %arg11[%c0_106, %c0_107] : memref<1x128xf32, #tpu.memory_space<vmem>>, vector<1x128xf32>
    %323 = arith.mulf %321, %321 : vector<24x128xf32>
    %cst_108 = arith.constant dense<0.000000e+00> : vector<24xf32>
    %324 = vector.multi_reduction <add>, %323, %cst_108 [1] : vector<24x128xf32> to vector<24xf32>
    %325 = vector.shape_cast %324 : vector<24xf32> to vector<24x1xf32>
    %cst_109 = arith.constant 1.280000e+02 : f32
    %326 = vector.broadcast %cst_109 : f32 to vector<24x1xf32>
    %327 = arith.divf %325, %326 : vector<24x1xf32>
    %cst_110 = arith.constant 9.99999974E-6 : f32
    %328 = vector.broadcast %cst_110 : f32 to vector<24x1xf32>
    %329 = arith.addf %327, %328 : vector<24x1xf32>
    %330 = math.rsqrt %329 : vector<24x1xf32>
    %331 = vector.broadcast %330 : vector<24x1xf32> to vector<24x128xf32>
    %332 = arith.mulf %321, %331 : vector<24x128xf32>
    %333 = vector.broadcast %322 : vector<1x128xf32> to vector<24x128xf32>
    %334 = arith.mulf %332, %333 : vector<24x128xf32>
    %c0_111 = arith.constant 0 : index
    %c0_112 = arith.constant 0 : index
    %c0_113 = arith.constant 0 : index
    %335 = vector.load %arg13[%c0_111, %c0_112, %c0_113] : memref<1x24x128xf32, #tpu.memory_space<vmem>>, vector<1x24x128xf32>
    %336 = vector.shape_cast %335 : vector<1x24x128xf32> to vector<24x128xf32>
    %337 = vector.shape_cast %334 : vector<24x128xf32> to vector<1x24x128xf32>
    tpu.vector_store %arg13[%c0_111, %c0_112, %c0_113], %337 {strides = array<i32>} : memref<1x24x128xf32, #tpu.memory_space<vmem>>, vector<1x24x128xf32>,
    %c0_114 = arith.constant 0 : index
    %c0_115 = arith.constant 0 : index
    %c0_116 = arith.constant 0 : index
    %338 = vector.load %arg4[%c0_114, %c0_115, %c0_116] : memref<1x24x1xf32, #tpu.memory_space<vmem>>, vector<1x24x1xf32>
    %339 = vector.shape_cast %338 : vector<1x24x1xf32> to vector<24x1xf32>
    %340 = vector.broadcast %339 : vector<24x1xf32> to vector<24x128xf32>
    %341 = arith.mulf %334, %340 : vector<24x128xf32>
    %342 = arith.truncf %341 : vector<24x128xf32> to vector<24x128xbf16>
    %c0_117 = arith.constant 0 : index
    %c0_118 = arith.constant 0 : index
    %343 = vector.load %arg12[%c0_117, %c0_118] : memref<128x256xbf16, #tpu.memory_space<vmem>>, vector<128x256xbf16>
    %cst_119 = arith.constant dense<0.000000e+00> : vector<24x256xf32>
    %344 = tpu.matmul %342, %343, %cst_119 {dimension_numbers = #tpu.dot_dimension_numbers<[1], [0], [0], [1], [0, 0, 1, 1], [], []>} : vector<24x128xbf16>, vector<128x256xbf16>, vector<24x256xf32> -> vector<24x256xf32>
    %c0_120 = arith.constant 0 : index
    %c0_121 = arith.constant 0 : index
    %c0_122 = arith.constant 0 : index
    %345 = vector.load %arg14[%c0_120, %c0_121, %c0_122] : memref<1x24x256xf32, #tpu.memory_space<vmem>>, vector<1x24x256xf32>
    %346 = vector.shape_cast %345 : vector<1x24x256xf32> to vector<24x256xf32>
    %347 = vector.shape_cast %344 : vector<24x256xf32> to vector<1x24x256xf32>
    tpu.vector_store %arg14[%c0_120, %c0_121, %c0_122], %347 {strides = array<i32>} : memref<1x24x256xf32, #tpu.memory_space<vmem>>, vector<1x24x256xf32>,
    return
  }
  func.func @transform_0(%arg0: i32) -> (i32, i32, i32) {
    %c0_i32 = arith.constant 0 : i32
    %c0_i32_0 = arith.constant 0 : i32
    %c0_i32_1 = arith.constant 0 : i32
    return %arg0, %c0_i32, %c0_i32_0 : i32, i32, i32
  }
  func.func @transform_1(%arg0: i32) -> (i32, i32) {
    %c0_i32 = arith.constant 0 : i32
    %c0_i32_0 = arith.constant 0 : i32
    %c0_i32_1 = arith.constant 0 : i32
    return %c0_i32, %c0_i32_0 : i32, i32
  }
  func.func @transform_2(%arg0: i32) -> (i32, i32) {
    %c0_i32 = arith.constant 0 : i32
    %c0_i32_0 = arith.constant 0 : i32
    %c0_i32_1 = arith.constant 0 : i32
    return %c0_i32, %c0_i32_0 : i32, i32
  }
  func.func @transform_3(%arg0: i32) -> (i32, i32, i32) {
    %c0_i32 = arith.constant 0 : i32
    %c0_i32_0 = arith.constant 0 : i32
    %c0_i32_1 = arith.constant 0 : i32
    return %arg0, %c0_i32, %c0_i32_0 : i32, i32, i32
  }
  func.func @transform_4(%arg0: i32) -> (i32, i32, i32) {
    %c0_i32 = arith.constant 0 : i32
    %c0_i32_0 = arith.constant 0 : i32
    %c0_i32_1 = arith.constant 0 : i32
    %c0_i32_2 = arith.constant 0 : i32
    return %c0_i32, %c0_i32_0, %c0_i32_1 : i32, i32, i32
  }
  func.func @transform_5(%arg0: i32) -> (i32, i32, i32) {
    %c0_i32 = arith.constant 0 : i32
    %c0_i32_0 = arith.constant 0 : i32
    %c0_i32_1 = arith.constant 0 : i32
    %c0_i32_2 = arith.constant 0 : i32
    return %c0_i32, %c0_i32_0, %c0_i32_1 : i32, i32, i32
  }
  func.func @transform_6(%arg0: i32) -> (i32, i32, i32, i32) {
    %c0_i32 = arith.constant 0 : i32
    %c0_i32_0 = arith.constant 0 : i32
    %c0_i32_1 = arith.constant 0 : i32
    %c0_i32_2 = arith.constant 0 : i32
    %c0_i32_3 = arith.constant 0 : i32
    return %c0_i32, %c0_i32_0, %c0_i32_1, %c0_i32_2 : i32, i32, i32, i32
  }
  func.func @transform_7(%arg0: i32) -> (i32, i32, i32) {
    %c0_i32 = arith.constant 0 : i32
    %c0_i32_0 = arith.constant 0 : i32
    %c0_i32_1 = arith.constant 0 : i32
    %c0_i32_2 = arith.constant 0 : i32
    return %c0_i32, %c0_i32_0, %c0_i32_1 : i32, i32, i32
  }
  func.func @transform_8(%arg0: i32) -> (i32, i32, i32) {
    %c0_i32 = arith.constant 0 : i32
    %c0_i32_0 = arith.constant 0 : i32
    %c0_i32_1 = arith.constant 0 : i32
    %c0_i32_2 = arith.constant 0 : i32
    return %c0_i32, %c0_i32_0, %c0_i32_1 : i32, i32, i32
  }
  func.func @transform_9(%arg0: i32) -> (i32, i32, i32) {
    %c0_i32 = arith.constant 0 : i32
    %c0_i32_0 = arith.constant 0 : i32
    %c0_i32_1 = arith.constant 0 : i32
    %c0_i32_2 = arith.constant 0 : i32
    return %c0_i32, %c0_i32_0, %c0_i32_1 : i32, i32, i32
  }
  func.func @transform_10(%arg0: i32) -> (i32, i32) {
    %c0_i32 = arith.constant 0 : i32
    %c0_i32_0 = arith.constant 0 : i32
    %c0_i32_1 = arith.constant 0 : i32
    return %c0_i32, %c0_i32_0 : i32, i32
  }
  func.func @transform_11(%arg0: i32) -> (i32, i32) {
    %c0_i32 = arith.constant 0 : i32
    %c0_i32_0 = arith.constant 0 : i32
    %c0_i32_1 = arith.constant 0 : i32
    return %c0_i32, %c0_i32_0 : i32, i32
  }
  func.func @transform_12(%arg0: i32) -> (i32, i32, i32) {
    %c0_i32 = arith.constant 0 : i32
    %c0_i32_0 = arith.constant 0 : i32
    %c0_i32_1 = arith.constant 0 : i32
    return %arg0, %c0_i32, %c0_i32_0 : i32, i32, i32
  }
  func.func @transform_13(%arg0: i32) -> (i32, i32, i32) {
    %c0_i32 = arith.constant 0 : i32
    %c0_i32_0 = arith.constant 0 : i32
    %c0_i32_1 = arith.constant 0 : i32
    return %arg0, %c0_i32, %c0_i32_0 : i32, i32, i32
  }
}

</mosaic_0001>

<llo_original>
// kernel: tile.14
$region0: #{tile.14}
  %s0 = inlined_call_operand.vmem [shape: f32[24,4,32], index: 0, kind: input, shape index: {}]
  %s1 = inlined_call_operand.vmem [shape: f32[24,128], index: 1, kind: output, shape index: {}]
  $region1: #{tile.14} parent=0
    #allocation0 [shape = 'u8[98304]{0}', space=vmem, size = 0x18000, scoped, tag = 'scoped mem for input reshape']
    %s3 = sshllo.u32 0, 4
    %s4 = smul.addr 4, 23
    %s5 = scalar_lea.vmem %s0, %s4
    %v6 = vld [vmem:[%s5] sm:%s3]
    %s7 = scalar_lea.vmem [#allocation0], 184
    %8 = vst [vmem:[%s7] sm:%s3] %v6
    %s9 = smul.addr 4, 22
    %s10 = scalar_lea.vmem %s0, %s9
    %v11 = vld [vmem:[%s10] sm:%s3]
    %s12 = scalar_lea.vmem [#allocation0], 176
    %13 = vst [vmem:[%s12] sm:%s3] %v11
    %s14 = smul.addr 4, 21
    %s15 = scalar_lea.vmem %s0, %s14
    %v16 = vld [vmem:[%s15] sm:%s3]
    %s17 = scalar_lea.vmem [#allocation0], 168
    %18 = vst [vmem:[%s17] sm:%s3] %v16
    %s19 = smul.addr 4, 20
    %s20 = scalar_lea.vmem %s0, %s19
    %v21 = vld [vmem:[%s20] sm:%s3]
    %s22 = scalar_lea.vmem [#allocation0], 160
    %23 = vst [vmem:[%s22] sm:%s3] %v21
    %s24 = smul.addr 4, 19
    %s25 = scalar_lea.vmem %s0, %s24
    %v26 = vld [vmem:[%s25] sm:%s3]
    %s27 = scalar_lea.vmem [#allocation0], 152
    %28 = vst [vmem:[%s27] sm:%s3] %v26
    %s29 = smul.addr 4, 18
    %s30 = scalar_lea.vmem %s0, %s29
    %v31 = vld [vmem:[%s30] sm:%s3]
    %s32 = scalar_lea.vmem [#allocation0], 144
    %33 = vst [vmem:[%s32] sm:%s3] %v31
    %s34 = smul.addr 4, 17
    %s35 = scalar_lea.vmem %s0, %s34
    %v36 = vld [vmem:[%s35] sm:%s3]
    %s37 = scalar_lea.vmem [#allocation0], 136
    %38 = vst [vmem:[%s37] sm:%s3] %v36
    %s39 = smul.addr 4, 16
    %s40 = scalar_lea.vmem %s0, %s39
    %v41 = vld [vmem:[%s40] sm:%s3]
    %s42 = scalar_lea.vmem [#allocation0], 128
    %43 = vst [vmem:[%s42] sm:%s3] %v41
    %s44 = smul.addr 4, 15
    %s45 = scalar_lea.vmem %s0, %s44
    %v46 = vld [vmem:[%s45] sm:%s3]
    %s47 = scalar_lea.vmem [#allocation0], 120
    %48 = vst [vmem:[%s47] sm:%s3] %v46
    %s49 = smul.addr 4, 14
    %s50 = scalar_lea.vmem %s0, %s49
    %v51 = vld [vmem:[%s50] sm:%s3]
    %s52 = scalar_lea.vmem [#allocation0], 112
    %53 = vst [vmem:[%s52] sm:%s3] %v51
    %s54 = smul.addr 4, 13
    %s55 = scalar_lea.vmem %s0, %s54
    %v56 = vld [vmem:[%s55] sm:%s3]
    %s57 = scalar_lea.vmem [#allocation0], 104
    %58 = vst [vmem:[%s57] sm:%s3] %v56
    %s59 = smul.addr 4, 12
    %s60 = scalar_lea.vmem %s0, %s59
    %v61 = vld [vmem:[%s60] sm:%s3]
    %s62 = scalar_lea.vmem [#allocation0], 96
    %63 = vst [vmem:[%s62] sm:%s3] %v61
    %s64 = smul.addr 4, 11
    %s65 = scalar_lea.vmem %s0, %s64
    %v66 = vld [vmem:[%s65] sm:%s3]
    %s67 = scalar_lea.vmem [#allocation0], 88
    %68 = vst [vmem:[%s67] sm:%s3] %v66
    %s69 = smul.addr 4, 10
    %s70 = scalar_lea.vmem %s0, %s69
    %v71 = vld [vmem:[%s70] sm:%s3]
    %s72 = scalar_lea.vmem [#allocation0], 80
    %73 = vst [vmem:[%s72] sm:%s3] %v71
    %s74 = smul.addr 4, 9
    %s75 = scalar_lea.vmem %s0, %s74
    %v76 = vld [vmem:[%s75] sm:%s3]
    %s77 = scalar_lea.vmem [#allocation0], 72
    %78 = vst [vmem:[%s77] sm:%s3] %v76
    %s79 = smul.addr 4, 8
    %s80 = scalar_lea.vmem %s0, %s79
    %v81 = vld [vmem:[%s80] sm:%s3]
    %s82 = scalar_lea.vmem [#allocation0], 64
    %83 = vst [vmem:[%s82] sm:%s3] %v81
    %s84 = smul.addr 4, 7
    %s85 = scalar_lea.vmem %s0, %s84
    %v86 = vld [vmem:[%s85] sm:%s3]
    %s87 = scalar_lea.vmem [#allocation0], 56
    %88 = vst [vmem:[%s87] sm:%s3] %v86
    %s89 = smul.addr 4, 6
    %s90 = scalar_lea.vmem %s0, %s89
    %v91 = vld [vmem:[%s90] sm:%s3]
    %s92 = scalar_lea.vmem [#allocation0], 48
    %93 = vst [vmem:[%s92] sm:%s3] %v91
    %s94 = smul.addr 4, 5
    %s95 = scalar_lea.vmem %s0, %s94
    %v96 = vld [vmem:[%s95] sm:%s3]
    %s97 = scalar_lea.vmem [#allocation0], 40
    %98 = vst [vmem:[%s97] sm:%s3] %v96
    %s99 = smul.addr 4, 4
    %s100 = scalar_lea.vmem %s0, %s99
    %v101 = vld [vmem:[%s100] sm:%s3]
    %s102 = scalar_lea.vmem [#allocation0], 32
    %103 = vst [vmem:[%s102] sm:%s3] %v101
    %s104 = smul.addr 4, 3
    %s105 = scalar_lea.vmem %s0, %s104
    %v106 = vld [vmem:[%s105] sm:%s3]
    %s107 = scalar_lea.vmem [#allocation0], 24
    %108 = vst [vmem:[%s107] sm:%s3] %v106
    %s109 = smul.addr 4, 2
    %s110 = scalar_lea.vmem %s0, %s109
    %v111 = vld [vmem:[%s110] sm:%s3]
    %s112 = scalar_lea.vmem [#allocation0], 16
    %113 = vst [vmem:[%s112] sm:%s3] %v111
    %s114 = scalar_lea.vmem %s0, 4
    %v115 = vld [vmem:[%s114] sm:%s3]
    %s116 = scalar_lea.vmem [#allocation0], 8
    %117 = vst [vmem:[%s116] sm:%s3] %v115
    %v118 = vld [vmem:[%s0] sm:%s3]
    %119 = vst [vmem:[#allocation0] sm:%s3] %v118
    %v120 = vld [vmem:[#allocation0] ss:$8 sm:$0xf]
    %v121 = vld [vmem:[#allocation0] ss:$8 sm:$0xf0]
    %vm122 = vcmask 1047556
    %v123 = vsel %vm122, %v121, %v120
    %vm124 = vcmask 261120
    %125 = vst.msk [vmem:[%s1] sm:$0xff] %vm124, %v123
    %s126 = scalar_lea.vmem [#allocation0], 64
    %v127 = vld [vmem:[%s126] ss:$8 sm:$0xf]
    %s128 = scalar_lea.vmem [#allocation0], 64
    %v129 = vld [vmem:[%s128] ss:$8 sm:$0xf0]
    %vm130 = vcmask 1047556
    %v131 = vsel %vm130, %v129, %v127
    %vm132 = vcmask 261120
    %s133 = scalar_lea.vmem %s1, 8
    %134 = vst.msk [vmem:[%s133] sm:$0xff] %vm132, %v131
    %s135 = scalar_lea.vmem [#allocation0], 128
    %v136 = vld [vmem:[%s135] ss:$8 sm:$0xf]
    %s137 = scalar_lea.vmem [#allocation0], 128
    %v138 = vld [vmem:[%s137] ss:$8 sm:$0xf0]
    %vm139 = vcmask 1047556
    %v140 = vsel %vm139, %v138, %v136
    %vm141 = vcmask 261120
    %s142 = scalar_lea.vmem %s1, 16
    %143 = vst.msk [vmem:[%s142] sm:$0xff] %vm141, %v140
    %s144 = scalar_lea.vmem [#allocation0], 3
    %v145 = vld [vmem:[%s144] ss:$8 sm:$0xf]
    %s146 = scalar_lea.vmem [#allocation0], 3
    %v147 = vld [vmem:[%s146] ss:$8 sm:$0xf0]
    %vm148 = vcmask 1047556
    %v149 = vsel %vm148, %v147, %v145
    %150 = vrot.lane.b32.xlu0 %v149, 96
    %v151 = vpop.permute.xlu0 %150
    %vm152 = vcmask 1048320
    %153 = vst.msk [vmem:[%s1] sm:$0xff] %vm152, %v151
    %s154 = scalar_lea.vmem [#allocation0], 67
    %v155 = vld [vmem:[%s154] ss:$8 sm:$0xf]
    %s156 = scalar_lea.vmem [#allocation0], 67
    %v157 = vld [vmem:[%s156] ss:$8 sm:$0xf0]
    %vm158 = vcmask 1047556
    %v159 = vsel %vm158, %v157, %v155
    %160 = vrot.lane.b32.xlu0 %v159, 96
    %v161 = vpop.permute.xlu0 %160
    %vm162 = vcmask 1048320
    %s163 = scalar_lea.vmem %s1, 8
    %164 = vst.msk [vmem:[%s163] sm:$0xff] %vm162, %v161
    %s165 = scalar_lea.vmem [#allocation0], 131
    %v166 = vld [vmem:[%s165] ss:$8 sm:$0xf]
    %s167 = scalar_lea.vmem [#allocation0], 131
    %v168 = vld [vmem:[%s167] ss:$8 sm:$0xf0]
    %vm169 = vcmask 1047556
    %v170 = vsel %vm169, %v168, %v166
    %171 = vrot.lane.b32.xlu0 %v170, 96
    %v172 = vpop.permute.xlu0 %171
    %vm173 = vcmask 1048320
    %s174 = scalar_lea.vmem %s1, 16
    %175 = vst.msk [vmem:[%s174] sm:$0xff] %vm173, %v172
    %s176 = scalar_lea.vmem [#allocation0], 2
    %v177 = vld [vmem:[%s176] ss:$8 sm:$0xf]
    %s178 = scalar_lea.vmem [#allocation0], 2
    %v179 = vld [vmem:[%s178] ss:$8 sm:$0xf0]
    %vm180 = vcmask 1047556
    %v181 = vsel %vm180, %v179, %v177
    %182 = vrot.lane.b32.xlu0 %v181, 64
    %v183 = vpop.permute.xlu0 %182
    %vm184 = vcmask 785920
    %185 = vst.msk [vmem:[%s1] sm:$0xff] %vm184, %v183
    %s186 = scalar_lea.vmem [#allocation0], 66
    %v187 = vld [vmem:[%s186] ss:$8 sm:$0xf]
    %s188 = scalar_lea.vmem [#allocation0], 66
    %v189 = vld [vmem:[%s188] ss:$8 sm:$0xf0]
    %vm190 = vcmask 1047556
    %v191 = vsel %vm190, %v189, %v187
    %192 = vrot.lane.b32.xlu0 %v191, 64
    %v193 = vpop.permute.xlu0 %192
    %vm194 = vcmask 785920
    %s195 = scalar_lea.vmem %s1, 8
    %196 = vst.msk [vmem:[%s195] sm:$0xff] %vm194, %v193
    %s197 = scalar_lea.vmem [#allocation0], 130
    %v198 = vld [vmem:[%s197] ss:$8 sm:$0xf]
    %s199 = scalar_lea.vmem [#allocation0], 130
    %v200 = vld [vmem:[%s199] ss:$8 sm:$0xf0]
    %vm201 = vcmask 1047556
    %v202 = vsel %vm201, %v200, %v198
    %203 = vrot.lane.b32.xlu0 %v202, 64
    %v204 = vpop.permute.xlu0 %203
    %vm205 = vcmask 785920
    %s206 = scalar_lea.vmem %s1, 16
    %207 = vst.msk [vmem:[%s206] sm:$0xff] %vm205, %v204
    %s208 = scalar_lea.vmem [#allocation0], 1
    %v209 = vld [vmem:[%s208] ss:$8 sm:$0xf]
    %s210 = scalar_lea.vmem [#allocation0], 1
    %v211 = vld [vmem:[%s210] ss:$8 sm:$0xf0]
    %vm212 = vcmask 1047556
    %v213 = vsel %vm212, %v211, %v209
    %214 = vrot.lane.b32.xlu0 %v213, 32
    %v215 = vpop.permute.xlu0 %214
    %vm216 = vcmask 523520
    %217 = vst.msk [vmem:[%s1] sm:$0xff] %vm216, %v215
    %s218 = scalar_lea.vmem [#allocation0], 65
    %v219 = vld [vmem:[%s218] ss:$8 sm:$0xf]
    %s220 = scalar_lea.vmem [#allocation0], 65
    %v221 = vld [vmem:[%s220] ss:$8 sm:$0xf0]
    %vm222 = vcmask 1047556
    %v223 = vsel %vm222, %v221, %v219
    %224 = vrot.lane.b32.xlu0 %v223, 32
    %v225 = vpop.permute.xlu0 %224
    %vm226 = vcmask 523520
    %s227 = scalar_lea.vmem %s1, 8
    %228 = vst.msk [vmem:[%s227] sm:$0xff] %vm226, %v225
    %s229 = scalar_lea.vmem [#allocation0], 129
    %v230 = vld [vmem:[%s229] ss:$8 sm:$0xf]
    %s231 = scalar_lea.vmem [#allocation0], 129
    %v232 = vld [vmem:[%s231] ss:$8 sm:$0xf0]
    %vm233 = vcmask 1047556
    %v234 = vsel %vm233, %v232, %v230
    %235 = vrot.lane.b32.xlu0 %v234, 32
    %v236 = vpop.permute.xlu0 %235
    %vm237 = vcmask 523520
    %s238 = scalar_lea.vmem %s1, 16
    %239 = vst.msk [vmem:[%s238] sm:$0xff] %vm237, %v236

// kernel: t3_forward.1
$region0: #{t3_forward.1}
  #allocation0 [shape = 'u32[]', space=smem, size = 0x4, offset = 0x4, fixed_abs, tag = 'smem constant byte address 0x4 - core index']
  #allocation1 [shape = 'u32[144,128]{1,0:T(1,128)}', space=vmem, size = 0x12000, scoped, tag = 'internal scratch']
  %s0 = inlined_call_operand.vmem [shape: f32[2,24,128], index: 0, kind: input, shape index: {}]
  %s1 = inlined_call_operand.vmem [shape: f32[24,128], index: 1, kind: input, shape index: {}]
  %s2 = inlined_call_operand.vmem [shape: f32[24,128], index: 2, kind: input, shape index: {}]
  %s3 = inlined_call_operand.vmem [shape: f32[2,24,1], index: 3, kind: input, shape index: {}]
  %s4 = inlined_call_operand.vmem [shape: f32[2,1,128], index: 4, kind: input, shape index: {}]
  %s5 = inlined_call_operand.vmem [shape: bf16[2,128,640], index: 5, kind: input, shape index: {}]
  %s6 = inlined_call_operand.hbm [shape: bf16[2,4,32,128], index: 6, kind: input, shape index: {}]
  %s7 = inlined_call_operand.vmem [shape: f32[2,1,128], index: 7, kind: input, shape index: {}]
  %s8 = inlined_call_operand.vmem [shape: bf16[2,128,512], index: 8, kind: input, shape index: {}]
  %s9 = inlined_call_operand.hbm [shape: bf16[2,256,128], index: 9, kind: input, shape index: {}]
  %s10 = inlined_call_operand.hbm [shape: f32[1,128], index: 10, kind: input, shape index: {}]
  %s11 = inlined_call_operand.hbm [shape: bf16[128,256], index: 11, kind: input, shape index: {}]
  %s12 = inlined_call_operand.vmem [shape: f32[2,24,128], index: 12, kind: output, shape index: {0}]
  %s13 = inlined_call_operand.vmem [shape: f32[2,24,256], index: 13, kind: output, shape index: {1}]
  %14 = xla_tuple %s12, %s13
  %s15 = sld [smem:[#allocation0]]
  $region105: #{t3_forward.1} parent=0
    _
  %s17 = ssub.s32 1, %s15
  %s18 = scalar_select 0, %s17, %s15
  $region1: #{t3_forward.1} parent=0
    #allocation2 [shape = 'u8[65536]{0}', space=vmem, size = 0x10000, scoped, tag = 'input window, operand 6, single buffered']
    #allocation3 [shape = 's32[2]{0}', space=sflag, size = 0x8, scoped, tag = 'scoped memory for t3_forward.1']
    #allocation4 [shape = 'u8[131072]{0}', space=vmem, size = 0x20000, scoped, tag = 'input window, operand 9, single buffered']
    #allocation5 [shape = 's32[1]{0}', space=sflag, size = 0x4, scoped, tag = 'scoped memory for t3_forward.1']
    #allocation6 [shape = 'u8[512]{0}', space=vmem, size = 0x400, scoped, tag = 'input window, operand 10, single buffered']
    #allocation7 [shape = 'u8[65536]{0}', space=vmem, size = 0x10000, scoped, tag = 'input window, operand 11, single buffered']
    #allocation8 [shape = 's32[1]{0}', space=sflag, size = 0x4, scoped, tag = 'scoped memory for t3_forward.1']
    %19 = vsyncpa [#allocation3], 0
    %20 = vsyncpa [#allocation5], 0
    %21 = vsyncpa [#allocation8], 0
    loop: start=0, step=1, limit=4
    $region2: #{t3_forward.1} parent=1 // loop_pre_header
      _
    $region3: #{t3_forward.1} parent=1 // loop_header
      %s23 = sphi 0, %s27
      %p24 = scmp.ge.s32.totalorder %s23, 4
      %s33 = sphi 0, %s35
      %s36 = sphi 0, %s33
      %s37 = sphi 0, %s36
      %s53 = sphi 0, %s37
      %s57 = sphi 0, %s57
      %s59 = sphi 0, %s57
      %s60 = sphi 0, %s59
      %s74 = sphi 0, %s60
      %s78 = sphi 0, %s78
      %s80 = sphi 0, %s78
      %s81 = sphi 0, %s80
      %s95 = sphi 0, %s81
      %s101 = sphi 0, %s103
      %s104 = sphi 0, %s101
      %s105 = sphi 0, %s104
      %s121 = sphi 0, %s105
      %s125 = sphi 0, %s125
      %s127 = sphi 0, %s125
      %s128 = sphi 0, %s127
      %s142 = sphi 0, %s128
      %s146 = sphi 0, %s146
      %s148 = sphi 0, %s146
      %s149 = sphi 0, %s148
      %s163 = sphi 0, %s149
      %s167 = sphi 0, %s167
      %s169 = sphi 0, %s167
      %s170 = sphi 0, %s169
      %s184 = sphi 0, %s170
      %s188 = sphi 0, %s188
      %s190 = sphi 0, %s188
      %s191 = sphi 0, %s190
      %s205 = sphi 0, %s191
      %s209 = sphi 0, %s209
      %s211 = sphi 0, %s209
      %s212 = sphi 0, %s211
      %s226 = sphi 0, %s212
      %s230 = sphi 0, %s230
      %s232 = sphi 0, %s230
      %s233 = sphi 0, %s232
      %s247 = sphi 0, %s233
      %s251 = sphi 0, %s251
      %s253 = sphi 0, %s251
      %s254 = sphi 0, %s253
      %s268 = sphi 0, %s254
      %s272 = sphi 0, %s272
      %s274 = sphi 0, %s272
      %s275 = sphi 0, %s274
      %s289 = sphi 0, %s275
      %s295 = sphi 0, %s297
      %s298 = sphi 0, %s295
      %s299 = sphi 0, %s298
      %s315 = sphi 0, %s299
      %s321 = sphi 0, %s323
      %s324 = sphi 0, %s321
      %s325 = sphi 0, %s324
      %s341 = sphi 0, %s325
    $region4: #{t3_forward.1} parent=1 // loop_header_branch
      %26 = sbr.rel (%p24) target = $region8
    $region5: #{t3_forward.1} parent=1 // loop_body
      %s28 = ssub.s32 %s23, 1
      %s29 = ssub.s32 %s23, 2
      %s30 = sadd.s32 %s23, 1
      %s31 = ssub.s32 %s23, %s30
      %p32 = scmp.eq.s32.totalorder %s31, 0
      %s34 = sadd.s32 %s33, 1
      %s35 = scalar_select %p32, %s33, %s34
      %p38 = pneg %p32
      %p39 = scmp.eq.s32.totalorder %s23, 1
      %p40 = por %p38, %p39
      %p41 = scmp.ne.s32.totalorder %s33, %s36
      %p42 = scmp.eq.s32.totalorder %s23, 0
      %p43 = por %p41, %p42
      %p44 = scmp.ne.s32.totalorder %s33, %s36
      %p45 = scmp.eq.s32.totalorder %s28, 1
      %p46 = por %p44, %p45
      %p47 = scmp.ne.s32.totalorder %s36, %s37
      %p48 = scmp.eq.s32.totalorder %s28, 0
      %p49 = por %p47, %p48
      %p50 = scmp.ne.s32.totalorder %s36, %s37
      %p51 = scmp.eq.s32.totalorder %s29, 1
      %p52 = por %p50, %p51
      %p54 = scmp.ne.s32.totalorder %s37, %s53
      %p55 = scmp.eq.s32.totalorder %s29, 0
      %p56 = por %p54, %p55
      %s58 = sadd.s32 %s57, 1
      %p61 = scmp.eq.s32.totalorder %s23, 1
      %p62 = scmp.ne.s32.totalorder %s57, %s59
      %p63 = scmp.eq.s32.totalorder %s23, 0
      %p64 = por %p62, %p63
      %p65 = scmp.ne.s32.totalorder %s57, %s59
      %p66 = scmp.eq.s32.totalorder %s28, 1
      %p67 = por %p65, %p66
      %p68 = scmp.ne.s32.totalorder %s59, %s60
      %p69 = scmp.eq.s32.totalorder %s28, 0
      %p70 = por %p68, %p69
      %p71 = scmp.ne.s32.totalorder %s59, %s60
      %p72 = scmp.eq.s32.totalorder %s29, 1
      %p73 = por %p71, %p72
      %p75 = scmp.ne.s32.totalorder %s60, %s74
      %p76 = scmp.eq.s32.totalorder %s29, 0
      %p77 = por %p75, %p76
      %s79 = sadd.s32 %s78, 1
      %p82 = scmp.eq.s32.totalorder %s23, 1
      %p83 = scmp.ne.s32.totalorder %s78, %s80
      %p84 = scmp.eq.s32.totalorder %s23, 0
      %p85 = por %p83, %p84
      %p86 = scmp.ne.s32.totalorder %s78, %s80
      %p87 = scmp.eq.s32.totalorder %s28, 1
      %p88 = por %p86, %p87
      %p89 = scmp.ne.s32.totalorder %s80, %s81
      %p90 = scmp.eq.s32.totalorder %s28, 0
      %p91 = por %p89, %p90
      %p92 = scmp.ne.s32.totalorder %s80, %s81
      %p93 = scmp.eq.s32.totalorder %s29, 1
      %p94 = por %p92, %p93
      %p96 = scmp.ne.s32.totalorder %s81, %s95
      %p97 = scmp.eq.s32.totalorder %s29, 0
      %p98 = por %p96, %p97
      %s99 = ssub.s32 %s23, %s30
      %p100 = scmp.eq.s32.totalorder %s99, 0
      %s102 = sadd.s32 %s101, 1
      %s103 = scalar_select %p100, %s101, %s102
      %p106 = pneg %p100
      %p107 = scmp.eq.s32.totalorder %s23, 1
      %p108 = por %p106, %p107
      %p109 = scmp.ne.s32.totalorder %s101, %s104
      %p110 = scmp.eq.s32.totalorder %s23, 0
      %p111 = por %p109, %p110
      %p112 = scmp.ne.s32.totalorder %s101, %s104
      %p113 = scmp.eq.s32.totalorder %s28, 1
      %p114 = por %p112, %p113
      %p115 = scmp.ne.s32.totalorder %s104, %s105
      %p116 = scmp.eq.s32.totalorder %s28, 0
      %p117 = por %p115, %p116
      %p118 = scmp.ne.s32.totalorder %s104, %s105
      %p119 = scmp.eq.s32.totalorder %s29, 1
      %p120 = por %p118, %p119
      %p122 = scmp.ne.s32.totalorder %s105, %s121
      %p123 = scmp.eq.s32.totalorder %s29, 0
      %p124 = por %p122, %p123
      %s126 = sadd.s32 %s125, 1
      %p129 = scmp.eq.s32.totalorder %s23, 1
      %p130 = scmp.ne.s32.totalorder %s125, %s127
      %p131 = scmp.eq.s32.totalorder %s23, 0
      %p132 = por %p130, %p131
      %p133 = scmp.ne.s32.totalorder %s125, %s127
      %p134 = scmp.eq.s32.totalorder %s28, 1
      %p135 = por %p133, %p134
      %p136 = scmp.ne.s32.totalorder %s127, %s128
      %p137 = scmp.eq.s32.totalorder %s28, 0
      %p138 = por %p136, %p137
      %p139 = scmp.ne.s32.totalorder %s127, %s128
      %p140 = scmp.eq.s32.totalorder %s29, 1
      %p141 = por %p139, %p140
      %p143 = scmp.ne.s32.totalorder %s128, %s142
      %p144 = scmp.eq.s32.totalorder %s29, 0
      %p145 = por %p143, %p144
      %s147 = sadd.s32 %s146, 1
      %p150 = scmp.eq.s32.totalorder %s23, 1
      %p151 = scmp.ne.s32.totalorder %s146, %s148
      %p152 = scmp.eq.s32.totalorder %s23, 0
      %p153 = por %p151, %p152
      %p154 = scmp.ne.s32.totalorder %s146, %s148
      %p155 = scmp.eq.s32.totalorder %s28, 1
      %p156 = por %p154, %p155
      %p157 = scmp.ne.s32.totalorder %s148, %s149
      %p158 = scmp.eq.s32.totalorder %s28, 0
      %p159 = por %p157, %p158
      %p160 = scmp.ne.s32.totalorder %s148, %s149
      %p161 = scmp.eq.s32.totalorder %s29, 1
      %p162 = por %p160, %p161
      %p164 = scmp.ne.s32.totalorder %s149, %s163
      %p165 = scmp.eq.s32.totalorder %s29, 0
      %p166 = por %p164, %p165
      %s168 = sadd.s32 %s167, 1
      %p171 = scmp.eq.s32.totalorder %s23, 1
      %p172 = scmp.ne.s32.totalorder %s167, %s169
      %p173 = scmp.eq.s32.totalorder %s23, 0
      %p174 = por %p172, %p173
      %p175 = scmp.ne.s32.totalorder %s167, %s169
      %p176 = scmp.eq.s32.totalorder %s28, 1
      %p177 = por %p175, %p176
      %p178 = scmp.ne.s32.totalorder %s169, %s170
      %p179 = scmp.eq.s32.totalorder %s28, 0
      %p180 = por %p178, %p179
      %p181 = scmp.ne.s32.totalorder %s169, %s170
      %p182 = scmp.eq.s32.totalorder %s29, 1
      %p183 = por %p181, %p182
      %p185 = scmp.ne.s32.totalorder %s170, %s184
      %p186 = scmp.eq.s32.totalorder %s29, 0
      %p187 = por %p185, %p186
      %s189 = sadd.s32 %s188, 1
      %p192 = scmp.eq.s32.totalorder %s23, 1
      %p193 = scmp.ne.s32.totalorder %s188, %s190
      %p194 = scmp.eq.s32.totalorder %s23, 0
      %p195 = por %p193, %p194
      %p196 = scmp.ne.s32.totalorder %s188, %s190
      %p197 = scmp.eq.s32.totalorder %s28, 1
      %p198 = por %p196, %p197
      %p199 = scmp.ne.s32.totalorder %s190, %s191
      %p200 = scmp.eq.s32.totalorder %s28, 0
      %p201 = por %p199, %p200
      %p202 = scmp.ne.s32.totalorder %s190, %s191
      %p203 = scmp.eq.s32.totalorder %s29, 1
      %p204 = por %p202, %p203
      %p206 = scmp.ne.s32.totalorder %s191, %s205
      %p207 = scmp.eq.s32.totalorder %s29, 0
      %p208 = por %p206, %p207
      %s210 = sadd.s32 %s209, 1
      %p213 = scmp.eq.s32.totalorder %s23, 1
      %p214 = scmp.ne.s32.totalorder %s209, %s211
      %p215 = scmp.eq.s32.totalorder %s23, 0
      %p216 = por %p214, %p215
      %p217 = scmp.ne.s32.totalorder %s209, %s211
      %p218 = scmp.eq.s32.totalorder %s28, 1
      %p219 = por %p217, %p218
      %p220 = scmp.ne.s32.totalorder %s211, %s212
      %p221 = scmp.eq.s32.totalorder %s28, 0
      %p222 = por %p220, %p221
      %p223 = scmp.ne.s32.totalorder %s211, %s212
      %p224 = scmp.eq.s32.totalorder %s29, 1
      %p225 = por %p223, %p224
      %p227 = scmp.ne.s32.totalorder %s212, %s226
      %p228 = scmp.eq.s32.totalorder %s29, 0
      %p229 = por %p227, %p228
      %s231 = sadd.s32 %s230, 1
      %p234 = scmp.eq.s32.totalorder %s23, 1
      %p235 = scmp.ne.s32.totalorder %s230, %s232
      %p236 = scmp.eq.s32.totalorder %s23, 0
      %p237 = por %p235, %p236
      %p238 = scmp.ne.s32.totalorder %s230, %s232
      %p239 = scmp.eq.s32.totalorder %s28, 1
      %p240 = por %p238, %p239
      %p241 = scmp.ne.s32.totalorder %s232, %s233
      %p242 = scmp.eq.s32.totalorder %s28, 0
      %p243 = por %p241, %p242
      %p244 = scmp.ne.s32.totalorder %s232, %s233
      %p245 = scmp.eq.s32.totalorder %s29, 1
      %p246 = por %p244, %p245
      %p248 = scmp.ne.s32.totalorder %s233, %s247
      %p249 = scmp.eq.s32.totalorder %s29, 0
      %p250 = por %p248, %p249
      %s252 = sadd.s32 %s251, 1
      %p255 = scmp.eq.s32.totalorder %s23, 1
      %p256 = scmp.ne.s32.totalorder %s251, %s253
      %p257 = scmp.eq.s32.totalorder %s23, 0
      %p258 = por %p256, %p257
      %p259 = scmp.ne.s32.totalorder %s251, %s253
      %p260 = scmp.eq.s32.totalorder %s28, 1
      %p261 = por %p259, %p260
      %p262 = scmp.ne.s32.totalorder %s253, %s254
      %p263 = scmp.eq.s32.totalorder %s28, 0
      %p264 = por %p262, %p263
      %p265 = scmp.ne.s32.totalorder %s253, %s254
      %p266 = scmp.eq.s32.totalorder %s29, 1
      %p267 = por %p265, %p266
      %p269 = scmp.ne.s32.totalorder %s254, %s268
      %p270 = scmp.eq.s32.totalorder %s29, 0
      %p271 = por %p269, %p270
      %s273 = sadd.s32 %s272, 1
      %p276 = scmp.eq.s32.totalorder %s23, 1
      %p277 = scmp.ne.s32.totalorder %s272, %s274
      %p278 = scmp.eq.s32.totalorder %s23, 0
      %p279 = por %p277, %p278
      %p280 = scmp.ne.s32.totalorder %s272, %s274
      %p281 = scmp.eq.s32.totalorder %s28, 1
      %p282 = por %p280, %p281
      %p283 = scmp.ne.s32.totalorder %s274, %s275
      %p284 = scmp.eq.s32.totalorder %s28, 0
      %p285 = por %p283, %p284
      %p286 = scmp.ne.s32.totalorder %s274, %s275
      %p287 = scmp.eq.s32.totalorder %s29, 1
      %p288 = por %p286, %p287
      %p290 = scmp.ne.s32.totalorder %s275, %s289
      %p291 = scmp.eq.s32.totalorder %s29, 0
      %p292 = por %p290, %p291
      %s293 = ssub.s32 %s23, %s30
      %p294 = scmp.eq.s32.totalorder %s293, 0
      %s296 = sadd.s32 %s295, 1
      %s297 = scalar_select %p294, %s295, %s296
      %p300 = pneg %p294
      %p301 = scmp.eq.s32.totalorder %s23, 1
      %p302 = por %p300, %p301
      %p303 = scmp.ne.s32.totalorder %s295, %s298
      %p304 = scmp.eq.s32.totalorder %s23, 0
      %p305 = por %p303, %p304
      %p306 = scmp.ne.s32.totalorder %s295, %s298
      %p307 = scmp.eq.s32.totalorder %s28, 1
      %p308 = por %p306, %p307
      %p309 = scmp.ne.s32.totalorder %s298, %s299
      %p310 = scmp.eq.s32.totalorder %s28, 0
      %p311 = por %p309, %p310
      %p312 = scmp.ne.s32.totalorder %s298, %s299
      %p313 = scmp.eq.s32.totalorder %s29, 1
      %p314 = por %p312, %p313
      %p316 = scmp.ne.s32.totalorder %s299, %s315
      %p317 = scmp.eq.s32.totalorder %s29, 0
      %p318 = por %p316, %p317
      %s319 = ssub.s32 %s23, %s30
      %p320 = scmp.eq.s32.totalorder %s319, 0
      %s322 = sadd.s32 %s321, 1
      %s323 = scalar_select %p320, %s321, %s322
      %p326 = pneg %p320
      %p327 = scmp.eq.s32.totalorder %s23, 1
      %p328 = por %p326, %p327
      %p329 = scmp.ne.s32.totalorder %s321, %s324
      %p330 = scmp.eq.s32.totalorder %s23, 0
      %p331 = por %p329, %p330
      %p332 = scmp.ne.s32.totalorder %s321, %s324
      %p333 = scmp.eq.s32.totalorder %s28, 1
      %p334 = por %p332, %p333
      %p335 = scmp.ne.s32.totalorder %s324, %s325
      %p336 = scmp.eq.s32.totalorder %s28, 0
      %p337 = por %p335, %p336
      %p338 = scmp.ne.s32.totalorder %s324, %s325
      %p339 = scmp.eq.s32.totalorder %s29, 1
      %p340 = por %p338, %p339
      %p342 = scmp.ne.s32.totalorder %s325, %s341
      %p343 = scmp.eq.s32.totalorder %s29, 0
      %p344 = por %p342, %p343
      %p345 = scmp.le.s32.totalorder 1, %s23
      %p346 = scmp.lt.s32.totalorder %s23, 3
      %p347 = pnand %p345, %p346
      %p348 = pneg %p347
      // Predicated region
      $region9: #{t3_forward.1} parent=5 // pred_check
        _
      $region10: #{t3_forward.1} parent=5 // pred_check_branch
        %350 = sbr.rel (%p347) target = $region12
      $region11: #{t3_forward.1} parent=5 // pred_region
        %s351 = ssub.s32 %s23, 1
        // Predicated region
        $region13: #{t3_forward.1} parent=11 // pred_check
          %p352 = pneg %p70
        $region14: #{t3_forward.1} parent=11 // pred_check_branch
          %354 = sbr.rel (%p352) target = $region16
        $region15: #{t3_forward.1} parent=11 // pred_region
          _
        $region16: #{t3_forward.1} parent=11 // pred_fallthru
          _
        // Predicated region
        $region17: #{t3_forward.1} parent=11 // pred_check
          %p355 = pneg %p91
        $region18: #{t3_forward.1} parent=11 // pred_check_branch
          %357 = sbr.rel (%p355) target = $region20
        $region19: #{t3_forward.1} parent=11 // pred_region
          _
        $region20: #{t3_forward.1} parent=11 // pred_fallthru
          _
        // Predicated region
        $region21: #{t3_forward.1} parent=11 // pred_check
          %p358 = pneg %p138
        $region22: #{t3_forward.1} parent=11 // pred_check_branch
          %360 = sbr.rel (%p358) target = $region24
        $region23: #{t3_forward.1} parent=11 // pred_region
          _
        $region24: #{t3_forward.1} parent=11 // pred_fallthru
          _
        // Predicated region
        $region25: #{t3_forward.1} parent=11 // pred_check
          %p361 = pneg %p159
        $region26: #{t3_forward.1} parent=11 // pred_check_branch
          %363 = sbr.rel (%p361) target = $region28
        $region27: #{t3_forward.1} parent=11 // pred_region
          _
        $region28: #{t3_forward.1} parent=11 // pred_fallthru
          _
        // Predicated region
        $region29: #{t3_forward.1} parent=11 // pred_check
          %p364 = pneg %p180
        $region30: #{t3_forward.1} parent=11 // pred_check_branch
          %366 = sbr.rel (%p364) target = $region32
        $region31: #{t3_forward.1} parent=11 // pred_region
          %s368 = ssub.s32 2048, 2048
          %369 = vsyncadd [#allocation3], %s368
          %s370 = sshll.u32 [#allocation2], 4
          %s371 = int_to_ptr.vmem [resolvable:$true] %s370
          %376 = dma.hbm_to_vmem [thread:$0]  %s6, 2048, %s371, [#allocation3], 64, 64, 4
        $region32: #{t3_forward.1} parent=11 // pred_fallthru
          _
        // Predicated region
        $region33: #{t3_forward.1} parent=11 // pred_check
          %p377 = pneg %p201
        $region34: #{t3_forward.1} parent=11 // pred_check_branch
          %379 = sbr.rel (%p377) target = $region36
        $region35: #{t3_forward.1} parent=11 // pred_region
          _
        $region36: #{t3_forward.1} parent=11 // pred_fallthru
          _
        // Predicated region
        $region37: #{t3_forward.1} parent=11 // pred_check
          %p380 = pneg %p222
        $region38: #{t3_forward.1} parent=11 // pred_check_branch
          %382 = sbr.rel (%p380) target = $region40
        $region39: #{t3_forward.1} parent=11 // pred_region
          _
        $region40: #{t3_forward.1} parent=11 // pred_fallthru
          _
        // Predicated region
        $region41: #{t3_forward.1} parent=11 // pred_check
          %p383 = pneg %p243
        $region42: #{t3_forward.1} parent=11 // pred_check_branch
          %385 = sbr.rel (%p383) target = $region44
        $region43: #{t3_forward.1} parent=11 // pred_region
          %s387 = ssub.s32 4096, 4096
          %388 = vsyncadd [#allocation5], %s387
          %s389 = sshll.u32 [#allocation4], 4
          %s390 = int_to_ptr.vmem [resolvable:$true] %s389
          %395 = dma.hbm_to_vmem [thread:$0]  %s9, 4096, %s390, [#allocation5], 64, 64, 4
        $region44: #{t3_forward.1} parent=11 // pred_fallthru
          _
        // Predicated region
        $region45: #{t3_forward.1} parent=11 // pred_check
          %p396 = pneg %p264
        $region46: #{t3_forward.1} parent=11 // pred_check_branch
          %398 = sbr.rel (%p396) target = $region48
        $region47: #{t3_forward.1} parent=11 // pred_region
          %s400 = ssub.s32 16, 16
          %401 = vsyncadd [#allocation5], %s400
          %s403 = sshll.u32 [#allocation6], 4
          %s404 = int_to_ptr.vmem [resolvable:$true] %s403
          %406 = dma.hbm_to_vmem [thread:$0]  %s10, 16, %s404, [#allocation5]
        $region48: #{t3_forward.1} parent=11 // pred_fallthru
          _
        // Predicated region
        $region49: #{t3_forward.1} parent=11 // pred_check
          %p407 = pneg %p285
        $region50: #{t3_forward.1} parent=11 // pred_check_branch
          %409 = sbr.rel (%p407) target = $region52
        $region51: #{t3_forward.1} parent=11 // pred_region
          %s411 = ssub.s32 2048, 2048
          %412 = vsyncadd [#allocation8], %s411
          %s413 = sshll.u32 [#allocation7], 4
          %s414 = int_to_ptr.vmem [resolvable:$true] %s413
          %419 = dma.hbm_to_vmem [thread:$0]  %s11, 2048, %s414, [#allocation8], 128, 128, 8
        $region52: #{t3_forward.1} parent=11 // pred_fallthru
          _
      $region12: #{t3_forward.1} parent=5 // pred_fallthru
        _
      %p420 = scmp.lt.s32.totalorder %s23, 2
      // Predicated region
      $region53: #{t3_forward.1} parent=5 // pred_check
        %p421 = pneg %p420
      $region54: #{t3_forward.1} parent=5 // pred_check_branch
        %423 = sbr.rel (%p421) target = $region56
      $region55: #{t3_forward.1} parent=5 // pred_region
        // Predicated region
        $region57: #{t3_forward.1} parent=55 // pred_check
          %p424 = pneg %p43
        $region58: #{t3_forward.1} parent=55 // pred_check_branch
          %426 = sbr.rel (%p424) target = $region60
        $region59: #{t3_forward.1} parent=55 // pred_region
          %p427 = scmp.lt.s32.totalorder %s23, 1
          %s428 = scalar_select %p427, %s23, 1
          %s429 = smul.addr %s428, 3
          %s430 = smul.addr %s429, 8
          %s431 = scalar_lea.vmem %s0, %s430
        $region60: #{t3_forward.1} parent=55 // pred_fallthru
          _
        // Predicated region
        $region61: #{t3_forward.1} parent=55 // pred_check
          %p432 = pneg %p111
        $region62: #{t3_forward.1} parent=55 // pred_check_branch
          %434 = sbr.rel (%p432) target = $region64
        $region63: #{t3_forward.1} parent=55 // pred_region
          %p435 = scmp.lt.s32.totalorder %s23, 1
          %s436 = scalar_select %p435, %s23, 1
          %s437 = smul.addr %s436, 3
          %s438 = smul.addr %s437, 8
          %s439 = scalar_lea.vmem %s3, %s438
        $region64: #{t3_forward.1} parent=55 // pred_fallthru
          _
      $region56: #{t3_forward.1} parent=5 // pred_fallthru
        _
      %p440 = scmp.le.s32.totalorder 1, %s23
      %p441 = scmp.lt.s32.totalorder %s23, 3
      %p442 = pnand %p440, %p441
      %p443 = pneg %p442
      // Predicated region
      $region65: #{t3_forward.1} parent=5 // pred_check
        _
      $region66: #{t3_forward.1} parent=5 // pred_check_branch
        %445 = sbr.rel (%p442) target = $region68
      $region67: #{t3_forward.1} parent=5 // pred_region
        %s446 = ssub.s32 %s23, 1
        // Predicated region
        $region69: #{t3_forward.1} parent=67 // pred_check
          %p447 = pneg %p180
        $region70: #{t3_forward.1} parent=67 // pred_check_branch
          %449 = sbr.rel (%p447) target = $region72
        $region71: #{t3_forward.1} parent=67 // pred_region
          %450 = dma.done [#allocation3], 2048
        $region72: #{t3_forward.1} parent=67 // pred_fallthru
          _
        // Predicated region
        $region73: #{t3_forward.1} parent=67 // pred_check
          %p451 = pneg %p243
        $region74: #{t3_forward.1} parent=67 // pred_check_branch
          %453 = sbr.rel (%p451) target = $region76
        $region75: #{t3_forward.1} parent=67 // pred_region
          %454 = dma.done [#allocation5], 4096
        $region76: #{t3_forward.1} parent=67 // pred_fallthru
          _
        // Predicated region
        $region77: #{t3_forward.1} parent=67 // pred_check
          %p455 = pneg %p264
        $region78: #{t3_forward.1} parent=67 // pred_check_branch
          %457 = sbr.rel (%p455) target = $region80
        $region79: #{t3_forward.1} parent=67 // pred_region
          %458 = dma.done [#allocation5], 16
        $region80: #{t3_forward.1} parent=67 // pred_fallthru
          _
        // Predicated region
        $region81: #{t3_forward.1} parent=67 // pred_check
          %p459 = pneg %p285
        $region82: #{t3_forward.1} parent=67 // pred_check_branch
          %461 = sbr.rel (%p459) target = $region84
        $region83: #{t3_forward.1} parent=67 // pred_region
          %462 = dma.done [#allocation8], 2048
        $region84: #{t3_forward.1} parent=67 // pred_fallthru
          _
        %p463 = scmp.lt.s32.totalorder %s28, 1
        %s464 = scalar_select %p463, %s28, 1
        %s465 = smul.addr %s464, 3
        %s466 = smul.addr %s465, 8
        %s467 = scalar_lea.vmem %s0, %s466
        %p468 = pneg %p49
        %p469 = pneg %p46
        %p470 = pneg %p70
        %p471 = pneg %p67
        %p472 = pneg %p91
        %p473 = pneg %p88
        %p474 = scmp.lt.s32.totalorder %s28, 1
        %s475 = scalar_select %p474, %s28, 1
        %s476 = smul.addr %s475, 3
        %s477 = smul.addr %s476, 8
        %s478 = scalar_lea.vmem %s3, %s477
        %p479 = pneg %p117
        %p480 = pneg %p114
        %p481 = pneg %p138
        %p482 = pneg %p135
        %p483 = pneg %p159
        %p484 = pneg %p156
        %p485 = pneg %p180
        %p486 = pneg %p177
        %p487 = pneg %p201
        %p488 = pneg %p198
        %p489 = pneg %p222
        %p490 = pneg %p219
        %p491 = pneg %p243
        %p492 = pneg %p240
        %p493 = pneg %p264
        %p494 = pneg %p261
        %p495 = pneg %p285
        %p496 = pneg %p282
        %p497 = pneg %p311
        %p498 = pneg %p308
        %p499 = scmp.lt.s32.totalorder %s28, 1
        %s500 = scalar_select %p499, %s28, 1
        %s501 = smul.addr %s500, 3
        %s502 = smul.addr %s501, 8
        %s503 = scalar_lea.vmem %s12, %s502
        %p504 = pneg %p337
        %p505 = pneg %p334
        %p506 = scmp.lt.s32.totalorder %s28, 1
        %s507 = scalar_select %p506, %s28, 1
        %s508 = smul.addr %s507, 6
        %s509 = smul.addr %s508, 8
        %s510 = scalar_lea.vmem %s13, %s509
        %p511 = scmp.lt.s32.totalorder %s28, 1
        %s512 = scalar_select %p511, %s28, 1
        %s513 = smul.addr %s512, 3
        %s514 = smul.addr %s513, 8
        %s515 = scalar_lea.vmem %s0, %s514
        %p516 = scmp.lt.s32.totalorder %s28, 1
        %s517 = scalar_select %p516, %s28, 1
        %s518 = smul.addr %s517, 3
        %s519 = smul.addr %s518, 8
        %s520 = scalar_lea.vmem %s3, %s519
        %p521 = scmp.lt.s32.totalorder %s28, 1
        %s522 = scalar_select %p521, %s28, 1
        %s523 = smul.addr %s522, 3
        %s524 = smul.addr %s523, 8
        %s525 = scalar_lea.vmem %s12, %s524
        %p526 = scmp.lt.s32.totalorder %s28, 1
        %s527 = scalar_select %p526, %s28, 1
        %s528 = smul.addr %s527, 6
        %s529 = smul.addr %s528, 8
        %s530 = scalar_lea.vmem %s13, %s529
        %v532 = vld [vmem:[%s515] sm:$0xff]
        %v533 = vld [vmem:[%s515 + $0x8] sm:$0xff]
        %v534 = vld [vmem:[%s515 + $0x10] sm:$0xff]
        %v535 = vld [vmem:[%s1] sm:$0xff]
        %v536 = vld [vmem:[%s1 + $0x8] sm:$0xff]
        %v537 = vld [vmem:[%s1 + $0x10] sm:$0xff]
        %v538 = vld [vmem:[%s2] sm:$0xff]
        %v539 = vld [vmem:[%s2 + $0x8] sm:$0xff]
        %v540 = vld [vmem:[%s2 + $0x10] sm:$0xff]
        %v541 = vlaneseq
        %v542 = vshrl.u32 %v541, 7
        %v543 = vadd.s32 %v542, 8
        %v544 = vadd.s32 %v542, 16
        %v545 = vlaneseq
        %v546 = vand.u32 %v545, 127
        %vm547 = vcmp.le.s32.totalorder %v546, %v542
        %vm548 = vcmp.le.s32.totalorder %v546, %v543
        %vm549 = vcmp.le.s32.totalorder %v546, %v544
        %v550 = vsel %vm547, 0.0, -1e+30
        %v551 = vsel %vm548, 0.0, -1e+30
        %v552 = vsel %vm549, 0.0, -1e+30
        %v553 = vld [vmem:[%s4] sm:$0x1]
        %v554 = vmul.f32 %v532, %v532
        %v555 = vmul.f32 %v533, %v533
        %v556 = vmul.f32 %v534, %v534
        %557 = vadd.xlane.f32.xlu0 %v554
        %v558 = vpop.xlane.xlu0 %557
        %559 = vadd.xlane.f32.xlu0 %v555
        %v560 = vpop.xlane.xlu0 %559
        %561 = vadd.xlane.f32.xlu0 %v556
        %v562 = vpop.xlane.xlu0 %561
        %v563 = vrcp.pop 128.0
        %v564 = vmul.f32 %v558, %v563
        %v565 = vmul.f32 %v560, %v563
        %v566 = vmul.f32 %v562, %v563
        %v567 = vadd.f32 %v564, 1e-05
        %v568 = vadd.f32 %v565, 1e-05
        %v569 = vadd.f32 %v566, 1e-05
        %v570 = vrsqrt.pop %v567
        %v571 = vrsqrt.pop %v568
        %v572 = vrsqrt.pop %v569
        %v573 = vmul.f32 %v532, %v570
        %v574 = vmul.f32 %v533, %v571
        %v575 = vmul.f32 %v534, %v572
        %v577 = vlaneseq
        %v578 = vshrl.u32 %v577, 7
        %v579 = vsub.s32 0, %v578
        %v580 = vrot.slane %v553, %v579
        %v582 = vmul.f32 %v573, %v580
        %v583 = vmul.f32 %v574, %v580
        %v584 = vmul.f32 %v575, %v580
        %v585 = vpack.c.bf16 %v583, %v582
        %v586 = vpack.c.bf16 %v584, %v584
        %v587 = vld [vmem:[%s5] sm:$0xff]
        %v588 = vld [vmem:[%s5 + $0x8] sm:$0xff]
        %v589 = vld [vmem:[%s5 + $0x10] sm:$0xf]
        %v590 = vld [vmem:[%s5 + $0x14] sm:$0xff]
        %v591 = vld [vmem:[%s5 + $0x1c] sm:$0xff]
        %v592 = vld [vmem:[%s5 + $0x24] sm:$0xf]
        %v593 = vld [vmem:[%s5 + $0x28] sm:$0xff]
        %v594 = vld [vmem:[%s5 + $0x30] sm:$0xff]
        %v595 = vld [vmem:[%s5 + $0x38] sm:$0xf]
        %v596 = vld [vmem:[%s5 + $0x3c] sm:$0xff]
        %v597 = vld [vmem:[%s5 + $0x44] sm:$0xff]
        %v598 = vld [vmem:[%s5 + $0x4c] sm:$0xf]
        %v599 = vld [vmem:[%s5 + $0x50] sm:$0xff]
        %v600 = vld [vmem:[%s5 + $0x58] sm:$0xff]
        %v601 = vld [vmem:[%s5 + $0x60] sm:$0xf]
        %v602 = vld [vmem:[%s5 + $0x64] sm:$0xff]
        %v603 = vld [vmem:[%s5 + $0x6c] sm:$0xff]
        %v604 = vld [vmem:[%s5 + $0x74] sm:$0xf]
        %v605 = vld [vmem:[%s5 + $0x78] sm:$0xff]
        %v606 = vld [vmem:[%s5 + $0x80] sm:$0xff]
        %v607 = vld [vmem:[%s5 + $0x88] sm:$0xf]
        %v608 = vld [vmem:[%s5 + $0x8c] sm:$0xff]
        %v609 = vld [vmem:[%s5 + $0x94] sm:$0xff]
        %v610 = vld [vmem:[%s5 + $0x9c] sm:$0xf]
        %v611 = vld [vmem:[%s5 + $0xa0] sm:$0xff]
        %v612 = vld [vmem:[%s5 + $0xa8] sm:$0xff]
        %v613 = vld [vmem:[%s5 + $0xb0] sm:$0xf]
        %v614 = vld [vmem:[%s5 + $0xb4] sm:$0xff]
        %v615 = vld [vmem:[%s5 + $0xbc] sm:$0xff]
        %v616 = vld [vmem:[%s5 + $0xc4] sm:$0xf]
        %v617 = vld [vmem:[%s5 + $0xc8] sm:$0xff]
        %v618 = vld [vmem:[%s5 + $0xd0] sm:$0xff]
        %v619 = vld [vmem:[%s5 + $0xd8] sm:$0xf]
        %v620 = vld [vmem:[%s5 + $0xdc] sm:$0xff]
        %v621 = vld [vmem:[%s5 + $0xe4] sm:$0xff]
        %v622 = vld [vmem:[%s5 + $0xec] sm:$0xf]
        %v623 = vld [vmem:[%s5 + $0xf0] sm:$0xff]
        %v624 = vld [vmem:[%s5 + $0xf8] sm:$0xff]
        %v625 = vld [vmem:[%s5 + $0x100] sm:$0xf]
        %v626 = vld [vmem:[%s5 + $0x104] sm:$0xff]
        %v627 = vld [vmem:[%s5 + $0x10c] sm:$0xff]
        %v628 = vld [vmem:[%s5 + $0x114] sm:$0xf]
        %v629 = vld [vmem:[%s5 + $0x118] sm:$0xff]
        %v630 = vld [vmem:[%s5 + $0x120] sm:$0xff]
        %v631 = vld [vmem:[%s5 + $0x128] sm:$0xf]
        %v632 = vld [vmem:[%s5 + $0x12c] sm:$0xff]
        %v633 = vld [vmem:[%s5 + $0x134] sm:$0xff]
        %v634 = vld [vmem:[%s5 + $0x13c] sm:$0xf]
        %v683 = vunpack.c.l.b16 %v587
        %v684 = vunpack.c.h.b16 %v587
        %v685 = vunpack.c.l.b16 %v588
        %v686 = vunpack.c.h.b16 %v588
        %v687 = vunpack.c.l.b16 %v589
        %v688 = vunpack.c.l.b16 %v590
        %v689 = vunpack.c.h.b16 %v590
        %v690 = vunpack.c.l.b16 %v591
        %v691 = vunpack.c.h.b16 %v591
        %v692 = vunpack.c.l.b16 %v592
        %v693 = vunpack.c.l.b16 %v593
        %v694 = vunpack.c.h.b16 %v593
        %v695 = vunpack.c.l.b16 %v594
        %v696 = vunpack.c.h.b16 %v594
        %v697 = vunpack.c.l.b16 %v595
        %v698 = vunpack.c.l.b16 %v596
        %v699 = vunpack.c.h.b16 %v596
        %v700 = vunpack.c.l.b16 %v597
        %v701 = vunpack.c.h.b16 %v597
        %v702 = vunpack.c.l.b16 %v598
        %v703 = vunpack.c.l.b16 %v599
        %v704 = vunpack.c.h.b16 %v599
        %v705 = vunpack.c.l.b16 %v600
        %v706 = vunpack.c.h.b16 %v600
        %v707 = vunpack.c.l.b16 %v601
        %v708 = vunpack.c.l.b16 %v602
        %v709 = vunpack.c.h.b16 %v602
        %v710 = vunpack.c.l.b16 %v603
        %v711 = vunpack.c.h.b16 %v603
        %v712 = vunpack.c.l.b16 %v604
        %v713 = vunpack.c.l.b16 %v605
        %v714 = vunpack.c.h.b16 %v605
        %v715 = vunpack.c.l.b16 %v606
        %v716 = vunpack.c.h.b16 %v606
        %v717 = vunpack.c.l.b16 %v607
        %v718 = vunpack.c.l.b16 %v608
        %v719 = vunpack.c.h.b16 %v608
        %v720 = vunpack.c.l.b16 %v609
        %v721 = vunpack.c.h.b16 %v609
        %v722 = vunpack.c.l.b16 %v610
        %v723 = vunpack.c.l.b16 %v611
        %v724 = vunpack.c.h.b16 %v611
        %v725 = vunpack.c.l.b16 %v612
        %v726 = vunpack.c.h.b16 %v612
        %v727 = vunpack.c.l.b16 %v613
        %v728 = vunpack.c.l.b16 %v614
        %v729 = vunpack.c.h.b16 %v614
        %v730 = vunpack.c.l.b16 %v615
        %v731 = vunpack.c.h.b16 %v615
        %v732 = vunpack.c.l.b16 %v616
        %v733 = vunpack.c.l.b16 %v617
        %v734 = vunpack.c.h.b16 %v617
        %v735 = vunpack.c.l.b16 %v618
        %v736 = vunpack.c.h.b16 %v618
        %v737 = vunpack.c.l.b16 %v619
        %v738 = vunpack.c.l.b16 %v620
        %v739 = vunpack.c.h.b16 %v620
        %v740 = vunpack.c.l.b16 %v621
        %v741 = vunpack.c.h.b16 %v621
        %v742 = vunpack.c.l.b16 %v622
        %v743 = vunpack.c.l.b16 %v623
        %v744 = vunpack.c.h.b16 %v623
        %v745 = vunpack.c.l.b16 %v624
        %v746 = vunpack.c.h.b16 %v624
        %v747 = vunpack.c.l.b16 %v625
        %v748 = vunpack.c.l.b16 %v626
        %v749 = vunpack.c.h.b16 %v626
        %v750 = vunpack.c.l.b16 %v627
        %v751 = vunpack.c.h.b16 %v627
        %v752 = vunpack.c.l.b16 %v628
        %v753 = vunpack.c.l.b16 %v629
        %v754 = vunpack.c.h.b16 %v629
        %v755 = vunpack.c.l.b16 %v630
        %v756 = vunpack.c.h.b16 %v630
        %v757 = vunpack.c.l.b16 %v631
        %v758 = vunpack.c.l.b16 %v632
        %v759 = vunpack.c.h.b16 %v632
        %v760 = vunpack.c.l.b16 %v633
        %v761 = vunpack.c.h.b16 %v633
        %v762 = vunpack.c.l.b16 %v634
        %v763 = vpack.c.b16 %v688, %v683
        %v764 = vpack.c.b16 %v689, %v684
        %v765 = vpack.c.b16 %v690, %v685
        %v766 = vpack.c.b16 %v691, %v686
        %v767 = vpack.c.b16 %v692, %v687
        %v768 = vpack.c.b16 %v698, %v693
        %v769 = vpack.c.b16 %v699, %v694
        %v770 = vpack.c.b16 %v700, %v695
        %v771 = vpack.c.b16 %v701, %v696
        %v772 = vpack.c.b16 %v702, %v697
        %v773 = vpack.c.b16 %v708, %v703
        %v774 = vpack.c.b16 %v709, %v704
        %v775 = vpack.c.b16 %v710, %v705
        %v776 = vpack.c.b16 %v711, %v706
        %v777 = vpack.c.b16 %v712, %v707
        %v778 = vpack.c.b16 %v718, %v713
        %v779 = vpack.c.b16 %v719, %v714
        %v780 = vpack.c.b16 %v720, %v715
        %v781 = vpack.c.b16 %v721, %v716
        %v782 = vpack.c.b16 %v722, %v717
        %v783 = vpack.c.b16 %v728, %v723
        %v784 = vpack.c.b16 %v729, %v724
        %v785 = vpack.c.b16 %v730, %v725
        %v786 = vpack.c.b16 %v731, %v726
        %v787 = vpack.c.b16 %v732, %v727
        %v788 = vpack.c.b16 %v738, %v733
        %v789 = vpack.c.b16 %v739, %v734
        %v790 = vpack.c.b16 %v740, %v735
        %v791 = vpack.c.b16 %v741, %v736
        %v792 = vpack.c.b16 %v742, %v737
        %v793 = vpack.c.b16 %v748, %v743
        %v794 = vpack.c.b16 %v749, %v744
        %v795 = vpack.c.b16 %v750, %v745
        %v796 = vpack.c.b16 %v751, %v746
        %v797 = vpack.c.b16 %v752, %v747
        %v798 = vpack.c.b16 %v758, %v753
        %v799 = vpack.c.b16 %v759, %v754
        %v800 = vpack.c.b16 %v760, %v755
        %v801 = vpack.c.b16 %v761, %v756
        %v802 = vpack.c.b16 %v762, %v757
        %843 = vmatprep.subr.bf16.mxu0 %v764
        %844 = vmatpush1.bf16.msra.mxu0 %v763
        %845 = vmatprep.subr.bf16.mxu0 %v769
        %846 = vmatpush1.bf16.msra.mxu0 %v768
        %847 = vmatprep.subr.bf16.mxu0 %v774
        %848 = vmatpush1.bf16.msra.mxu0 %v773
        %849 = vmatprep.subr.bf16.mxu0 %v779
        %850 = vmatpush1.bf16.msra.mxu0 %v778
        %851 = vmatprep.subr.bf16.mxu0 %v784
        %852 = vmatpush1.bf16.msra.mxu0 %v783
        %853 = vmatprep.subr.bf16.mxu0 %v789
        %854 = vmatpush1.bf16.msra.mxu0 %v788
        %855 = vmatprep.subr.bf16.mxu0 %v794
        %856 = vmatpush1.bf16.msra.mxu0 %v793
        %857 = vmatprep.subr.bf16.mxu0 %v799
        %858 = vmatpush1.bf16.msra.mxu0 %v798
        %859 = vmatprep.subr.bf16.mxu0 0
        %860 = vmatpush1.bf16.msra.mxu0 0
        %861 = vmatprep.subr.bf16.mxu0 0
        %862 = vmatpush1.bf16.msra.mxu0 0
        %863 = vmatprep.subr.bf16.mxu0 0
        %864 = vmatpush1.bf16.msra.mxu0 0
        %865 = vmatprep.subr.bf16.mxu0 0
        %866 = vmatpush1.bf16.msra.mxu0 0
        %867 = vmatprep.subr.bf16.mxu0 0
        %868 = vmatpush1.bf16.msra.mxu0 0
        %869 = vmatprep.subr.bf16.mxu0 0
        %870 = vmatpush1.bf16.msra.mxu0 0
        %871 = vmatprep.subr.bf16.mxu0 0
        %872 = vmatpush1.bf16.msra.mxu0 0
        %873 = vmatprep.subr.bf16.mxu0 0
        %874 = vmatpush1.bf16.msra.mxu0 0
        %875 = vmatprep.mubr.bf16.mxu0 0
        %876 = vmatmul.mubr.bf16.gmra.mrb[0].mxu0 %v585
        %v877 = vpop.f32.mrb[0].mxu0
        %v878 = vadd.f32 0.0, %v877
        %v879 = vpop.f32.mrb[0].mxu0
        %v880 = vadd.f32 0.0, %v879
        %v881 = vpop.f32.mrb[0].mxu0
        %v882 = vadd.f32 0.0, %v881
        %v883 = vpop.f32.mrb[0].mxu0
        %v884 = vadd.f32 0.0, %v883
        %885 = vmatprep.mubr.bf16.mxu0 0
        %886 = vmatmul.mubr.bf16.gmra.mrb[0].mxu0 %v586
        %v887 = vpop.f32.mrb[0].mxu0
        %v888 = vadd.f32 0.0, %v887
        %v889 = vpop.f32.mrb[0].mxu0
        %v890 = vadd.f32 0.0, %v889
        %v891 = vpop.f32.mrb[0].mxu0
        %v892 = vpop.f32.mrb[0].mxu0
        %893 = vdwg.mxu0
        %894 = vmatprep.subr.bf16.mxu0 %v766
        %895 = vmatpush1.bf16.msra.mxu0 %v765
        %896 = vmatprep.subr.bf16.mxu0 %v771
        %897 = vmatpush1.bf16.msra.mxu0 %v770
        %898 = vmatprep.subr.bf16.mxu0 %v776
        %899 = vmatpush1.bf16.msra.mxu0 %v775
        %900 = vmatprep.subr.bf16.mxu0 %v781
        %901 = vmatpush1.bf16.msra.mxu0 %v780
        %902 = vmatprep.subr.bf16.mxu0 %v786
        %903 = vmatpush1.bf16.msra.mxu0 %v785
        %904 = vmatprep.subr.bf16.mxu0 %v791
        %905 = vmatpush1.bf16.msra.mxu0 %v790
        %906 = vmatprep.subr.bf16.mxu0 %v796
        %907 = vmatpush1.bf16.msra.mxu0 %v795
        %908 = vmatprep.subr.bf16.mxu0 %v801
        %909 = vmatpush1.bf16.msra.mxu0 %v800
        %910 = vmatprep.subr.bf16.mxu0 0
        %911 = vmatpush1.bf16.msra.mxu0 0
        %912 = vmatprep.subr.bf16.mxu0 0
        %913 = vmatpush1.bf16.msra.mxu0 0
        %914 = vmatprep.subr.bf16.mxu0 0
        %915 = vmatpush1.bf16.msra.mxu0 0
        %916 = vmatprep.subr.bf16.mxu0 0
        %917 = vmatpush1.bf16.msra.mxu0 0
        %918 = vmatprep.subr.bf16.mxu0 0
        %919 = vmatpush1.bf16.msra.mxu0 0
        %920 = vmatprep.subr.bf16.mxu0 0
        %921 = vmatpush1.bf16.msra.mxu0 0
        %922 = vmatprep.subr.bf16.mxu0 0
        %923 = vmatpush1.bf16.msra.mxu0 0
        %924 = vmatprep.subr.bf16.mxu0 0
        %925 = vmatpush1.bf16.msra.mxu0 0
        %926 = vmatprep.mubr.bf16.mxu0 0
        %927 = vmatmul.mubr.bf16.gmra.mrb[0].mxu0 %v585
        %v928 = vpop.f32.mrb[0].mxu0
        %v929 = vadd.f32 0.0, %v928
        %v930 = vpop.f32.mrb[0].mxu0
        %v931 = vadd.f32 0.0, %v930
        %v932 = vpop.f32.mrb[0].mxu0
        %v933 = vadd.f32 0.0, %v932
        %v934 = vpop.f32.mrb[0].mxu0
        %v935 = vadd.f32 0.0, %v934
        %936 = vmatprep.mubr.bf16.mxu0 0
        %937 = vmatmul.mubr.bf16.gmra.mrb[0].mxu0 %v586
        %v938 = vpop.f32.mrb[0].mxu0
        %v939 = vadd.f32 0.0, %v938
        %v940 = vpop.f32.mrb[0].mxu0
        %v941 = vadd.f32 0.0, %v940
        %v942 = vpop.f32.mrb[0].mxu0
        %v943 = vpop.f32.mrb[0].mxu0
        %944 = vdwg.mxu0
        %945 = vmatprep.subr.bf16.mxu0 0
        %946 = vmatpush1.bf16.msra.mxu0 %v767
        %947 = vmatprep.subr.bf16.mxu0 0
        %948 = vmatpush1.bf16.msra.mxu0 %v772
        %949 = vmatprep.subr.bf16.mxu0 0
        %950 = vmatpush1.bf16.msra.mxu0 %v777
        %951 = vmatprep.subr.bf16.mxu0 0
        %952 = vmatpush1.bf16.msra.mxu0 %v782
        %953 = vmatprep.subr.bf16.mxu0 0
        %954 = vmatpush1.bf16.msra.mxu0 %v787
        %955 = vmatprep.subr.bf16.mxu0 0
        %956 = vmatpush1.bf16.msra.mxu0 %v792
        %957 = vmatprep.subr.bf16.mxu0 0
        %958 = vmatpush1.bf16.msra.mxu0 %v797
        %959 = vmatprep.subr.bf16.mxu0 0
        %960 = vmatpush1.bf16.msra.mxu0 %v802
        %961 = vmatprep.subr.bf16.mxu0 0
        %962 = vmatpush1.bf16.msra.mxu0 0
        %963 = vmatprep.subr.bf16.mxu0 0
        %964 = vmatpush1.bf16.msra.mxu0 0
        %965 = vmatprep.subr.bf16.mxu0 0
        %966 = vmatpush1.bf16.msra.mxu0 0
        %967 = vmatprep.subr.bf16.mxu0 0
        %968 = vmatpush1.bf16.msra.mxu0 0
        %969 = vmatprep.subr.bf16.mxu0 0
        %970 = vmatpush1.bf16.msra.mxu0 0
        %971 = vmatprep.subr.bf16.mxu0 0
        %972 = vmatpush1.bf16.msra.mxu0 0
        %973 = vmatprep.subr.bf16.mxu0 0
        %974 = vmatpush1.bf16.msra.mxu0 0
        %975 = vmatprep.subr.bf16.mxu0 0
        %976 = vmatpush1.bf16.msra.mxu0 0
        %977 = vmatprep.mubr.bf16.mxu0 0
        %978 = vmatmul.mubr.bf16.gmra.mrb[0].mxu0 %v585
        %v979 = vpop.f32.mrb[0].mxu0
        %v980 = vadd.f32 0.0, %v979
        %v981 = vpop.f32.mrb[0].mxu0
        %v982 = vpop.f32.mrb[0].mxu0
        %v983 = vadd.f32 0.0, %v982
        %v984 = vpop.f32.mrb[0].mxu0
        %985 = vmatprep.mubr.bf16.mxu0 0
        %986 = vmatmul.mubr.bf16.gmra.mrb[0].mxu0 %v586
        %v987 = vpop.f32.mrb[0].mxu0
        %v988 = vadd.f32 0.0, %v987
        %v989 = vpop.f32.mrb[0].mxu0
        %v990 = vpop.f32.mrb[0].mxu0
        %v991 = vpop.f32.mrb[0].mxu0
        %992 = vdwg.mxu0
        %v993 = vmul.f32 %v878, %v535
        %v994 = vmul.f32 %v882, %v536
        %v995 = vmul.f32 %v888, %v537
        %v996 = vmul.f32 %v880, %v538
        %v997 = vmul.f32 %v884, %v539
        %v998 = vmul.f32 %v890, %v540
        %v999 = vadd.f32 %v993, %v996
        %v1000 = vadd.f32 %v994, %v997
        %v1001 = vadd.f32 %v995, %v998
        %v1002 = vpack.c.bf16 %v1000, %v999
        %v1003 = vpack.c.bf16 %v1001, %v1001
        %v1004 = vmul.f32 %v929, %v535
        %v1005 = vmul.f32 %v933, %v536
        %v1006 = vmul.f32 %v939, %v537
        %v1007 = vmul.f32 %v931, %v538
        %v1008 = vmul.f32 %v935, %v539
        %v1009 = vmul.f32 %v941, %v540
        %v1010 = vadd.f32 %v1004, %v1007
        %v1011 = vadd.f32 %v1005, %v1008
        %v1012 = vadd.f32 %v1006, %v1009
        %v1013 = vpack.c.bf16 %v1011, %v1010
        %v1014 = vpack.c.bf16 %v1012, %v1012
        %v1015 = vpack.c.bf16 %v983, %v980
        %v1016 = vpack.c.bf16 %v988, %v988
        %v1017 = vld [vmem:[#allocation2] sm:$0xf]
        %v1018 = vld [vmem:[#allocation2 + $0x4] sm:$0xf]
        %v1019 = vld [vmem:[#allocation2 + $0x8] sm:$0xf]
        %v1020 = vld [vmem:[#allocation2 + $0xc] sm:$0xf]
        %v1021 = vld [vmem:[#allocation2 + $0x10] sm:$0xf]
        %v1022 = vld [vmem:[#allocation2 + $0x14] sm:$0xf]
        %v1023 = vld [vmem:[#allocation2 + $0x18] sm:$0xf]
        %v1024 = vld [vmem:[#allocation2 + $0x1c] sm:$0xf]
        %v1025 = vld [vmem:[#allocation2 + $0x20] sm:$0xf]
        %v1026 = vld [vmem:[#allocation2 + $0x24] sm:$0xf]
        %v1027 = vld [vmem:[#allocation2 + $0x28] sm:$0xf]
        %v1028 = vld [vmem:[#allocation2 + $0x2c] sm:$0xf]
        %v1029 = vld [vmem:[#allocation2 + $0x30] sm:$0xf]
        %v1030 = vld [vmem:[#allocation2 + $0x34] sm:$0xf]
        %v1031 = vld [vmem:[#allocation2 + $0x38] sm:$0xf]
        %v1032 = vld [vmem:[#allocation2 + $0x3c] sm:$0xf]
        %vm1033 = vcmask 261120
        %v1035 = vsel %vm1033, %v1002, 0
        %v1038 = vsel %vm1033, %v1003, 0
        %v1041 = vsel %vm1033, %v1013, 0
        %v1044 = vsel %vm1033, %v1014, 0
        %1046 = vmatprep.subr.bf16.mxu0 0
        %1047 = vmatpush1.bf16.xpose.msra.mxu0 %v1041
        %1048 = vmatprep.subr.bf16.mxu0 0
        %1049 = vmatpush1.bf16.xpose.msra.mxu0 %v1044
        %1050 = vmatprep.subr.bf16.mxu0 0
        %1051 = vmatpush1.bf16.xpose.msra.mxu0 0
        %1052 = vmatprep.subr.bf16.mxu0 0
        %1053 = vmatpush1.bf16.xpose.msra.mxu0 0
        %1054 = vmatprep.subr.bf16.mxu0 0
        %1055 = vmatpush1.bf16.xpose.msra.mxu0 0
        %1056 = vmatprep.subr.bf16.mxu0 0
        %1057 = vmatpush1.bf16.xpose.msra.mxu0 0
        %1058 = vmatprep.subr.bf16.mxu0 0
        %1059 = vmatpush1.bf16.xpose.msra.mxu0 0
        %1060 = vmatprep.subr.bf16.mxu0 0
        %1061 = vmatpush1.bf16.xpose.msra.mxu0 0
        %1062 = vmatprep.subr.bf16.mxu0 0
        %1063 = vmatpush1.bf16.xpose.msra.mxu0 0
        %1064 = vmatprep.subr.bf16.mxu0 0
        %1065 = vmatpush1.bf16.xpose.msra.mxu0 0
        %1066 = vmatprep.subr.bf16.mxu0 0
        %1067 = vmatpush1.bf16.xpose.msra.mxu0 0
        %1068 = vmatprep.subr.bf16.mxu0 0
        %1069 = vmatpush1.bf16.xpose.msra.mxu0 0
        %1070 = vmatprep.subr.bf16.mxu0 0
        %1071 = vmatpush1.bf16.xpose.msra.mxu0 0
        %1072 = vmatprep.subr.bf16.mxu0 0
        %1073 = vmatpush1.bf16.xpose.msra.mxu0 0
        %1074 = vmatprep.subr.bf16.mxu0 0
        %1075 = vmatpush1.bf16.xpose.msra.mxu0 0
        %1076 = vmatprep.subr.bf16.mxu0 0
        %1077 = vmatpush1.bf16.xpose.msra.mxu0 0
        %1078 = vmatprep.mubr.bf16.mxu0 0
        %1079 = vmatmul.mubr.bf16.gmra.mrb[0].mxu0 %v1035
        %v1080 = vpop.f32.mrb[0].mxu0
        %v1081 = vadd.f32 %v550, %v1080
        %v1082 = vpop.f32.mrb[0].mxu0
        %v1083 = vpop.f32.mrb[0].mxu0
        %v1084 = vadd.f32 %v551, %v1083
        %v1085 = vpop.f32.mrb[0].mxu0
        %1086 = vmatprep.mubr.bf16.mxu0 0
        %1087 = vmatmul.mubr.bf16.gmra.mrb[0].mxu0 %v1038
        %v1088 = vpop.f32.mrb[0].mxu0
        %v1089 = vadd.f32 %v552, %v1088
        %v1090 = vpop.f32.mrb[0].mxu0
        %v1091 = vpop.f32.mrb[0].mxu0
        %v1092 = vpop.f32.mrb[0].mxu0
        %1093 = vdwg.mxu0
        %vm1094 = vcmask 195584
        %v1095 = vsel %vm1094, %v1081, -inf
        %1096 = vmax.xlane.f32.xlu0 %v1095
        %v1097 = vpop.xlane.xlu0 %1096
        %v1098 = vsel %vm1094, %v1084, -inf
        %1099 = vmax.xlane.f32.xlu0 %v1098
        %v1100 = vpop.xlane.xlu0 %1099
        %v1101 = vsel %vm1094, %v1089, -inf
        %1102 = vmax.xlane.f32.xlu0 %v1101
        %v1103 = vpop.xlane.xlu0 %1102
        %v1104 = vsub.f32 %v1081, %v1097
        %v1105 = vsub.f32 %v1084, %v1100
        %v1106 = vsub.f32 %v1089, %v1103
        %v1107 = vmul.f32 %v1104, 1.442695
        %v1108 = vpow.pop %v1107
        %v1109 = vmul.f32 %v1105, 1.442695
        %v1110 = vpow.pop %v1109
        %v1111 = vmul.f32 %v1106, 1.442695
        %v1112 = vpow.pop %v1111
        %v1113 = vsel %vm1094, %v1108, 0.0
        %1114 = vadd.xlane.f32.xlu0 %v1113
        %v1115 = vpop.xlane.xlu0 %1114
        %v1116 = vsel %vm1094, %v1110, 0.0
        %1117 = vadd.xlane.f32.xlu0 %v1116
        %v1118 = vpop.xlane.xlu0 %1117
        %v1119 = vsel %vm1094, %v1112, 0.0
        %1120 = vadd.xlane.f32.xlu0 %v1119
        %v1121 = vpop.xlane.xlu0 %1120
        %v1122 = vrcp.pop %v1115
        %v1123 = vrcp.pop %v1118
        %v1124 = vrcp.pop %v1121
        %v1125 = vmul.f32 %v1108, %v1122
        %v1126 = vmul.f32 %v1110, %v1123
        %v1127 = vmul.f32 %v1112, %v1124
        %v1128 = vpack.c.bf16 %v1126, %v1125
        %v1129 = vpack.c.bf16 %v1127, %v1127
        %v1131 = vsel %vm1094, %v1128, 0
        %v1134 = vsel %vm1094, %v1129, 0
        %vm1136 = vcmask 1043456
        %v1138 = vsel %vm1136, %v1016, 0
        %1140 = vmatprep.subr.bf16.mxu0 0
        %1141 = vmatpush1.bf16.msra.mxu0 %v1015
        %1142 = vmatprep.subr.bf16.mxu0 0
        %1143 = vmatpush1.bf16.msra.mxu0 %v1138
        %1144 = vmatprep.subr.bf16.mxu0 0
        %1145 = vmatpush1.bf16.msra.mxu0 0
        %1146 = vmatprep.subr.bf16.mxu0 0
        %1147 = vmatpush1.bf16.msra.mxu0 0
        %1148 = vmatprep.subr.bf16.mxu0 0
        %1149 = vmatpush1.bf16.msra.mxu0 0
        %1150 = vmatprep.subr.bf16.mxu0 0
        %1151 = vmatpush1.bf16.msra.mxu0 0
        %1152 = vmatprep.subr.bf16.mxu0 0
        %1153 = vmatpush1.bf16.msra.mxu0 0
        %1154 = vmatprep.subr.bf16.mxu0 0
        %1155 = vmatpush1.bf16.msra.mxu0 0
        %1156 = vmatprep.subr.bf16.mxu0 0
        %1157 = vmatpush1.bf16.msra.mxu0 0
        %1158 = vmatprep.subr.bf16.mxu0 0
        %1159 = vmatpush1.bf16.msra.mxu0 0
        %1160 = vmatprep.subr.bf16.mxu0 0
        %1161 = vmatpush1.bf16.msra.mxu0 0
        %1162 = vmatprep.subr.bf16.mxu0 0
        %1163 = vmatpush1.bf16.msra.mxu0 0
        %1164 = vmatprep.subr.bf16.mxu0 0
        %1165 = vmatpush1.bf16.msra.mxu0 0
        %1166 = vmatprep.subr.bf16.mxu0 0
        %1167 = vmatpush1.bf16.msra.mxu0 0
        %1168 = vmatprep.subr.bf16.mxu0 0
        %1169 = vmatpush1.bf16.msra.mxu0 0
        %1170 = vmatprep.subr.bf16.mxu0 0
        %1171 = vmatpush1.bf16.msra.mxu0 0
        %1172 = vmatprep.mubr.bf16.mxu0 0
        %1173 = vmatmul.mubr.bf16.gmra.mrb[0].mxu0 %v1131
        %v1174 = vpop.f32.mrb[0].mxu0
        %v1175 = vadd.f32 0.0, %v1174
        %v1176 = vpop.f32.mrb[0].mxu0
        %v1177 = vpop.f32.mrb[0].mxu0
        %v1178 = vadd.f32 0.0, %v1177
        %v1179 = vpop.f32.mrb[0].mxu0
        %1180 = vmatprep.mubr.bf16.mxu0 0
        %1181 = vmatmul.mubr.bf16.gmra.mrb[0].mxu0 %v1134
        %v1182 = vpop.f32.mrb[0].mxu0
        %v1183 = vadd.f32 0.0, %v1182
        %v1184 = vpop.f32.mrb[0].mxu0
        %v1185 = vpop.f32.mrb[0].mxu0
        %v1186 = vpop.f32.mrb[0].mxu0
        %1187 = vdwg.mxu0
        %v1188 = vpack.c.bf16 %v1178, %v1175
        %v1189 = vpack.c.bf16 %v1183, %v1183
        %1192 = vrot.lane.b32.xlu0 %v1002, 96
        %v1193 = vpop.permute.xlu0 %1192
        %1194 = vrot.lane.b32.xlu0 %v1003, 96
        %v1195 = vpop.permute.xlu0 %1194
        %1198 = vrot.lane.b32.xlu0 %v1013, 96
        %v1199 = vpop.permute.xlu0 %1198
        %1200 = vrot.lane.b32.xlu0 %v1014, 96
        %v1201 = vpop.permute.xlu0 %1200
        %v1203 = vsel %vm1033, %v1193, 0
        %v1206 = vsel %vm1033, %v1195, 0
        %v1209 = vsel %vm1033, %v1199, 0
        %v1212 = vsel %vm1033, %v1201, 0
        %1214 = vmatprep.subr.bf16.mxu0 0
        %1215 = vmatpush1.bf16.xpose.msra.mxu0 %v1209
        %1216 = vmatprep.subr.bf16.mxu0 0
        %1217 = vmatpush1.bf16.xpose.msra.mxu0 %v1212
        %1218 = vmatprep.subr.bf16.mxu0 0
        %1219 = vmatpush1.bf16.xpose.msra.mxu0 0
        %1220 = vmatprep.subr.bf16.mxu0 0
        %1221 = vmatpush1.bf16.xpose.msra.mxu0 0
        %1222 = vmatprep.subr.bf16.mxu0 0
        %1223 = vmatpush1.bf16.xpose.msra.mxu0 0
        %1224 = vmatprep.subr.bf16.mxu0 0
        %1225 = vmatpush1.bf16.xpose.msra.mxu0 0
        %1226 = vmatprep.subr.bf16.mxu0 0
        %1227 = vmatpush1.bf16.xpose.msra.mxu0 0
        %1228 = vmatprep.subr.bf16.mxu0 0
        %1229 = vmatpush1.bf16.xpose.msra.mxu0 0
        %1230 = vmatprep.subr.bf16.mxu0 0
        %1231 = vmatpush1.bf16.xpose.msra.mxu0 0
        %1232 = vmatprep.subr.bf16.mxu0 0
        %1233 = vmatpush1.bf16.xpose.msra.mxu0 0
        %1234 = vmatprep.subr.bf16.mxu0 0
        %1235 = vmatpush1.bf16.xpose.msra.mxu0 0
        %1236 = vmatprep.subr.bf16.mxu0 0
        %1237 = vmatpush1.bf16.xpose.msra.mxu0 0
        %1238 = vmatprep.subr.bf16.mxu0 0
        %1239 = vmatpush1.bf16.xpose.msra.mxu0 0
        %1240 = vmatprep.subr.bf16.mxu0 0
        %1241 = vmatpush1.bf16.xpose.msra.mxu0 0
        %1242 = vmatprep.subr.bf16.mxu0 0
        %1243 = vmatpush1.bf16.xpose.msra.mxu0 0
        %1244 = vmatprep.subr.bf16.mxu0 0
        %1245 = vmatpush1.bf16.xpose.msra.mxu0 0
        %1246 = vmatprep.mubr.bf16.mxu0 0
        %1247 = vmatmul.mubr.bf16.gmra.mrb[0].mxu0 %v1203
        %v1248 = vpop.f32.mrb[0].mxu0
        %v1249 = vadd.f32 %v550, %v1248
        %v1250 = vpop.f32.mrb[0].mxu0
        %v1251 = vpop.f32.mrb[0].mxu0
        %v1252 = vadd.f32 %v551, %v1251
        %v1253 = vpop.f32.mrb[0].mxu0
        %1254 = vmatprep.mubr.bf16.mxu0 0
        %1255 = vmatmul.mubr.bf16.gmra.mrb[0].mxu0 %v1206
        %v1256 = vpop.f32.mrb[0].mxu0
        %v1257 = vadd.f32 %v552, %v1256
        %v1258 = vpop.f32.mrb[0].mxu0
        %v1259 = vpop.f32.mrb[0].mxu0
        %v1260 = vpop.f32.mrb[0].mxu0
        %1261 = vdwg.mxu0
        %v1262 = vsel %vm1094, %v1249, -inf
        %1263 = vmax.xlane.f32.xlu0 %v1262
        %v1264 = vpop.xlane.xlu0 %1263
        %v1265 = vsel %vm1094, %v1252, -inf
        %1266 = vmax.xlane.f32.xlu0 %v1265
        %v1267 = vpop.xlane.xlu0 %1266
        %v1268 = vsel %vm1094, %v1257, -inf
        %1269 = vmax.xlane.f32.xlu0 %v1268
        %v1270 = vpop.xlane.xlu0 %1269
        %v1271 = vsub.f32 %v1249, %v1264
        %v1272 = vsub.f32 %v1252, %v1267
        %v1273 = vsub.f32 %v1257, %v1270
        %v1274 = vmul.f32 %v1271, 1.442695
        %v1275 = vpow.pop %v1274
        %v1276 = vmul.f32 %v1272, 1.442695
        %v1277 = vpow.pop %v1276
        %v1278 = vmul.f32 %v1273, 1.442695
        %v1279 = vpow.pop %v1278
        %v1280 = vsel %vm1094, %v1275, 0.0
        %1281 = vadd.xlane.f32.xlu0 %v1280
        %v1282 = vpop.xlane.xlu0 %1281
        %v1283 = vsel %vm1094, %v1277, 0.0
        %1284 = vadd.xlane.f32.xlu0 %v1283
        %v1285 = vpop.xlane.xlu0 %1284
        %v1286 = vsel %vm1094, %v1279, 0.0
        %1287 = vadd.xlane.f32.xlu0 %v1286
        %v1288 = vpop.xlane.xlu0 %1287
        %v1289 = vrcp.pop %v1282
        %v1290 = vrcp.pop %v1285
        %v1291 = vrcp.pop %v1288
        %v1292 = vmul.f32 %v1275, %v1289
        %v1293 = vmul.f32 %v1277, %v1290
        %v1294 = vmul.f32 %v1279, %v1291
        %v1295 = vpack.c.bf16 %v1293, %v1292
        %v1296 = vpack.c.bf16 %v1294, %v1294
        %1299 = vrot.lane.b32.xlu0 %v1015, 96
        %v1300 = vpop.permute.xlu0 %1299
        %1301 = vrot.lane.b32.xlu0 %v1016, 96
        %v1302 = vpop.permute.xlu0 %1301
        %v1305 = vsel %vm1094, %v1295, 0
        %v1308 = vsel %vm1094, %v1296, 0
        %v1311 = vsel %vm1136, %v1302, 0
        %1313 = vmatprep.subr.bf16.mxu0 0
        %1314 = vmatpush1.bf16.msra.mxu0 %v1300
        %1315 = vmatprep.subr.bf16.mxu0 0
        %1316 = vmatpush1.bf16.msra.mxu0 %v1311
        %1317 = vmatprep.subr.bf16.mxu0 0
        %1318 = vmatpush1.bf16.msra.mxu0 0
        %1319 = vmatprep.subr.bf16.mxu0 0
        %1320 = vmatpush1.bf16.msra.mxu0 0
        %1321 = vmatprep.subr.bf16.mxu0 0
        %1322 = vmatpush1.bf16.msra.mxu0 0
        %1323 = vmatprep.subr.bf16.mxu0 0
        %1324 = vmatpush1.bf16.msra.mxu0 0
        %1325 = vmatprep.subr.bf16.mxu0 0
        %1326 = vmatpush1.bf16.msra.mxu0 0
        %1327 = vmatprep.subr.bf16.mxu0 0
        %1328 = vmatpush1.bf16.msra.mxu0 0
        %1329 = vmatprep.subr.bf16.mxu0 0
        %1330 = vmatpush1.bf16.msra.mxu0 0
        %1331 = vmatprep.subr.bf16.mxu0 0
        %1332 = vmatpush1.bf16.msra.mxu0 0
        %1333 = vmatprep.subr.bf16.mxu0 0
        %1334 = vmatpush1.bf16.msra.mxu0 0
        %1335 = vmatprep.subr.bf16.mxu0 0
        %1336 = vmatpush1.bf16.msra.mxu0 0
        %1337 = vmatprep.subr.bf16.mxu0 0
        %1338 = vmatpush1.bf16.msra.mxu0 0
        %1339 = vmatprep.subr.bf16.mxu0 0
        %1340 = vmatpush1.bf16.msra.mxu0 0
        %1341 = vmatprep.subr.bf16.mxu0 0
        %1342 = vmatpush1.bf16.msra.mxu0 0
        %1343 = vmatprep.subr.bf16.mxu0 0
        %1344 = vmatpush1.bf16.msra.mxu0 0
        %1345 = vmatprep.mubr.bf16.mxu0 0
        %1346 = vmatmul.mubr.bf16.gmra.mrb[0].mxu0 %v1305
        %v1347 = vpop.f32.mrb[0].mxu0
        %v1348 = vadd.f32 0.0, %v1347
        %v1349 = vpop.f32.mrb[0].mxu0
        %v1350 = vpop.f32.mrb[0].mxu0
        %v1351 = vadd.f32 0.0, %v1350
        %v1352 = vpop.f32.mrb[0].mxu0
        %1353 = vmatprep.mubr.bf16.mxu0 0
        %1354 = vmatmul.mubr.bf16.gmra.mrb[0].mxu0 %v1308
        %v1355 = vpop.f32.mrb[0].mxu0
        %v1356 = vadd.f32 0.0, %v1355
        %v1357 = vpop.f32.mrb[0].mxu0
        %v1358 = vpop.f32.mrb[0].mxu0
        %v1359 = vpop.f32.mrb[0].mxu0
        %1360 = vdwg.mxu0
        %v1361 = vpack.c.bf16 %v1351, %v1348
        %v1362 = vpack.c.bf16 %v1356, %v1356
        %v1367 = vunpack.c.l.b16 %v1021
        %v1368 = vunpack.c.l.b16 %v1022
        %v1369 = vunpack.c.l.b16 %v1023
        %v1370 = vunpack.c.l.b16 %v1024
        %v1371 = vpack.c.b16 %v1368, %v1367
        %v1372 = vpack.c.b16 %v1370, %v1369
        %v1376 = vsel %vm1033, %v1361, 0
        %v1379 = vsel %vm1033, %v1362, 0
        %1381 = vmatprep.subr.bf16.mxu0 0
        %1382 = vmatpush1.bf16.msra.mxu0 %v1371
        %1383 = vmatprep.subr.bf16.mxu0 0
        %1384 = vmatpush1.bf16.msra.mxu0 %v1372
        %1385 = vmatprep.subr.bf16.mxu0 0
        %1386 = vmatpush1.bf16.msra.mxu0 0
        %1387 = vmatprep.subr.bf16.mxu0 0
        %1388 = vmatpush1.bf16.msra.mxu0 0
        %1389 = vmatprep.subr.bf16.mxu0 0
        %1390 = vmatpush1.bf16.msra.mxu0 0
        %1391 = vmatprep.subr.bf16.mxu0 0
        %1392 = vmatpush1.bf16.msra.mxu0 0
        %1393 = vmatprep.subr.bf16.mxu0 0
        %1394 = vmatpush1.bf16.msra.mxu0 0
        %1395 = vmatprep.subr.bf16.mxu0 0
        %1396 = vmatpush1.bf16.msra.mxu0 0
        %1397 = vmatprep.subr.bf16.mxu0 0
        %1398 = vmatpush1.bf16.msra.mxu0 0
        %1399 = vmatprep.subr.bf16.mxu0 0
        %1400 = vmatpush1.bf16.msra.mxu0 0
        %1401 = vmatprep.subr.bf16.mxu0 0
        %1402 = vmatpush1.bf16.msra.mxu0 0
        %1403 = vmatprep.subr.bf16.mxu0 0
        %1404 = vmatpush1.bf16.msra.mxu0 0
        %1405 = vmatprep.subr.bf16.mxu0 0
        %1406 = vmatpush1.bf16.msra.mxu0 0
        %1407 = vmatprep.subr.bf16.mxu0 0
        %1408 = vmatpush1.bf16.msra.mxu0 0
        %1409 = vmatprep.subr.bf16.mxu0 0
        %1410 = vmatpush1.bf16.msra.mxu0 0
        %1411 = vmatprep.subr.bf16.mxu0 0
        %1412 = vmatpush1.bf16.msra.mxu0 0
        %1413 = vmatprep.mubr.bf16.mxu0 0
        %1414 = vmatmul.mubr.bf16.gmra.mrb[0].mxu0 %v1376
        %v1415 = vpop.f32.mrb[0].mxu0
        %v1416 = vadd.f32 0.0, %v1415
        %v1417 = vpop.f32.mrb[0].mxu0
        %v1418 = vpop.f32.mrb[0].mxu0
        %v1419 = vadd.f32 0.0, %v1418
        %v1420 = vpop.f32.mrb[0].mxu0
        %1421 = vmatprep.mubr.bf16.mxu0 0
        %1422 = vmatmul.mubr.bf16.gmra.mrb[0].mxu0 %v1379
        %v1423 = vpop.f32.mrb[0].mxu0
        %v1424 = vadd.f32 0.0, %v1423
        %v1425 = vpop.f32.mrb[0].mxu0
        %v1426 = vpop.f32.mrb[0].mxu0
        %v1427 = vpop.f32.mrb[0].mxu0
        %1428 = vdwg.mxu0
        %v1433 = vunpack.c.l.b16 %v1017
        %v1434 = vunpack.c.l.b16 %v1018
        %v1435 = vunpack.c.l.b16 %v1019
        %v1436 = vunpack.c.l.b16 %v1020
        %v1437 = vpack.c.b16 %v1434, %v1433
        %v1438 = vpack.c.b16 %v1436, %v1435
        %v1442 = vsel %vm1033, %v1188, 0
        %v1445 = vsel %vm1033, %v1189, 0
        %1447 = vmatprep.subr.bf16.mxu0 0
        %1448 = vmatpush1.bf16.msra.mxu0 %v1437
        %1449 = vmatprep.subr.bf16.mxu0 0
        %1450 = vmatpush1.bf16.msra.mxu0 %v1438
        %1451 = vmatprep.subr.bf16.mxu0 0
        %1452 = vmatpush1.bf16.msra.mxu0 0
        %1453 = vmatprep.subr.bf16.mxu0 0
        %1454 = vmatpush1.bf16.msra.mxu0 0
        %1455 = vmatprep.subr.bf16.mxu0 0
        %1456 = vmatpush1.bf16.msra.mxu0 0
        %1457 = vmatprep.subr.bf16.mxu0 0
        %1458 = vmatpush1.bf16.msra.mxu0 0
        %1459 = vmatprep.subr.bf16.mxu0 0
        %1460 = vmatpush1.bf16.msra.mxu0 0
        %1461 = vmatprep.subr.bf16.mxu0 0
        %1462 = vmatpush1.bf16.msra.mxu0 0
        %1463 = vmatprep.subr.bf16.mxu0 0
        %1464 = vmatpush1.bf16.msra.mxu0 0
        %1465 = vmatprep.subr.bf16.mxu0 0
        %1466 = vmatpush1.bf16.msra.mxu0 0
        %1467 = vmatprep.subr.bf16.mxu0 0
        %1468 = vmatpush1.bf16.msra.mxu0 0
        %1469 = vmatprep.subr.bf16.mxu0 0
        %1470 = vmatpush1.bf16.msra.mxu0 0
        %1471 = vmatprep.subr.bf16.mxu0 0
        %1472 = vmatpush1.bf16.msra.mxu0 0
        %1473 = vmatprep.subr.bf16.mxu0 0
        %1474 = vmatpush1.bf16.msra.mxu0 0
        %1475 = vmatprep.subr.bf16.mxu0 0
        %1476 = vmatpush1.bf16.msra.mxu0 0
        %1477 = vmatprep.subr.bf16.mxu0 0
        %1478 = vmatpush1.bf16.msra.mxu0 0
        %1479 = vmatprep.mubr.bf16.mxu0 0
        %1480 = vmatmul.mubr.bf16.gmra.mrb[0].mxu0 %v1442
        %v1481 = vpop.f32.mrb[0].mxu0
        %v1482 = vadd.f32 %v1416, %v1481
        %v1483 = vpop.f32.mrb[0].mxu0
        %v1484 = vpop.f32.mrb[0].mxu0
        %v1485 = vadd.f32 %v1419, %v1484
        %v1486 = vpop.f32.mrb[0].mxu0
        %1487 = vmatprep.mubr.bf16.mxu0 0
        %1488 = vmatmul.mubr.bf16.gmra.mrb[0].mxu0 %v1445
        %v1489 = vpop.f32.mrb[0].mxu0
        %v1490 = vadd.f32 %v1424, %v1489
        %v1491 = vpop.f32.mrb[0].mxu0
        %v1492 = vpop.f32.mrb[0].mxu0
        %v1493 = vpop.f32.mrb[0].mxu0
        %1494 = vdwg.mxu0
        %1495 = vrot.lane.b32.xlu0 %v1002, 64
        %v1496 = vpop.permute.xlu0 %1495
        %1497 = vrot.lane.b32.xlu0 %v1003, 64
        %v1498 = vpop.permute.xlu0 %1497
        %1499 = vrot.lane.b32.xlu0 %v1013, 64
        %v1500 = vpop.permute.xlu0 %1499
        %1501 = vrot.lane.b32.xlu0 %v1014, 64
        %v1502 = vpop.permute.xlu0 %1501
        %v1504 = vsel %vm1033, %v1496, 0
        %v1507 = vsel %vm1033, %v1498, 0
        %v1510 = vsel %vm1033, %v1500, 0
        %v1513 = vsel %vm1033, %v1502, 0
        %1515 = vmatprep.subr.bf16.mxu0 0
        %1516 = vmatpush1.bf16.xpose.msra.mxu0 %v1510
        %1517 = vmatprep.subr.bf16.mxu0 0
        %1518 = vmatpush1.bf16.xpose.msra.mxu0 %v1513
        %1519 = vmatprep.subr.bf16.mxu0 0
        %1520 = vmatpush1.bf16.xpose.msra.mxu0 0
        %1521 = vmatprep.subr.bf16.mxu0 0
        %1522 = vmatpush1.bf16.xpose.msra.mxu0 0
        %1523 = vmatprep.subr.bf16.mxu0 0
        %1524 = vmatpush1.bf16.xpose.msra.mxu0 0
        %1525 = vmatprep.subr.bf16.mxu0 0
        %1526 = vmatpush1.bf16.xpose.msra.mxu0 0
        %1527 = vmatprep.subr.bf16.mxu0 0
        %1528 = vmatpush1.bf16.xpose.msra.mxu0 0
        %1529 = vmatprep.subr.bf16.mxu0 0
        %1530 = vmatpush1.bf16.xpose.msra.mxu0 0
        %1531 = vmatprep.subr.bf16.mxu0 0
        %1532 = vmatpush1.bf16.xpose.msra.mxu0 0
        %1533 = vmatprep.subr.bf16.mxu0 0
        %1534 = vmatpush1.bf16.xpose.msra.mxu0 0
        %1535 = vmatprep.subr.bf16.mxu0 0
        %1536 = vmatpush1.bf16.xpose.msra.mxu0 0
        %1537 = vmatprep.subr.bf16.mxu0 0
        %1538 = vmatpush1.bf16.xpose.msra.mxu0 0
        %1539 = vmatprep.subr.bf16.mxu0 0
        %1540 = vmatpush1.bf16.xpose.msra.mxu0 0
        %1541 = vmatprep.subr.bf16.mxu0 0
        %1542 = vmatpush1.bf16.xpose.msra.mxu0 0
        %1543 = vmatprep.subr.bf16.mxu0 0
        %1544 = vmatpush1.bf16.xpose.msra.mxu0 0
        %1545 = vmatprep.subr.bf16.mxu0 0
        %1546 = vmatpush1.bf16.xpose.msra.mxu0 0
        %1547 = vmatprep.mubr.bf16.mxu0 0
        %1548 = vmatmul.mubr.bf16.gmra.mrb[0].mxu0 %v1504
        %v1549 = vpop.f32.mrb[0].mxu0
        %v1550 = vadd.f32 %v550, %v1549
        %v1551 = vpop.f32.mrb[0].mxu0
        %v1552 = vpop.f32.mrb[0].mxu0
        %v1553 = vadd.f32 %v551, %v1552
        %v1554 = vpop.f32.mrb[0].mxu0
        %1555 = vmatprep.mubr.bf16.mxu0 0
        %1556 = vmatmul.mubr.bf16.gmra.mrb[0].mxu0 %v1507
        %v1557 = vpop.f32.mrb[0].mxu0
        %v1558 = vadd.f32 %v552, %v1557
        %v1559 = vpop.f32.mrb[0].mxu0
        %v1560 = vpop.f32.mrb[0].mxu0
        %v1561 = vpop.f32.mrb[0].mxu0
        %1562 = vdwg.mxu0
        %v1563 = vsel %vm1094, %v1550, -inf
        %1564 = vmax.xlane.f32.xlu0 %v1563
        %v1565 = vpop.xlane.xlu0 %1564
        %v1566 = vsel %vm1094, %v1553, -inf
        %1567 = vmax.xlane.f32.xlu0 %v1566
        %v1568 = vpop.xlane.xlu0 %1567
        %v1569 = vsel %vm1094, %v1558, -inf
        %1570 = vmax.xlane.f32.xlu0 %v1569
        %v1571 = vpop.xlane.xlu0 %1570
        %v1572 = vsub.f32 %v1550, %v1565
        %v1573 = vsub.f32 %v1553, %v1568
        %v1574 = vsub.f32 %v1558, %v1571
        %v1575 = vmul.f32 %v1572, 1.442695
        %v1576 = vpow.pop %v1575
        %v1577 = vmul.f32 %v1573, 1.442695
        %v1578 = vpow.pop %v1577
        %v1579 = vmul.f32 %v1574, 1.442695
        %v1580 = vpow.pop %v1579
        %v1581 = vsel %vm1094, %v1576, 0.0
        %1582 = vadd.xlane.f32.xlu0 %v1581
        %v1583 = vpop.xlane.xlu0 %1582
        %v1584 = vsel %vm1094, %v1578, 0.0
        %1585 = vadd.xlane.f32.xlu0 %v1584
        %v1586 = vpop.xlane.xlu0 %1585
        %v1587 = vsel %vm1094, %v1580, 0.0
        %1588 = vadd.xlane.f32.xlu0 %v1587
        %v1589 = vpop.xlane.xlu0 %1588
        %v1590 = vrcp.pop %v1583
        %v1591 = vrcp.pop %v1586
        %v1592 = vrcp.pop %v1589
        %v1593 = vmul.f32 %v1576, %v1590
        %v1594 = vmul.f32 %v1578, %v1591
        %v1595 = vmul.f32 %v1580, %v1592
        %v1596 = vpack.c.bf16 %v1594, %v1593
        %v1597 = vpack.c.bf16 %v1595, %v1595
        %1598 = vrot.lane.b32.xlu0 %v1015, 64
        %v1599 = vpop.permute.xlu0 %1598
        %1600 = vrot.lane.b32.xlu0 %v1016, 64
        %v1601 = vpop.permute.xlu0 %1600
        %v1604 = vsel %vm1094, %v1596, 0
        %v1607 = vsel %vm1094, %v1597, 0
        %v1610 = vsel %vm1136, %v1601, 0
        %1612 = vmatprep.subr.bf16.mxu0 0
        %1613 = vmatpush1.bf16.msra.mxu0 %v1599
        %1614 = vmatprep.subr.bf16.mxu0 0
        %1615 = vmatpush1.bf16.msra.mxu0 %v1610
        %1616 = vmatprep.subr.bf16.mxu0 0
        %1617 = vmatpush1.bf16.msra.mxu0 0
        %1618 = vmatprep.subr.bf16.mxu0 0
        %1619 = vmatpush1.bf16.msra.mxu0 0
        %1620 = vmatprep.subr.bf16.mxu0 0
        %1621 = vmatpush1.bf16.msra.mxu0 0
        %1622 = vmatprep.subr.bf16.mxu0 0
        %1623 = vmatpush1.bf16.msra.mxu0 0
        %1624 = vmatprep.subr.bf16.mxu0 0
        %1625 = vmatpush1.bf16.msra.mxu0 0
        %1626 = vmatprep.subr.bf16.mxu0 0
        %1627 = vmatpush1.bf16.msra.mxu0 0
        %1628 = vmatprep.subr.bf16.mxu0 0
        %1629 = vmatpush1.bf16.msra.mxu0 0
        %1630 = vmatprep.subr.bf16.mxu0 0
        %1631 = vmatpush1.bf16.msra.mxu0 0
        %1632 = vmatprep.subr.bf16.mxu0 0
        %1633 = vmatpush1.bf16.msra.mxu0 0
        %1634 = vmatprep.subr.bf16.mxu0 0
        %1635 = vmatpush1.bf16.msra.mxu0 0
        %1636 = vmatprep.subr.bf16.mxu0 0
        %1637 = vmatpush1.bf16.msra.mxu0 0
        %1638 = vmatprep.subr.bf16.mxu0 0
        %1639 = vmatpush1.bf16.msra.mxu0 0
        %1640 = vmatprep.subr.bf16.mxu0 0
        %1641 = vmatpush1.bf16.msra.mxu0 0
        %1642 = vmatprep.subr.bf16.mxu0 0
        %1643 = vmatpush1.bf16.msra.mxu0 0
        %1644 = vmatprep.mubr.bf16.mxu0 0
        %1645 = vmatmul.mubr.bf16.gmra.mrb[0].mxu0 %v1604
        %v1646 = vpop.f32.mrb[0].mxu0
        %v1647 = vadd.f32 0.0, %v1646
        %v1648 = vpop.f32.mrb[0].mxu0
        %v1649 = vpop.f32.mrb[0].mxu0
        %v1650 = vadd.f32 0.0, %v1649
        %v1651 = vpop.f32.mrb[0].mxu0
        %1652 = vmatprep.mubr.bf16.mxu0 0
        %1653 = vmatmul.mubr.bf16.gmra.mrb[0].mxu0 %v1607
        %v1654 = vpop.f32.mrb[0].mxu0
        %v1655 = vadd.f32 0.0, %v1654
        %v1656 = vpop.f32.mrb[0].mxu0
        %v1657 = vpop.f32.mrb[0].mxu0
        %v1658 = vpop.f32.mrb[0].mxu0
        %1659 = vdwg.mxu0
        %v1660 = vpack.c.bf16 %v1650, %v1647
        %v1661 = vpack.c.bf16 %v1655, %v1655
        %v1666 = vunpack.c.l.b16 %v1025
        %v1667 = vunpack.c.l.b16 %v1026
        %v1668 = vunpack.c.l.b16 %v1027
        %v1669 = vunpack.c.l.b16 %v1028
        %v1670 = vpack.c.b16 %v1667, %v1666
        %v1671 = vpack.c.b16 %v1669, %v1668
        %v1675 = vsel %vm1033, %v1660, 0
        %v1678 = vsel %vm1033, %v1661, 0
        %1680 = vmatprep.subr.bf16.mxu0 0
        %1681 = vmatpush1.bf16.msra.mxu0 %v1670
        %1682 = vmatprep.subr.bf16.mxu0 0
        %1683 = vmatpush1.bf16.msra.mxu0 %v1671
        %1684 = vmatprep.subr.bf16.mxu0 0
        %1685 = vmatpush1.bf16.msra.mxu0 0
        %1686 = vmatprep.subr.bf16.mxu0 0
        %1687 = vmatpush1.bf16.msra.mxu0 0
        %1688 = vmatprep.subr.bf16.mxu0 0
        %1689 = vmatpush1.bf16.msra.mxu0 0
        %1690 = vmatprep.subr.bf16.mxu0 0
        %1691 = vmatpush1.bf16.msra.mxu0 0
        %1692 = vmatprep.subr.bf16.mxu0 0
        %1693 = vmatpush1.bf16.msra.mxu0 0
        %1694 = vmatprep.subr.bf16.mxu0 0
        %1695 = vmatpush1.bf16.msra.mxu0 0
        %1696 = vmatprep.subr.bf16.mxu0 0
        %1697 = vmatpush1.bf16.msra.mxu0 0
        %1698 = vmatprep.subr.bf16.mxu0 0
        %1699 = vmatpush1.bf16.msra.mxu0 0
        %1700 = vmatprep.subr.bf16.mxu0 0
        %1701 = vmatpush1.bf16.msra.mxu0 0
        %1702 = vmatprep.subr.bf16.mxu0 0
        %1703 = vmatpush1.bf16.msra.mxu0 0
        %1704 = vmatprep.subr.bf16.mxu0 0
        %1705 = vmatpush1.bf16.msra.mxu0 0
        %1706 = vmatprep.subr.bf16.mxu0 0
        %1707 = vmatpush1.bf16.msra.mxu0 0
        %1708 = vmatprep.subr.bf16.mxu0 0
        %1709 = vmatpush1.bf16.msra.mxu0 0
        %1710 = vmatprep.subr.bf16.mxu0 0
        %1711 = vmatpush1.bf16.msra.mxu0 0
        %1712 = vmatprep.mubr.bf16.mxu0 0
        %1713 = vmatmul.mubr.bf16.gmra.mrb[0].mxu0 %v1675
        %v1714 = vpop.f32.mrb[0].mxu0
        %v1715 = vadd.f32 0.0, %v1714
        %v1716 = vpop.f32.mrb[0].mxu0
        %v1717 = vpop.f32.mrb[0].mxu0
        %v1718 = vadd.f32 0.0, %v1717
        %v1719 = vpop.f32.mrb[0].mxu0
        %1720 = vmatprep.mubr.bf16.mxu0 0
        %1721 = vmatmul.mubr.bf16.gmra.mrb[0].mxu0 %v1678
        %v1722 = vpop.f32.mrb[0].mxu0
        %v1723 = vadd.f32 0.0, %v1722
        %v1724 = vpop.f32.mrb[0].mxu0
        %v1725 = vpop.f32.mrb[0].mxu0
        %v1726 = vpop.f32.mrb[0].mxu0
        %1727 = vdwg.mxu0
        %v1728 = vadd.f32 %v1482, %v1715
        %v1729 = vadd.f32 %v1485, %v1718
        %v1730 = vadd.f32 %v1490, %v1723
        %1731 = vrot.lane.b32.xlu0 %v1002, 32
        %v1732 = vpop.permute.xlu0 %1731
        %1733 = vrot.lane.b32.xlu0 %v1003, 32
        %v1734 = vpop.permute.xlu0 %1733
        %1735 = vrot.lane.b32.xlu0 %v1013, 32
        %v1736 = vpop.permute.xlu0 %1735
        %1737 = vrot.lane.b32.xlu0 %v1014, 32
        %v1738 = vpop.permute.xlu0 %1737
        %v1740 = vsel %vm1033, %v1732, 0
        %v1743 = vsel %vm1033, %v1734, 0
        %v1746 = vsel %vm1033, %v1736, 0
        %v1749 = vsel %vm1033, %v1738, 0
        %1751 = vmatprep.subr.bf16.mxu0 0
        %1752 = vmatpush1.bf16.xpose.msra.mxu0 %v1746
        %1753 = vmatprep.subr.bf16.mxu0 0
        %1754 = vmatpush1.bf16.xpose.msra.mxu0 %v1749
        %1755 = vmatprep.subr.bf16.mxu0 0
        %1756 = vmatpush1.bf16.xpose.msra.mxu0 0
        %1757 = vmatprep.subr.bf16.mxu0 0
        %1758 = vmatpush1.bf16.xpose.msra.mxu0 0
        %1759 = vmatprep.subr.bf16.mxu0 0
        %1760 = vmatpush1.bf16.xpose.msra.mxu0 0
        %1761 = vmatprep.subr.bf16.mxu0 0
        %1762 = vmatpush1.bf16.xpose.msra.mxu0 0
        %1763 = vmatprep.subr.bf16.mxu0 0
        %1764 = vmatpush1.bf16.xpose.msra.mxu0 0
        %1765 = vmatprep.subr.bf16.mxu0 0
        %1766 = vmatpush1.bf16.xpose.msra.mxu0 0
        %1767 = vmatprep.subr.bf16.mxu0 0
        %1768 = vmatpush1.bf16.xpose.msra.mxu0 0
        %1769 = vmatprep.subr.bf16.mxu0 0
        %1770 = vmatpush1.bf16.xpose.msra.mxu0 0
        %1771 = vmatprep.subr.bf16.mxu0 0
        %1772 = vmatpush1.bf16.xpose.msra.mxu0 0
        %1773 = vmatprep.subr.bf16.mxu0 0
        %1774 = vmatpush1.bf16.xpose.msra.mxu0 0
        %1775 = vmatprep.subr.bf16.mxu0 0
        %1776 = vmatpush1.bf16.xpose.msra.mxu0 0
        %1777 = vmatprep.subr.bf16.mxu0 0
        %1778 = vmatpush1.bf16.xpose.msra.mxu0 0
        %1779 = vmatprep.subr.bf16.mxu0 0
        %1780 = vmatpush1.bf16.xpose.msra.mxu0 0
        %1781 = vmatprep.subr.bf16.mxu0 0
        %1782 = vmatpush1.bf16.xpose.msra.mxu0 0
        %1783 = vmatprep.mubr.bf16.mxu0 0
        %1784 = vmatmul.mubr.bf16.gmra.mrb[0].mxu0 %v1740
        %v1785 = vpop.f32.mrb[0].mxu0
        %v1786 = vadd.f32 %v550, %v1785
        %v1787 = vpop.f32.mrb[0].mxu0
        %v1788 = vpop.f32.mrb[0].mxu0
        %v1789 = vadd.f32 %v551, %v1788
        %v1790 = vpop.f32.mrb[0].mxu0
        %1791 = vmatprep.mubr.bf16.mxu0 0
        %1792 = vmatmul.mubr.bf16.gmra.mrb[0].mxu0 %v1743
        %v1793 = vpop.f32.mrb[0].mxu0
        %v1794 = vadd.f32 %v552, %v1793
        %v1795 = vpop.f32.mrb[0].mxu0
        %v1796 = vpop.f32.mrb[0].mxu0
        %v1797 = vpop.f32.mrb[0].mxu0
        %1798 = vdwg.mxu0
        %v1799 = vsel %vm1094, %v1786, -inf
        %1800 = vmax.xlane.f32.xlu0 %v1799
        %v1801 = vpop.xlane.xlu0 %1800
        %v1802 = vsel %vm1094, %v1789, -inf
        %1803 = vmax.xlane.f32.xlu0 %v1802
        %v1804 = vpop.xlane.xlu0 %1803
        %v1805 = vsel %vm1094, %v1794, -inf
        %1806 = vmax.xlane.f32.xlu0 %v1805
        %v1807 = vpop.xlane.xlu0 %1806
        %v1808 = vsub.f32 %v1786, %v1801
        %v1809 = vsub.f32 %v1789, %v1804
        %v1810 = vsub.f32 %v1794, %v1807
        %v1811 = vmul.f32 %v1808, 1.442695
        %v1812 = vpow.pop %v1811
        %v1813 = vmul.f32 %v1809, 1.442695
        %v1814 = vpow.pop %v1813
        %v1815 = vmul.f32 %v1810, 1.442695
        %v1816 = vpow.pop %v1815
        %v1817 = vsel %vm1094, %v1812, 0.0
        %1818 = vadd.xlane.f32.xlu0 %v1817
        %v1819 = vpop.xlane.xlu0 %1818
        %v1820 = vsel %vm1094, %v1814, 0.0
        %1821 = vadd.xlane.f32.xlu0 %v1820
        %v1822 = vpop.xlane.xlu0 %1821
        %v1823 = vsel %vm1094, %v1816, 0.0
        %1824 = vadd.xlane.f32.xlu0 %v1823
        %v1825 = vpop.xlane.xlu0 %1824
        %v1826 = vrcp.pop %v1819
        %v1827 = vrcp.pop %v1822
        %v1828 = vrcp.pop %v1825
        %v1829 = vmul.f32 %v1812, %v1826
        %v1830 = vmul.f32 %v1814, %v1827
        %v1831 = vmul.f32 %v1816, %v1828
        %v1832 = vpack.c.bf16 %v1830, %v1829
        %v1833 = vpack.c.bf16 %v1831, %v1831
        %1834 = vrot.lane.b32.xlu0 %v1015, 32
        %v1835 = vpop.permute.xlu0 %1834
        %1836 = vrot.lane.b32.xlu0 %v1016, 32
        %v1837 = vpop.permute.xlu0 %1836
        %v1840 = vsel %vm1094, %v1832, 0
        %v1843 = vsel %vm1094, %v1833, 0
        %v1846 = vsel %vm1136, %v1837, 0
        %1848 = vmatprep.subr.bf16.mxu0 0
        %1849 = vmatpush1.bf16.msra.mxu0 %v1835
        %1850 = vmatprep.subr.bf16.mxu0 0
        %1851 = vmatpush1.bf16.msra.mxu0 %v1846
        %1852 = vmatprep.subr.bf16.mxu0 0
        %1853 = vmatpush1.bf16.msra.mxu0 0
        %1854 = vmatprep.subr.bf16.mxu0 0
        %1855 = vmatpush1.bf16.msra.mxu0 0
        %1856 = vmatprep.subr.bf16.mxu0 0
        %1857 = vmatpush1.bf16.msra.mxu0 0
        %1858 = vmatprep.subr.bf16.mxu0 0
        %1859 = vmatpush1.bf16.msra.mxu0 0
        %1860 = vmatprep.subr.bf16.mxu0 0
        %1861 = vmatpush1.bf16.msra.mxu0 0
        %1862 = vmatprep.subr.bf16.mxu0 0
        %1863 = vmatpush1.bf16.msra.mxu0 0
        %1864 = vmatprep.subr.bf16.mxu0 0
        %1865 = vmatpush1.bf16.msra.mxu0 0
        %1866 = vmatprep.subr.bf16.mxu0 0
        %1867 = vmatpush1.bf16.msra.mxu0 0
        %1868 = vmatprep.subr.bf16.mxu0 0
        %1869 = vmatpush1.bf16.msra.mxu0 0
        %1870 = vmatprep.subr.bf16.mxu0 0
        %1871 = vmatpush1.bf16.msra.mxu0 0
        %1872 = vmatprep.subr.bf16.mxu0 0
        %1873 = vmatpush1.bf16.msra.mxu0 0
        %1874 = vmatprep.subr.bf16.mxu0 0
        %1875 = vmatpush1.bf16.msra.mxu0 0
        %1876 = vmatprep.subr.bf16.mxu0 0
        %1877 = vmatpush1.bf16.msra.mxu0 0
        %1878 = vmatprep.subr.bf16.mxu0 0
        %1879 = vmatpush1.bf16.msra.mxu0 0
        %1880 = vmatprep.mubr.bf16.mxu0 0
        %1881 = vmatmul.mubr.bf16.gmra.mrb[0].mxu0 %v1840
        %v1882 = vpop.f32.mrb[0].mxu0
        %v1883 = vadd.f32 0.0, %v1882
        %v1884 = vpop.f32.mrb[0].mxu0
        %v1885 = vpop.f32.mrb[0].mxu0
        %v1886 = vadd.f32 0.0, %v1885
        %v1887 = vpop.f32.mrb[0].mxu0
        %1888 = vmatprep.mubr.bf16.mxu0 0
        %1889 = vmatmul.mubr.bf16.gmra.mrb[0].mxu0 %v1843
        %v1890 = vpop.f32.mrb[0].mxu0
        %v1891 = vadd.f32 0.0, %v1890
        %v1892 = vpop.f32.mrb[0].mxu0
        %v1893 = vpop.f32.mrb[0].mxu0
        %v1894 = vpop.f32.mrb[0].mxu0
        %1895 = vdwg.mxu0
        %v1896 = vpack.c.bf16 %v1886, %v1883
        %v1897 = vpack.c.bf16 %v1891, %v1891
        %v1902 = vunpack.c.l.b16 %v1029
        %v1903 = vunpack.c.l.b16 %v1030
        %v1904 = vunpack.c.l.b16 %v1031
        %v1905 = vunpack.c.l.b16 %v1032
        %v1906 = vpack.c.b16 %v1903, %v1902
        %v1907 = vpack.c.b16 %v1905, %v1904
        %v1911 = vsel %vm1033, %v1896, 0
        %v1914 = vsel %vm1033, %v1897, 0
        %1916 = vmatprep.subr.bf16.mxu0 0
        %1917 = vmatpush1.bf16.msra.mxu0 %v1906
        %1918 = vmatprep.subr.bf16.mxu0 0
        %1919 = vmatpush1.bf16.msra.mxu0 %v1907
        %1920 = vmatprep.subr.bf16.mxu0 0
        %1921 = vmatpush1.bf16.msra.mxu0 0
        %1922 = vmatprep.subr.bf16.mxu0 0
        %1923 = vmatpush1.bf16.msra.mxu0 0
        %1924 = vmatprep.subr.bf16.mxu0 0
        %1925 = vmatpush1.bf16.msra.mxu0 0
        %1926 = vmatprep.subr.bf16.mxu0 0
        %1927 = vmatpush1.bf16.msra.mxu0 0
        %1928 = vmatprep.subr.bf16.mxu0 0
        %1929 = vmatpush1.bf16.msra.mxu0 0
        %1930 = vmatprep.subr.bf16.mxu0 0
        %1931 = vmatpush1.bf16.msra.mxu0 0
        %1932 = vmatprep.subr.bf16.mxu0 0
        %1933 = vmatpush1.bf16.msra.mxu0 0
        %1934 = vmatprep.subr.bf16.mxu0 0
        %1935 = vmatpush1.bf16.msra.mxu0 0
        %1936 = vmatprep.subr.bf16.mxu0 0
        %1937 = vmatpush1.bf16.msra.mxu0 0
        %1938 = vmatprep.subr.bf16.mxu0 0
        %1939 = vmatpush1.bf16.msra.mxu0 0
        %1940 = vmatprep.subr.bf16.mxu0 0
        %1941 = vmatpush1.bf16.msra.mxu0 0
        %1942 = vmatprep.subr.bf16.mxu0 0
        %1943 = vmatpush1.bf16.msra.mxu0 0
        %1944 = vmatprep.subr.bf16.mxu0 0
        %1945 = vmatpush1.bf16.msra.mxu0 0
        %1946 = vmatprep.subr.bf16.mxu0 0
        %1947 = vmatpush1.bf16.msra.mxu0 0
        %1948 = vmatprep.mubr.bf16.mxu0 0
        %1949 = vmatmul.mubr.bf16.gmra.mrb[0].mxu0 %v1911
        %v1950 = vpop.f32.mrb[0].mxu0
        %v1951 = vadd.f32 0.0, %v1950
        %v1952 = vpop.f32.mrb[0].mxu0
        %v1953 = vpop.f32.mrb[0].mxu0
        %v1954 = vadd.f32 0.0, %v1953
        %v1955 = vpop.f32.mrb[0].mxu0
        %1956 = vmatprep.mubr.bf16.mxu0 0
        %1957 = vmatmul.mubr.bf16.gmra.mrb[0].mxu0 %v1914
        %v1958 = vpop.f32.mrb[0].mxu0
        %v1959 = vadd.f32 0.0, %v1958
        %v1960 = vpop.f32.mrb[0].mxu0
        %v1961 = vpop.f32.mrb[0].mxu0
        %v1962 = vpop.f32.mrb[0].mxu0
        %1963 = vdwg.mxu0
        %v1964 = vadd.f32 %v1728, %v1951
        %v1965 = vadd.f32 %v1729, %v1954
        %v1966 = vadd.f32 %v1730, %v1959
        %v1967 = vadd.f32 %v532, %v1964
        %v1968 = vadd.f32 %v533, %v1965
        %v1969 = vadd.f32 %v534, %v1966
        %v1970 = vld [vmem:[%s7] sm:$0x1]
        %v1971 = vmul.f32 %v1967, %v1967
        %v1972 = vmul.f32 %v1968, %v1968
        %v1973 = vmul.f32 %v1969, %v1969
        %1974 = vadd.xlane.f32.xlu0 %v1971
        %v1975 = vpop.xlane.xlu0 %1974
        %1976 = vadd.xlane.f32.xlu0 %v1972
        %v1977 = vpop.xlane.xlu0 %1976
        %1978 = vadd.xlane.f32.xlu0 %v1973
        %v1979 = vpop.xlane.xlu0 %1978
        %v1980 = vmul.f32 %v1975, %v563
        %v1981 = vmul.f32 %v1977, %v563
        %v1982 = vmul.f32 %v1979, %v563
        %v1983 = vadd.f32 %v1980, 1e-05
        %v1984 = vadd.f32 %v1981, 1e-05
        %v1985 = vadd.f32 %v1982, 1e-05
        %v1986 = vrsqrt.pop %v1983
        %v1987 = vrsqrt.pop %v1984
        %v1988 = vrsqrt.pop %v1985
        %v1989 = vmul.f32 %v1967, %v1986
        %v1990 = vmul.f32 %v1968, %v1987
        %v1991 = vmul.f32 %v1969, %v1988
        %v1993 = vlaneseq
        %v1994 = vshrl.u32 %v1993, 7
        %v1995 = vsub.s32 0, %v1994
        %v1996 = vrot.slane %v1970, %v1995
        %v1998 = vmul.f32 %v1989, %v1996
        %v1999 = vmul.f32 %v1990, %v1996
        %v2000 = vmul.f32 %v1991, %v1996
        %v2001 = vpack.c.bf16 %v1999, %v1998
        %v2002 = vpack.c.bf16 %v2000, %v2000
        %v2003 = vld [vmem:[%s8] sm:$0xff]
        %v2004 = vld [vmem:[%s8 + $0x8] sm:$0xff]
        %v2005 = vld [vmem:[%s8 + $0x10] sm:$0xff]
        %v2006 = vld [vmem:[%s8 + $0x18] sm:$0xff]
        %v2007 = vld [vmem:[%s8 + $0x20] sm:$0xff]
        %v2008 = vld [vmem:[%s8 + $0x28] sm:$0xff]
        %v2009 = vld [vmem:[%s8 + $0x30] sm:$0xff]
        %v2010 = vld [vmem:[%s8 + $0x38] sm:$0xff]
        %v2011 = vld [vmem:[%s8 + $0x40] sm:$0xff]
        %v2012 = vld [vmem:[%s8 + $0x48] sm:$0xff]
        %v2013 = vld [vmem:[%s8 + $0x50] sm:$0xff]
        %v2014 = vld [vmem:[%s8 + $0x58] sm:$0xff]
        %v2015 = vld [vmem:[%s8 + $0x60] sm:$0xff]
        %v2016 = vld [vmem:[%s8 + $0x68] sm:$0xff]
        %v2017 = vld [vmem:[%s8 + $0x70] sm:$0xff]
        %v2018 = vld [vmem:[%s8 + $0x78] sm:$0xff]
        %v2019 = vld [vmem:[%s8 + $0x80] sm:$0xff]
        %v2020 = vld [vmem:[%s8 + $0x88] sm:$0xff]
        %v2021 = vld [vmem:[%s8 + $0x90] sm:$0xff]
        %v2022 = vld [vmem:[%s8 + $0x98] sm:$0xff]
        %v2023 = vld [vmem:[%s8 + $0xa0] sm:$0xff]
        %v2024 = vld [vmem:[%s8 + $0xa8] sm:$0xff]
        %v2025 = vld [vmem:[%s8 + $0xb0] sm:$0xff]
        %v2026 = vld [vmem:[%s8 + $0xb8] sm:$0xff]
        %v2027 = vld [vmem:[%s8 + $0xc0] sm:$0xff]
        %v2028 = vld [vmem:[%s8 + $0xc8] sm:$0xff]
        %v2029 = vld [vmem:[%s8 + $0xd0] sm:$0xff]
        %v2030 = vld [vmem:[%s8 + $0xd8] sm:$0xff]
        %v2031 = vld [vmem:[%s8 + $0xe0] sm:$0xff]
        %v2032 = vld [vmem:[%s8 + $0xe8] sm:$0xff]
        %v2033 = vld [vmem:[%s8 + $0xf0] sm:$0xff]
        %v2034 = vld [vmem:[%s8 + $0xf8] sm:$0xff]
        %v2067 = vunpack.c.l.b16 %v2003
        %v2068 = vunpack.c.h.b16 %v2003
        %v2069 = vunpack.c.l.b16 %v2004
        %v2070 = vunpack.c.h.b16 %v2004
        %v2071 = vunpack.c.l.b16 %v2005
        %v2072 = vunpack.c.h.b16 %v2005
        %v2073 = vunpack.c.l.b16 %v2006
        %v2074 = vunpack.c.h.b16 %v2006
        %v2075 = vunpack.c.l.b16 %v2007
        %v2076 = vunpack.c.h.b16 %v2007
        %v2077 = vunpack.c.l.b16 %v2008
        %v2078 = vunpack.c.h.b16 %v2008
        %v2079 = vunpack.c.l.b16 %v2009
        %v2080 = vunpack.c.h.b16 %v2009
        %v2081 = vunpack.c.l.b16 %v2010
        %v2082 = vunpack.c.h.b16 %v2010
        %v2083 = vunpack.c.l.b16 %v2011
        %v2084 = vunpack.c.h.b16 %v2011
        %v2085 = vunpack.c.l.b16 %v2012
        %v2086 = vunpack.c.h.b16 %v2012
        %v2087 = vunpack.c.l.b16 %v2013
        %v2088 = vunpack.c.h.b16 %v2013
        %v2089 = vunpack.c.l.b16 %v2014
        %v2090 = vunpack.c.h.b16 %v2014
        %v2091 = vunpack.c.l.b16 %v2015
        %v2092 = vunpack.c.h.b16 %v2015
        %v2093 = vunpack.c.l.b16 %v2016
        %v2094 = vunpack.c.h.b16 %v2016
        %v2095 = vunpack.c.l.b16 %v2017
        %v2096 = vunpack.c.h.b16 %v2017
        %v2097 = vunpack.c.l.b16 %v2018
        %v2098 = vunpack.c.h.b16 %v2018
        %v2099 = vunpack.c.l.b16 %v2019
        %v2100 = vunpack.c.h.b16 %v2019
        %v2101 = vunpack.c.l.b16 %v2020
        %v2102 = vunpack.c.h.b16 %v2020
        %v2103 = vunpack.c.l.b16 %v2021
        %v2104 = vunpack.c.h.b16 %v2021
        %v2105 = vunpack.c.l.b16 %v2022
        %v2106 = vunpack.c.h.b16 %v2022
        %v2107 = vunpack.c.l.b16 %v2023
        %v2108 = vunpack.c.h.b16 %v2023
        %v2109 = vunpack.c.l.b16 %v2024
        %v2110 = vunpack.c.h.b16 %v2024
        %v2111 = vunpack.c.l.b16 %v2025
        %v2112 = vunpack.c.h.b16 %v2025
        %v2113 = vunpack.c.l.b16 %v2026
        %v2114 = vunpack.c.h.b16 %v2026
        %v2115 = vunpack.c.l.b16 %v2027
        %v2116 = vunpack.c.h.b16 %v2027
        %v2117 = vunpack.c.l.b16 %v2028
        %v2118 = vunpack.c.h.b16 %v2028
        %v2119 = vunpack.c.l.b16 %v2029
        %v2120 = vunpack.c.h.b16 %v2029
        %v2121 = vunpack.c.l.b16 %v2030
        %v2122 = vunpack.c.h.b16 %v2030
        %v2123 = vunpack.c.l.b16 %v2031
        %v2124 = vunpack.c.h.b16 %v2031
        %v2125 = vunpack.c.l.b16 %v2032
        %v2126 = vunpack.c.h.b16 %v2032
        %v2127 = vunpack.c.l.b16 %v2033
        %v2128 = vunpack.c.h.b16 %v2033
        %v2129 = vunpack.c.l.b16 %v2034
        %v2130 = vunpack.c.h.b16 %v2034
        %v2131 = vpack.c.b16 %v2071, %v2067
        %v2132 = vpack.c.b16 %v2072, %v2068
        %v2133 = vpack.c.b16 %v2073, %v2069
        %v2134 = vpack.c.b16 %v2074, %v2070
        %v2135 = vpack.c.b16 %v2079, %v2075
        %v2136 = vpack.c.b16 %v2080, %v2076
        %v2137 = vpack.c.b16 %v2081, %v2077
        %v2138 = vpack.c.b16 %v2082, %v2078
        %v2139 = vpack.c.b16 %v2087, %v2083
        %v2140 = vpack.c.b16 %v2088, %v2084
        %v2141 = vpack.c.b16 %v2089, %v2085
        %v2142 = vpack.c.b16 %v2090, %v2086
        %v2143 = vpack.c.b16 %v2095, %v2091
        %v2144 = vpack.c.b16 %v2096, %v2092
        %v2145 = vpack.c.b16 %v2097, %v2093
        %v2146 = vpack.c.b16 %v2098, %v2094
        %v2147 = vpack.c.b16 %v2103, %v2099
        %v2148 = vpack.c.b16 %v2104, %v2100
        %v2149 = vpack.c.b16 %v2105, %v2101
        %v2150 = vpack.c.b16 %v2106, %v2102
        %v2151 = vpack.c.b16 %v2111, %v2107
        %v2152 = vpack.c.b16 %v2112, %v2108
        %v2153 = vpack.c.b16 %v2113, %v2109
        %v2154 = vpack.c.b16 %v2114, %v2110
        %v2155 = vpack.c.b16 %v2119, %v2115
        %v2156 = vpack.c.b16 %v2120, %v2116
        %v2157 = vpack.c.b16 %v2121, %v2117
        %v2158 = vpack.c.b16 %v2122, %v2118
        %v2159 = vpack.c.b16 %v2127, %v2123
        %v2160 = vpack.c.b16 %v2128, %v2124
        %v2161 = vpack.c.b16 %v2129, %v2125
        %v2162 = vpack.c.b16 %v2130, %v2126
        %2195 = vmatprep.subr.bf16.mxu0 %v2132
        %2196 = vmatpush1.bf16.msra.mxu0 %v2131
        %2197 = vmatprep.subr.bf16.mxu0 %v2136
        %2198 = vmatpush1.bf16.msra.mxu0 %v2135
        %2199 = vmatprep.subr.bf16.mxu0 %v2140
        %2200 = vmatpush1.bf16.msra.mxu0 %v2139
        %2201 = vmatprep.subr.bf16.mxu0 %v2144
        %2202 = vmatpush1.bf16.msra.mxu0 %v2143
        %2203 = vmatprep.subr.bf16.mxu0 %v2148
        %2204 = vmatpush1.bf16.msra.mxu0 %v2147
        %2205 = vmatprep.subr.bf16.mxu0 %v2152
        %2206 = vmatpush1.bf16.msra.mxu0 %v2151
        %2207 = vmatprep.subr.bf16.mxu0 %v2156
        %2208 = vmatpush1.bf16.msra.mxu0 %v2155
        %2209 = vmatprep.subr.bf16.mxu0 %v2160
        %2210 = vmatpush1.bf16.msra.mxu0 %v2159
        %2211 = vmatprep.subr.bf16.mxu0 0
        %2212 = vmatpush1.bf16.msra.mxu0 0
        %2213 = vmatprep.subr.bf16.mxu0 0
        %2214 = vmatpush1.bf16.msra.mxu0 0
        %2215 = vmatprep.subr.bf16.mxu0 0
        %2216 = vmatpush1.bf16.msra.mxu0 0
        %2217 = vmatprep.subr.bf16.mxu0 0
        %2218 = vmatpush1.bf16.msra.mxu0 0
        %2219 = vmatprep.subr.bf16.mxu0 0
        %2220 = vmatpush1.bf16.msra.mxu0 0
        %2221 = vmatprep.subr.bf16.mxu0 0
        %2222 = vmatpush1.bf16.msra.mxu0 0
        %2223 = vmatprep.subr.bf16.mxu0 0
        %2224 = vmatpush1.bf16.msra.mxu0 0
        %2225 = vmatprep.subr.bf16.mxu0 0
        %2226 = vmatpush1.bf16.msra.mxu0 0
        %2227 = vmatprep.mubr.bf16.mxu0 0
        %2228 = vmatmul.mubr.bf16.gmra.mrb[0].mxu0 %v2001
        %v2229 = vpop.f32.mrb[0].mxu0
        %v2230 = vadd.f32 0.0, %v2229
        %v2231 = vpop.f32.mrb[0].mxu0
        %v2232 = vadd.f32 0.0, %v2231
        %v2233 = vpop.f32.mrb[0].mxu0
        %v2234 = vadd.f32 0.0, %v2233
        %v2235 = vpop.f32.mrb[0].mxu0
        %v2236 = vadd.f32 0.0, %v2235
        %2237 = vmatprep.mubr.bf16.mxu0 0
        %2238 = vmatmul.mubr.bf16.gmra.mrb[0].mxu0 %v2002
        %v2239 = vpop.f32.mrb[0].mxu0
        %v2240 = vadd.f32 0.0, %v2239
        %v2241 = vpop.f32.mrb[0].mxu0
        %v2242 = vadd.f32 0.0, %v2241
        %v2243 = vpop.f32.mrb[0].mxu0
        %v2244 = vpop.f32.mrb[0].mxu0
        %2245 = vdwg.mxu0
        %2246 = vmatprep.subr.bf16.mxu0 %v2134
        %2247 = vmatpush1.bf16.msra.mxu0 %v2133
        %2248 = vmatprep.subr.bf16.mxu0 %v2138
        %2249 = vmatpush1.bf16.msra.mxu0 %v2137
        %2250 = vmatprep.subr.bf16.mxu0 %v2142
        %2251 = vmatpush1.bf16.msra.mxu0 %v2141
        %2252 = vmatprep.subr.bf16.mxu0 %v2146
        %2253 = vmatpush1.bf16.msra.mxu0 %v2145
        %2254 = vmatprep.subr.bf16.mxu0 %v2150
        %2255 = vmatpush1.bf16.msra.mxu0 %v2149
        %2256 = vmatprep.subr.bf16.mxu0 %v2154
        %2257 = vmatpush1.bf16.msra.mxu0 %v2153
        %2258 = vmatprep.subr.bf16.mxu0 %v2158
        %2259 = vmatpush1.bf16.msra.mxu0 %v2157
        %2260 = vmatprep.subr.bf16.mxu0 %v2162
        %2261 = vmatpush1.bf16.msra.mxu0 %v2161
        %2262 = vmatprep.subr.bf16.mxu0 0
        %2263 = vmatpush1.bf16.msra.mxu0 0
        %2264 = vmatprep.subr.bf16.mxu0 0
        %2265 = vmatpush1.bf16.msra.mxu0 0
        %2266 = vmatprep.subr.bf16.mxu0 0
        %2267 = vmatpush1.bf16.msra.mxu0 0
        %2268 = vmatprep.subr.bf16.mxu0 0
        %2269 = vmatpush1.bf16.msra.mxu0 0
        %2270 = vmatprep.subr.bf16.mxu0 0
        %2271 = vmatpush1.bf16.msra.mxu0 0
        %2272 = vmatprep.subr.bf16.mxu0 0
        %2273 = vmatpush1.bf16.msra.mxu0 0
        %2274 = vmatprep.subr.bf16.mxu0 0
        %2275 = vmatpush1.bf16.msra.mxu0 0
        %2276 = vmatprep.subr.bf16.mxu0 0
        %2277 = vmatpush1.bf16.msra.mxu0 0
        %2278 = vmatprep.mubr.bf16.mxu0 0
        %2279 = vmatmul.mubr.bf16.gmra.mrb[0].mxu0 %v2001
        %v2280 = vpop.f32.mrb[0].mxu0
        %v2281 = vadd.f32 0.0, %v2280
        %v2282 = vpop.f32.mrb[0].mxu0
        %v2283 = vadd.f32 0.0, %v2282
        %v2284 = vpop.f32.mrb[0].mxu0
        %v2285 = vadd.f32 0.0, %v2284
        %v2286 = vpop.f32.mrb[0].mxu0
        %v2287 = vadd.f32 0.0, %v2286
        %2288 = vmatprep.mubr.bf16.mxu0 0
        %2289 = vmatmul.mubr.bf16.gmra.mrb[0].mxu0 %v2002
        %v2290 = vpop.f32.mrb[0].mxu0
        %v2291 = vadd.f32 0.0, %v2290
        %v2292 = vpop.f32.mrb[0].mxu0
        %v2293 = vadd.f32 0.0, %v2292
        %v2294 = vpop.f32.mrb[0].mxu0
        %v2295 = vpop.f32.mrb[0].mxu0
        %2296 = vdwg.mxu0
        %v2297 = vxor.u32 %v2230, 2147483648
        %v2298 = vxor.u32 %v2232, 2147483648
        %v2299 = vxor.u32 %v2234, 2147483648
        %v2300 = vxor.u32 %v2236, 2147483648
        %v2301 = vxor.u32 %v2240, 2147483648
        %v2302 = vxor.u32 %v2242, 2147483648
        %v2303 = vmul.f32 %v2297, 1.442695
        %v2304 = vpow.pop %v2303
        %v2305 = vmul.f32 %v2298, 1.442695
        %v2306 = vpow.pop %v2305
        %v2307 = vmul.f32 %v2299, 1.442695
        %v2308 = vpow.pop %v2307
        %v2309 = vmul.f32 %v2300, 1.442695
        %v2310 = vpow.pop %v2309
        %v2311 = vmul.f32 %v2301, 1.442695
        %v2312 = vpow.pop %v2311
        %v2313 = vmul.f32 %v2302, 1.442695
        %v2314 = vpow.pop %v2313
        %v2315 = vadd.f32 %v2304, 1.0
        %v2316 = vadd.f32 %v2306, 1.0
        %v2317 = vadd.f32 %v2308, 1.0
        %v2318 = vadd.f32 %v2310, 1.0
        %v2319 = vadd.f32 %v2312, 1.0
        %v2320 = vadd.f32 %v2314, 1.0
        %v2321 = vrcp.pop %v2315
        %v2322 = vmul.f32 1.0, %v2321
        %v2323 = vrcp.pop %v2316
        %v2324 = vmul.f32 1.0, %v2323
        %v2325 = vrcp.pop %v2317
        %v2326 = vmul.f32 1.0, %v2325
        %v2327 = vrcp.pop %v2318
        %v2328 = vmul.f32 1.0, %v2327
        %v2329 = vrcp.pop %v2319
        %v2330 = vmul.f32 1.0, %v2329
        %v2331 = vrcp.pop %v2320
        %v2332 = vmul.f32 1.0, %v2331
        %v2333 = vmul.f32 %v2230, %v2322
        %v2334 = vmul.f32 %v2232, %v2324
        %v2335 = vmul.f32 %v2234, %v2326
        %v2336 = vmul.f32 %v2236, %v2328
        %v2337 = vmul.f32 %v2240, %v2330
        %v2338 = vmul.f32 %v2242, %v2332
        %v2339 = vmul.f32 %v2333, %v2281
        %v2340 = vmul.f32 %v2334, %v2283
        %v2341 = vmul.f32 %v2335, %v2285
        %v2342 = vmul.f32 %v2336, %v2287
        %v2343 = vmul.f32 %v2337, %v2291
        %v2344 = vmul.f32 %v2338, %v2293
        %v2345 = vpack.c.bf16 %v2341, %v2339
        %v2346 = vpack.c.bf16 %v2342, %v2340
        %v2347 = vpack.c.bf16 %v2343, %v2343
        %v2348 = vpack.c.bf16 %v2344, %v2344
        %v2349 = vld [vmem:[#allocation4] sm:$0xf]
        %v2350 = vld [vmem:[#allocation4 + $0x4] sm:$0xf]
        %v2351 = vld [vmem:[#allocation4 + $0x8] sm:$0xf]
        %v2352 = vld [vmem:[#allocation4 + $0xc] sm:$0xf]
        %v2353 = vld [vmem:[#allocation4 + $0x10] sm:$0xf]
        %v2354 = vld [vmem:[#allocation4 + $0x14] sm:$0xf]
        %v2355 = vld [vmem:[#allocation4 + $0x18] sm:$0xf]
        %v2356 = vld [vmem:[#allocation4 + $0x1c] sm:$0xf]
        %v2357 = vld [vmem:[#allocation4 + $0x20] sm:$0xf]
        %v2358 = vld [vmem:[#allocation4 + $0x24] sm:$0xf]
        %v2359 = vld [vmem:[#allocation4 + $0x28] sm:$0xf]
        %v2360 = vld [vmem:[#allocation4 + $0x2c] sm:$0xf]
        %v2361 = vld [vmem:[#allocation4 + $0x30] sm:$0xf]
        %v2362 = vld [vmem:[#allocation4 + $0x34] sm:$0xf]
        %v2363 = vld [vmem:[#allocation4 + $0x38] sm:$0xf]
        %v2364 = vld [vmem:[#allocation4 + $0x3c] sm:$0xf]
        %v2365 = vld [vmem:[#allocation4 + $0x40] sm:$0xf]
        %v2366 = vld [vmem:[#allocation4 + $0x44] sm:$0xf]
        %v2367 = vld [vmem:[#allocation4 + $0x48] sm:$0xf]
        %v2368 = vld [vmem:[#allocation4 + $0x4c] sm:$0xf]
        %v2369 = vld [vmem:[#allocation4 + $0x50] sm:$0xf]
        %v2370 = vld [vmem:[#allocation4 + $0x54] sm:$0xf]
        %v2371 = vld [vmem:[#allocation4 + $0x58] sm:$0xf]
        %v2372 = vld [vmem:[#allocation4 + $0x5c] sm:$0xf]
        %v2373 = vld [vmem:[#allocation4 + $0x60] sm:$0xf]
        %v2374 = vld [vmem:[#allocation4 + $0x64] sm:$0xf]
        %v2375 = vld [vmem:[#allocation4 + $0x68] sm:$0xf]
        %v2376 = vld [vmem:[#allocation4 + $0x6c] sm:$0xf]
        %v2377 = vld [vmem:[#allocation4 + $0x70] sm:$0xf]
        %v2378 = vld [vmem:[#allocation4 + $0x74] sm:$0xf]
        %v2379 = vld [vmem:[#allocation4 + $0x78] sm:$0xf]
        %v2380 = vld [vmem:[#allocation4 + $0x7c] sm:$0xf]
        %v2413 = vunpack.c.l.b16 %v2349
        %v2414 = vunpack.c.l.b16 %v2350
        %v2415 = vunpack.c.l.b16 %v2351
        %v2416 = vunpack.c.l.b16 %v2352
        %v2417 = vunpack.c.l.b16 %v2353
        %v2418 = vunpack.c.l.b16 %v2354
        %v2419 = vunpack.c.l.b16 %v2355
        %v2420 = vunpack.c.l.b16 %v2356
        %v2421 = vunpack.c.l.b16 %v2357
        %v2422 = vunpack.c.l.b16 %v2358
        %v2423 = vunpack.c.l.b16 %v2359
        %v2424 = vunpack.c.l.b16 %v2360
        %v2425 = vunpack.c.l.b16 %v2361
        %v2426 = vunpack.c.l.b16 %v2362
        %v2427 = vunpack.c.l.b16 %v2363
        %v2428 = vunpack.c.l.b16 %v2364
        %v2429 = vunpack.c.l.b16 %v2365
        %v2430 = vunpack.c.l.b16 %v2366
        %v2431 = vunpack.c.l.b16 %v2367
        %v2432 = vunpack.c.l.b16 %v2368
        %v2433 = vunpack.c.l.b16 %v2369
        %v2434 = vunpack.c.l.b16 %v2370
        %v2435 = vunpack.c.l.b16 %v2371
        %v2436 = vunpack.c.l.b16 %v2372
        %v2437 = vunpack.c.l.b16 %v2373
        %v2438 = vunpack.c.l.b16 %v2374
        %v2439 = vunpack.c.l.b16 %v2375
        %v2440 = vunpack.c.l.b16 %v2376
        %v2441 = vunpack.c.l.b16 %v2377
        %v2442 = vunpack.c.l.b16 %v2378
        %v2443 = vunpack.c.l.b16 %v2379
        %v2444 = vunpack.c.l.b16 %v2380
        %v2445 = vpack.c.b16 %v2414, %v2413
        %v2446 = vpack.c.b16 %v2416, %v2415
        %v2447 = vpack.c.b16 %v2418, %v2417
        %v2448 = vpack.c.b16 %v2420, %v2419
        %v2449 = vpack.c.b16 %v2422, %v2421
        %v2450 = vpack.c.b16 %v2424, %v2423
        %v2451 = vpack.c.b16 %v2426, %v2425
        %v2452 = vpack.c.b16 %v2428, %v2427
        %v2453 = vpack.c.b16 %v2430, %v2429
        %v2454 = vpack.c.b16 %v2432, %v2431
        %v2455 = vpack.c.b16 %v2434, %v2433
        %v2456 = vpack.c.b16 %v2436, %v2435
        %v2457 = vpack.c.b16 %v2438, %v2437
        %v2458 = vpack.c.b16 %v2440, %v2439
        %v2459 = vpack.c.b16 %v2442, %v2441
        %v2460 = vpack.c.b16 %v2444, %v2443
        %2477 = vmatprep.subr.bf16.mxu0 0
        %2478 = vmatpush1.bf16.msra.mxu0 %v2445
        %2479 = vmatprep.subr.bf16.mxu0 0
        %2480 = vmatpush1.bf16.msra.mxu0 %v2446
        %2481 = vmatprep.subr.bf16.mxu0 0
        %2482 = vmatpush1.bf16.msra.mxu0 %v2447
        %2483 = vmatprep.subr.bf16.mxu0 0
        %2484 = vmatpush1.bf16.msra.mxu0 %v2448
        %2485 = vmatprep.subr.bf16.mxu0 0
        %2486 = vmatpush1.bf16.msra.mxu0 %v2449
        %2487 = vmatprep.subr.bf16.mxu0 0
        %2488 = vmatpush1.bf16.msra.mxu0 %v2450
        %2489 = vmatprep.subr.bf16.mxu0 0
        %2490 = vmatpush1.bf16.msra.mxu0 %v2451
        %2491 = vmatprep.subr.bf16.mxu0 0
        %2492 = vmatpush1.bf16.msra.mxu0 %v2452
        %2493 = vmatprep.subr.bf16.mxu0 0
        %2494 = vmatpush1.bf16.msra.mxu0 %v2453
        %2495 = vmatprep.subr.bf16.mxu0 0
        %2496 = vmatpush1.bf16.msra.mxu0 %v2454
        %2497 = vmatprep.subr.bf16.mxu0 0
        %2498 = vmatpush1.bf16.msra.mxu0 %v2455
        %2499 = vmatprep.subr.bf16.mxu0 0
        %2500 = vmatpush1.bf16.msra.mxu0 %v2456
        %2501 = vmatprep.subr.bf16.mxu0 0
        %2502 = vmatpush1.bf16.msra.mxu0 %v2457
        %2503 = vmatprep.subr.bf16.mxu0 0
        %2504 = vmatpush1.bf16.msra.mxu0 %v2458
        %2505 = vmatprep.subr.bf16.mxu0 0
        %2506 = vmatpush1.bf16.msra.mxu0 %v2459
        %2507 = vmatprep.subr.bf16.mxu0 0
        %2508 = vmatpush1.bf16.msra.mxu0 %v2460
        %2509 = vmatprep.mubr.bf16.mxu0 %v2346
        %2510 = vmatmul.mubr.bf16.gmra.mrb[0].mxu0 %v2345
        %v2511 = vpop.f32.mrb[0].mxu0
        %v2512 = vadd.f32 0.0, %v2511
        %v2513 = vpop.f32.mrb[0].mxu0
        %v2514 = vpop.f32.mrb[0].mxu0
        %v2515 = vadd.f32 0.0, %v2514
        %v2516 = vpop.f32.mrb[0].mxu0
        %2517 = vmatprep.mubr.bf16.mxu0 %v2348
        %2518 = vmatmul.mubr.bf16.gmra.mrb[0].mxu0 %v2347
        %v2519 = vpop.f32.mrb[0].mxu0
        %v2520 = vadd.f32 0.0, %v2519
        %v2521 = vpop.f32.mrb[0].mxu0
        %v2522 = vpop.f32.mrb[0].mxu0
        %v2523 = vpop.f32.mrb[0].mxu0
        %2524 = vdwg.mxu0
        %v2525 = vadd.f32 %v1967, %v2512
        %v2526 = vadd.f32 %v1968, %v2515
        %v2527 = vadd.f32 %v1969, %v2520
        %s2528 = scalar_lea.vmem %s4, 1
        %v2529 = vld [vmem:[%s2528] sm:$0x1]
        %v2530 = vmul.f32 %v2525, %v2525
        %v2531 = vmul.f32 %v2526, %v2526
        %v2532 = vmul.f32 %v2527, %v2527
        %2533 = vadd.xlane.f32.xlu0 %v2530
        %v2534 = vpop.xlane.xlu0 %2533
        %2535 = vadd.xlane.f32.xlu0 %v2531
        %v2536 = vpop.xlane.xlu0 %2535
        %2537 = vadd.xlane.f32.xlu0 %v2532
        %v2538 = vpop.xlane.xlu0 %2537
        %v2539 = vmul.f32 %v2534, %v563
        %v2540 = vmul.f32 %v2536, %v563
        %v2541 = vmul.f32 %v2538, %v563
        %v2542 = vadd.f32 %v2539, 1e-05
        %v2543 = vadd.f32 %v2540, 1e-05
        %v2544 = vadd.f32 %v2541, 1e-05
        %v2545 = vrsqrt.pop %v2542
        %v2546 = vrsqrt.pop %v2543
        %v2547 = vrsqrt.pop %v2544
        %v2548 = vmul.f32 %v2525, %v2545
        %v2549 = vmul.f32 %v2526, %v2546
        %v2550 = vmul.f32 %v2527, %v2547
        %v2552 = vlaneseq
        %v2553 = vshrl.u32 %v2552, 7
        %v2554 = vsub.s32 0, %v2553
        %v2555 = vrot.slane %v2529, %v2554
        %v2557 = vmul.f32 %v2548, %v2555
        %v2558 = vmul.f32 %v2549, %v2555
        %v2559 = vmul.f32 %v2550, %v2555
        %v2560 = vpack.c.bf16 %v2558, %v2557
        %v2561 = vpack.c.bf16 %v2559, %v2559
        %s2562 = scalar_lea.vmem %s5, 320
        %v2563 = vld [vmem:[%s2562] sm:$0xff]
        %v2564 = vld [vmem:[%s2562 + $0x8] sm:$0xff]
        %v2565 = vld [vmem:[%s2562 + $0x10] sm:$0xf]
        %v2566 = vld [vmem:[%s2562 + $0x14] sm:$0xff]
        %v2567 = vld [vmem:[%s2562 + $0x1c] sm:$0xff]
        %v2568 = vld [vmem:[%s2562 + $0x24] sm:$0xf]
        %v2569 = vld [vmem:[%s2562 + $0x28] sm:$0xff]
        %v2570 = vld [vmem:[%s2562 + $0x30] sm:$0xff]
        %v2571 = vld [vmem:[%s2562 + $0x38] sm:$0xf]
        %v2572 = vld [vmem:[%s2562 + $0x3c] sm:$0xff]
        %v2573 = vld [vmem:[%s2562 + $0x44] sm:$0xff]
        %v2574 = vld [vmem:[%s2562 + $0x4c] sm:$0xf]
        %v2575 = vld [vmem:[%s2562 + $0x50] sm:$0xff]
        %v2576 = vld [vmem:[%s2562 + $0x58] sm:$0xff]
        %v2577 = vld [vmem:[%s2562 + $0x60] sm:$0xf]
        %v2578 = vld [vmem:[%s2562 + $0x64] sm:$0xff]
        %v2579 = vld [vmem:[%s2562 + $0x6c] sm:$0xff]
        %v2580 = vld [vmem:[%s2562 + $0x74] sm:$0xf]
        %v2581 = vld [vmem:[%s2562 + $0x78] sm:$0xff]
        %v2582 = vld [vmem:[%s2562 + $0x80] sm:$0xff]
        %v2583 = vld [vmem:[%s2562 + $0x88] sm:$0xf]
        %v2584 = vld [vmem:[%s2562 + $0x8c] sm:$0xff]
        %v2585 = vld [vmem:[%s2562 + $0x94] sm:$0xff]
        %v2586 = vld [vmem:[%s2562 + $0x9c] sm:$0xf]
        %v2587 = vld [vmem:[%s2562 + $0xa0] sm:$0xff]
        %v2588 = vld [vmem:[%s2562 + $0xa8] sm:$0xff]
        %v2589 = vld [vmem:[%s2562 + $0xb0] sm:$0xf]
        %v2590 = vld [vmem:[%s2562 + $0xb4] sm:$0xff]
        %v2591 = vld [vmem:[%s2562 + $0xbc] sm:$0xff]
        %v2592 = vld [vmem:[%s2562 + $0xc4] sm:$0xf]
        %v2593 = vld [vmem:[%s2562 + $0xc8] sm:$0xff]
        %v2594 = vld [vmem:[%s2562 + $0xd0] sm:$0xff]
        %v2595 = vld [vmem:[%s2562 + $0xd8] sm:$0xf]
        %v2596 = vld [vmem:[%s2562 + $0xdc] sm:$0xff]
        %v2597 = vld [vmem:[%s2562 + $0xe4] sm:$0xff]
        %v2598 = vld [vmem:[%s2562 + $0xec] sm:$0xf]
        %v2599 = vld [vmem:[%s2562 + $0xf0] sm:$0xff]
        %v2600 = vld [vmem:[%s2562 + $0xf8] sm:$0xff]
        %v2601 = vld [vmem:[%s2562 + $0x100] sm:$0xf]
        %v2602 = vld [vmem:[%s2562 + $0x104] sm:$0xff]
        %v2603 = vld [vmem:[%s2562 + $0x10c] sm:$0xff]
        %v2604 = vld [vmem:[%s2562 + $0x114] sm:$0xf]
        %v2605 = vld [vmem:[%s2562 + $0x118] sm:$0xff]
        %v2606 = vld [vmem:[%s2562 + $0x120] sm:$0xff]
        %v2607 = vld [vmem:[%s2562 + $0x128] sm:$0xf]
        %v2608 = vld [vmem:[%s2562 + $0x12c] sm:$0xff]
        %v2609 = vld [vmem:[%s2562 + $0x134] sm:$0xff]
        %v2610 = vld [vmem:[%s2562 + $0x13c] sm:$0xf]
        %v2659 = vunpack.c.l.b16 %v2563
        %v2660 = vunpack.c.h.b16 %v2563
        %v2661 = vunpack.c.l.b16 %v2564
        %v2662 = vunpack.c.h.b16 %v2564
        %v2663 = vunpack.c.l.b16 %v2565
        %v2664 = vunpack.c.l.b16 %v2566
        %v2665 = vunpack.c.h.b16 %v2566
        %v2666 = vunpack.c.l.b16 %v2567
        %v2667 = vunpack.c.h.b16 %v2567
        %v2668 = vunpack.c.l.b16 %v2568
        %v2669 = vunpack.c.l.b16 %v2569
        %v2670 = vunpack.c.h.b16 %v2569
        %v2671 = vunpack.c.l.b16 %v2570
        %v2672 = vunpack.c.h.b16 %v2570
        %v2673 = vunpack.c.l.b16 %v2571
        %v2674 = vunpack.c.l.b16 %v2572
        %v2675 = vunpack.c.h.b16 %v2572
        %v2676 = vunpack.c.l.b16 %v2573
        %v2677 = vunpack.c.h.b16 %v2573
        %v2678 = vunpack.c.l.b16 %v2574
        %v2679 = vunpack.c.l.b16 %v2575
        %v2680 = vunpack.c.h.b16 %v2575
        %v2681 = vunpack.c.l.b16 %v2576
        %v2682 = vunpack.c.h.b16 %v2576
        %v2683 = vunpack.c.l.b16 %v2577
        %v2684 = vunpack.c.l.b16 %v2578
        %v2685 = vunpack.c.h.b16 %v2578
        %v2686 = vunpack.c.l.b16 %v2579
        %v2687 = vunpack.c.h.b16 %v2579
        %v2688 = vunpack.c.l.b16 %v2580
        %v2689 = vunpack.c.l.b16 %v2581
        %v2690 = vunpack.c.h.b16 %v2581
        %v2691 = vunpack.c.l.b16 %v2582
        %v2692 = vunpack.c.h.b16 %v2582
        %v2693 = vunpack.c.l.b16 %v2583
        %v2694 = vunpack.c.l.b16 %v2584
        %v2695 = vunpack.c.h.b16 %v2584
        %v2696 = vunpack.c.l.b16 %v2585
        %v2697 = vunpack.c.h.b16 %v2585
        %v2698 = vunpack.c.l.b16 %v2586
        %v2699 = vunpack.c.l.b16 %v2587
        %v2700 = vunpack.c.h.b16 %v2587
        %v2701 = vunpack.c.l.b16 %v2588
        %v2702 = vunpack.c.h.b16 %v2588
        %v2703 = vunpack.c.l.b16 %v2589
        %v2704 = vunpack.c.l.b16 %v2590
        %v2705 = vunpack.c.h.b16 %v2590
        %v2706 = vunpack.c.l.b16 %v2591
        %v2707 = vunpack.c.h.b16 %v2591
        %v2708 = vunpack.c.l.b16 %v2592
        %v2709 = vunpack.c.l.b16 %v2593
        %v2710 = vunpack.c.h.b16 %v2593
        %v2711 = vunpack.c.l.b16 %v2594
        %v2712 = vunpack.c.h.b16 %v2594
        %v2713 = vunpack.c.l.b16 %v2595
        %v2714 = vunpack.c.l.b16 %v2596
        %v2715 = vunpack.c.h.b16 %v2596
        %v2716 = vunpack.c.l.b16 %v2597
        %v2717 = vunpack.c.h.b16 %v2597
        %v2718 = vunpack.c.l.b16 %v2598
        %v2719 = vunpack.c.l.b16 %v2599
        %v2720 = vunpack.c.h.b16 %v2599
        %v2721 = vunpack.c.l.b16 %v2600
        %v2722 = vunpack.c.h.b16 %v2600
        %v2723 = vunpack.c.l.b16 %v2601
        %v2724 = vunpack.c.l.b16 %v2602
        %v2725 = vunpack.c.h.b16 %v2602
        %v2726 = vunpack.c.l.b16 %v2603
        %v2727 = vunpack.c.h.b16 %v2603
        %v2728 = vunpack.c.l.b16 %v2604
        %v2729 = vunpack.c.l.b16 %v2605
        %v2730 = vunpack.c.h.b16 %v2605
        %v2731 = vunpack.c.l.b16 %v2606
        %v2732 = vunpack.c.h.b16 %v2606
        %v2733 = vunpack.c.l.b16 %v2607
        %v2734 = vunpack.c.l.b16 %v2608
        %v2735 = vunpack.c.h.b16 %v2608
        %v2736 = vunpack.c.l.b16 %v2609
        %v2737 = vunpack.c.h.b16 %v2609
        %v2738 = vunpack.c.l.b16 %v2610
        %v2739 = vpack.c.b16 %v2664, %v2659
        %v2740 = vpack.c.b16 %v2665, %v2660
        %v2741 = vpack.c.b16 %v2666, %v2661
        %v2742 = vpack.c.b16 %v2667, %v2662
        %v2743 = vpack.c.b16 %v2668, %v2663
        %v2744 = vpack.c.b16 %v2674, %v2669
        %v2745 = vpack.c.b16 %v2675, %v2670
        %v2746 = vpack.c.b16 %v2676, %v2671
        %v2747 = vpack.c.b16 %v2677, %v2672
        %v2748 = vpack.c.b16 %v2678, %v2673
        %v2749 = vpack.c.b16 %v2684, %v2679
        %v2750 = vpack.c.b16 %v2685, %v2680
        %v2751 = vpack.c.b16 %v2686, %v2681
        %v2752 = vpack.c.b16 %v2687, %v2682
        %v2753 = vpack.c.b16 %v2688, %v2683
        %v2754 = vpack.c.b16 %v2694, %v2689
        %v2755 = vpack.c.b16 %v2695, %v2690
        %v2756 = vpack.c.b16 %v2696, %v2691
        %v2757 = vpack.c.b16 %v2697, %v2692
        %v2758 = vpack.c.b16 %v2698, %v2693
        %v2759 = vpack.c.b16 %v2704, %v2699
        %v2760 = vpack.c.b16 %v2705, %v2700
        %v2761 = vpack.c.b16 %v2706, %v2701
        %v2762 = vpack.c.b16 %v2707, %v2702
        %v2763 = vpack.c.b16 %v2708, %v2703
        %v2764 = vpack.c.b16 %v2714, %v2709
        %v2765 = vpack.c.b16 %v2715, %v2710
        %v2766 = vpack.c.b16 %v2716, %v2711
        %v2767 = vpack.c.b16 %v2717, %v2712
        %v2768 = vpack.c.b16 %v2718, %v2713
        %v2769 = vpack.c.b16 %v2724, %v2719
        %v2770 = vpack.c.b16 %v2725, %v2720
        %v2771 = vpack.c.b16 %v2726, %v2721
        %v2772 = vpack.c.b16 %v2727, %v2722
        %v2773 = vpack.c.b16 %v2728, %v2723
        %v2774 = vpack.c.b16 %v2734, %v2729
        %v2775 = vpack.c.b16 %v2735, %v2730
        %v2776 = vpack.c.b16 %v2736, %v2731
        %v2777 = vpack.c.b16 %v2737, %v2732
        %v2778 = vpack.c.b16 %v2738, %v2733
        %2819 = vmatprep.subr.bf16.mxu0 %v2740
        %2820 = vmatpush1.bf16.msra.mxu0 %v2739
        %2821 = vmatprep.subr.bf16.mxu0 %v2745
        %2822 = vmatpush1.bf16.msra.mxu0 %v2744
        %2823 = vmatprep.subr.bf16.mxu0 %v2750
        %2824 = vmatpush1.bf16.msra.mxu0 %v2749
        %2825 = vmatprep.subr.bf16.mxu0 %v2755
        %2826 = vmatpush1.bf16.msra.mxu0 %v2754
        %2827 = vmatprep.subr.bf16.mxu0 %v2760
        %2828 = vmatpush1.bf16.msra.mxu0 %v2759
        %2829 = vmatprep.subr.bf16.mxu0 %v2765
        %2830 = vmatpush1.bf16.msra.mxu0 %v2764
        %2831 = vmatprep.subr.bf16.mxu0 %v2770
        %2832 = vmatpush1.bf16.msra.mxu0 %v2769
        %2833 = vmatprep.subr.bf16.mxu0 %v2775
        %2834 = vmatpush1.bf16.msra.mxu0 %v2774
        %2835 = vmatprep.subr.bf16.mxu0 0
        %2836 = vmatpush1.bf16.msra.mxu0 0
        %2837 = vmatprep.subr.bf16.mxu0 0
        %2838 = vmatpush1.bf16.msra.mxu0 0
        %2839 = vmatprep.subr.bf16.mxu0 0
        %2840 = vmatpush1.bf16.msra.mxu0 0
        %2841 = vmatprep.subr.bf16.mxu0 0
        %2842 = vmatpush1.bf16.msra.mxu0 0
        %2843 = vmatprep.subr.bf16.mxu0 0
        %2844 = vmatpush1.bf16.msra.mxu0 0
        %2845 = vmatprep.subr.bf16.mxu0 0
        %2846 = vmatpush1.bf16.msra.mxu0 0
        %2847 = vmatprep.subr.bf16.mxu0 0
        %2848 = vmatpush1.bf16.msra.mxu0 0
        %2849 = vmatprep.subr.bf16.mxu0 0
        %2850 = vmatpush1.bf16.msra.mxu0 0
        %2851 = vmatprep.mubr.bf16.mxu0 0
        %2852 = vmatmul.mubr.bf16.gmra.mrb[0].mxu0 %v2560
        %v2853 = vpop.f32.mrb[0].mxu0
        %v2854 = vadd.f32 0.0, %v2853
        %v2855 = vpop.f32.mrb[0].mxu0
        %v2856 = vadd.f32 0.0, %v2855
        %v2857 = vpop.f32.mrb[0].mxu0
        %v2858 = vadd.f32 0.0, %v2857
        %v2859 = vpop.f32.mrb[0].mxu0
        %v2860 = vadd.f32 0.0, %v2859
        %2861 = vmatprep.mubr.bf16.mxu0 0
        %2862 = vmatmul.mubr.bf16.gmra.mrb[0].mxu0 %v2561
        %v2863 = vpop.f32.mrb[0].mxu0
        %v2864 = vadd.f32 0.0, %v2863
        %v2865 = vpop.f32.mrb[0].mxu0
        %v2866 = vadd.f32 0.0, %v2865
        %v2867 = vpop.f32.mrb[0].mxu0
        %v2868 = vpop.f32.mrb[0].mxu0
        %2869 = vdwg.mxu0
        %2870 = vmatprep.subr.bf16.mxu0 %v2742
        %2871 = vmatpush1.bf16.msra.mxu0 %v2741
        %2872 = vmatprep.subr.bf16.mxu0 %v2747
        %2873 = vmatpush1.bf16.msra.mxu0 %v2746
        %2874 = vmatprep.subr.bf16.mxu0 %v2752
        %2875 = vmatpush1.bf16.msra.mxu0 %v2751
        %2876 = vmatprep.subr.bf16.mxu0 %v2757
        %2877 = vmatpush1.bf16.msra.mxu0 %v2756
        %2878 = vmatprep.subr.bf16.mxu0 %v2762
        %2879 = vmatpush1.bf16.msra.mxu0 %v2761
        %2880 = vmatprep.subr.bf16.mxu0 %v2767
        %2881 = vmatpush1.bf16.msra.mxu0 %v2766
        %2882 = vmatprep.subr.bf16.mxu0 %v2772
        %2883 = vmatpush1.bf16.msra.mxu0 %v2771
        %2884 = vmatprep.subr.bf16.mxu0 %v2777
        %2885 = vmatpush1.bf16.msra.mxu0 %v2776
        %2886 = vmatprep.subr.bf16.mxu0 0
        %2887 = vmatpush1.bf16.msra.mxu0 0
        %2888 = vmatprep.subr.bf16.mxu0 0
        %2889 = vmatpush1.bf16.msra.mxu0 0
        %2890 = vmatprep.subr.bf16.mxu0 0
        %2891 = vmatpush1.bf16.msra.mxu0 0
        %2892 = vmatprep.subr.bf16.mxu0 0
        %2893 = vmatpush1.bf16.msra.mxu0 0
        %2894 = vmatprep.subr.bf16.mxu0 0
        %2895 = vmatpush1.bf16.msra.mxu0 0
        %2896 = vmatprep.subr.bf16.mxu0 0
        %2897 = vmatpush1.bf16.msra.mxu0 0
        %2898 = vmatprep.subr.bf16.mxu0 0
        %2899 = vmatpush1.bf16.msra.mxu0 0
        %2900 = vmatprep.subr.bf16.mxu0 0
        %2901 = vmatpush1.bf16.msra.mxu0 0
        %2902 = vmatprep.mubr.bf16.mxu0 0
        %2903 = vmatmul.mubr.bf16.gmra.mrb[0].mxu0 %v2560
        %v2904 = vpop.f32.mrb[0].mxu0
        %v2905 = vadd.f32 0.0, %v2904
        %v2906 = vpop.f32.mrb[0].mxu0
        %v2907 = vadd.f32 0.0, %v2906
        %v2908 = vpop.f32.mrb[0].mxu0
        %v2909 = vadd.f32 0.0, %v2908
        %v2910 = vpop.f32.mrb[0].mxu0
        %v2911 = vadd.f32 0.0, %v2910
        %2912 = vmatprep.mubr.bf16.mxu0 0
        %2913 = vmatmul.mubr.bf16.gmra.mrb[0].mxu0 %v2561
        %v2914 = vpop.f32.mrb[0].mxu0
        %v2915 = vadd.f32 0.0, %v2914
        %v2916 = vpop.f32.mrb[0].mxu0
        %v2917 = vadd.f32 0.0, %v2916
        %v2918 = vpop.f32.mrb[0].mxu0
        %v2919 = vpop.f32.mrb[0].mxu0
        %2920 = vdwg.mxu0
        %2921 = vmatprep.subr.bf16.mxu0 0
        %2922 = vmatpush1.bf16.msra.mxu0 %v2743
        %2923 = vmatprep.subr.bf16.mxu0 0
        %2924 = vmatpush1.bf16.msra.mxu0 %v2748
        %2925 = vmatprep.subr.bf16.mxu0 0
        %2926 = vmatpush1.bf16.msra.mxu0 %v2753
        %2927 = vmatprep.subr.bf16.mxu0 0
        %2928 = vmatpush1.bf16.msra.mxu0 %v2758
        %2929 = vmatprep.subr.bf16.mxu0 0
        %2930 = vmatpush1.bf16.msra.mxu0 %v2763
        %2931 = vmatprep.subr.bf16.mxu0 0
        %2932 = vmatpush1.bf16.msra.mxu0 %v2768
        %2933 = vmatprep.subr.bf16.mxu0 0
        %2934 = vmatpush1.bf16.msra.mxu0 %v2773
        %2935 = vmatprep.subr.bf16.mxu0 0
        %2936 = vmatpush1.bf16.msra.mxu0 %v2778
        %2937 = vmatprep.subr.bf16.mxu0 0
        %2938 = vmatpush1.bf16.msra.mxu0 0
        %2939 = vmatprep.subr.bf16.mxu0 0
        %2940 = vmatpush1.bf16.msra.mxu0 0
        %2941 = vmatprep.subr.bf16.mxu0 0
        %2942 = vmatpush1.bf16.msra.mxu0 0
        %2943 = vmatprep.subr.bf16.mxu0 0
        %2944 = vmatpush1.bf16.msra.mxu0 0
        %2945 = vmatprep.subr.bf16.mxu0 0
        %2946 = vmatpush1.bf16.msra.mxu0 0
        %2947 = vmatprep.subr.bf16.mxu0 0
        %2948 = vmatpush1.bf16.msra.mxu0 0
        %2949 = vmatprep.subr.bf16.mxu0 0
        %2950 = vmatpush1.bf16.msra.mxu0 0
        %2951 = vmatprep.subr.bf16.mxu0 0
        %2952 = vmatpush1.bf16.msra.mxu0 0
        %2953 = vmatprep.mubr.bf16.mxu0 0
        %2954 = vmatmul.mubr.bf16.gmra.mrb[0].mxu0 %v2560
        %v2955 = vpop.f32.mrb[0].mxu0
        %v2956 = vadd.f32 0.0, %v2955
        %v2957 = vpop.f32.mrb[0].mxu0
        %v2958 = vpop.f32.mrb[0].mxu0
        %v2959 = vadd.f32 0.0, %v2958
        %v2960 = vpop.f32.mrb[0].mxu0
        %2961 = vmatprep.mubr.bf16.mxu0 0
        %2962 = vmatmul.mubr.bf16.gmra.mrb[0].mxu0 %v2561
        %v2963 = vpop.f32.mrb[0].mxu0
        %v2964 = vadd.f32 0.0, %v2963
        %v2965 = vpop.f32.mrb[0].mxu0
        %v2966 = vpop.f32.mrb[0].mxu0
        %v2967 = vpop.f32.mrb[0].mxu0
        %2968 = vdwg.mxu0
        %v2969 = vmul.f32 %v2854, %v535
        %v2970 = vmul.f32 %v2858, %v536
        %v2971 = vmul.f32 %v2864, %v537
        %v2972 = vmul.f32 %v2856, %v538
        %v2973 = vmul.f32 %v2860, %v539
        %v2974 = vmul.f32 %v2866, %v540
        %v2975 = vadd.f32 %v2969, %v2972
        %v2976 = vadd.f32 %v2970, %v2973
        %v2977 = vadd.f32 %v2971, %v2974
        %v2978 = vpack.c.bf16 %v2976, %v2975
        %v2979 = vpack.c.bf16 %v2977, %v2977
        %v2980 = vmul.f32 %v2905, %v535
        %v2981 = vmul.f32 %v2909, %v536
        %v2982 = vmul.f32 %v2915, %v537
        %v2983 = vmul.f32 %v2907, %v538
        %v2984 = vmul.f32 %v2911, %v539
        %v2985 = vmul.f32 %v2917, %v540
        %v2986 = vadd.f32 %v2980, %v2983
        %v2987 = vadd.f32 %v2981, %v2984
        %v2988 = vadd.f32 %v2982, %v2985
        %v2989 = vpack.c.bf16 %v2987, %v2986
        %v2990 = vpack.c.bf16 %v2988, %v2988
        %v2991 = vpack.c.bf16 %v2959, %v2956
        %v2992 = vpack.c.bf16 %v2964, %v2964
        %s2993 = scalar_lea.vmem [#allocation2], 64
        %v2994 = vld [vmem:[%s2993] sm:$0xf]
        %v2995 = vld [vmem:[%s2993 + $0x4] sm:$0xf]
        %v2996 = vld [vmem:[%s2993 + $0x8] sm:$0xf]
        %v2997 = vld [vmem:[%s2993 + $0xc] sm:$0xf]
        %v2998 = vld [vmem:[%s2993 + $0x10] sm:$0xf]
        %v2999 = vld [vmem:[%s2993 + $0x14] sm:$0xf]
        %v3000 = vld [vmem:[%s2993 + $0x18] sm:$0xf]
        %v3001 = vld [vmem:[%s2993 + $0x1c] sm:$0xf]
        %v3002 = vld [vmem:[%s2993 + $0x20] sm:$0xf]
        %v3003 = vld [vmem:[%s2993 + $0x24] sm:$0xf]
        %v3004 = vld [vmem:[%s2993 + $0x28] sm:$0xf]
        %v3005 = vld [vmem:[%s2993 + $0x2c] sm:$0xf]
        %v3006 = vld [vmem:[%s2993 + $0x30] sm:$0xf]
        %v3007 = vld [vmem:[%s2993 + $0x34] sm:$0xf]
        %v3008 = vld [vmem:[%s2993 + $0x38] sm:$0xf]
        %v3009 = vld [vmem:[%s2993 + $0x3c] sm:$0xf]
        %v3011 = vsel %vm1033, %v2978, 0
        %v3014 = vsel %vm1033, %v2979, 0
        %v3017 = vsel %vm1033, %v2989, 0
        %v3020 = vsel %vm1033, %v2990, 0
        %3022 = vmatprep.subr.bf16.mxu0 0
        %3023 = vmatpush1.bf16.xpose.msra.mxu0 %v3017
        %3024 = vmatprep.subr.bf16.mxu0 0
        %3025 = vmatpush1.bf16.xpose.msra.mxu0 %v3020
        %3026 = vmatprep.subr.bf16.mxu0 0
        %3027 = vmatpush1.bf16.xpose.msra.mxu0 0
        %3028 = vmatprep.subr.bf16.mxu0 0
        %3029 = vmatpush1.bf16.xpose.msra.mxu0 0
        %3030 = vmatprep.subr.bf16.mxu0 0
        %3031 = vmatpush1.bf16.xpose.msra.mxu0 0
        %3032 = vmatprep.subr.bf16.mxu0 0
        %3033 = vmatpush1.bf16.xpose.msra.mxu0 0
        %3034 = vmatprep.subr.bf16.mxu0 0
        %3035 = vmatpush1.bf16.xpose.msra.mxu0 0
        %3036 = vmatprep.subr.bf16.mxu0 0
        %3037 = vmatpush1.bf16.xpose.msra.mxu0 0
        %3038 = vmatprep.subr.bf16.mxu0 0
        %3039 = vmatpush1.bf16.xpose.msra.mxu0 0
        %3040 = vmatprep.subr.bf16.mxu0 0
        %3041 = vmatpush1.bf16.xpose.msra.mxu0 0
        %3042 = vmatprep.subr.bf16.mxu0 0
        %3043 = vmatpush1.bf16.xpose.msra.mxu0 0
        %3044 = vmatprep.subr.bf16.mxu0 0
        %3045 = vmatpush1.bf16.xpose.msra.mxu0 0
        %3046 = vmatprep.subr.bf16.mxu0 0
        %3047 = vmatpush1.bf16.xpose.msra.mxu0 0
        %3048 = vmatprep.subr.bf16.mxu0 0
        %3049 = vmatpush1.bf16.xpose.msra.mxu0 0
        %3050 = vmatprep.subr.bf16.mxu0 0
        %3051 = vmatpush1.bf16.xpose.msra.mxu0 0
        %3052 = vmatprep.subr.bf16.mxu0 0
        %3053 = vmatpush1.bf16.xpose.msra.mxu0 0
        %3054 = vmatprep.mubr.bf16.mxu0 0
        %3055 = vmatmul.mubr.bf16.gmra.mrb[0].mxu0 %v3011
        %v3056 = vpop.f32.mrb[0].mxu0
        %v3057 = vadd.f32 %v550, %v3056
        %v3058 = vpop.f32.mrb[0].mxu0
        %v3059 = vpop.f32.mrb[0].mxu0
        %v3060 = vadd.f32 %v551, %v3059
        %v3061 = vpop.f32.mrb[0].mxu0
        %3062 = vmatprep.mubr.bf16.mxu0 0
        %3063 = vmatmul.mubr.bf16.gmra.mrb[0].mxu0 %v3014
        %v3064 = vpop.f32.mrb[0].mxu0
        %v3065 = vadd.f32 %v552, %v3064
        %v3066 = vpop.f32.mrb[0].mxu0
        %v3067 = vpop.f32.mrb[0].mxu0
        %v3068 = vpop.f32.mrb[0].mxu0
        %3069 = vdwg.mxu0
        %v3070 = vsel %vm1094, %v3057, -inf
        %3071 = vmax.xlane.f32.xlu0 %v3070
        %v3072 = vpop.xlane.xlu0 %3071
        %v3073 = vsel %vm1094, %v3060, -inf
        %3074 = vmax.xlane.f32.xlu0 %v3073
        %v3075 = vpop.xlane.xlu0 %3074
        %v3076 = vsel %vm1094, %v3065, -inf
        %3077 = vmax.xlane.f32.xlu0 %v3076
        %v3078 = vpop.xlane.xlu0 %3077
        %v3079 = vsub.f32 %v3057, %v3072
        %v3080 = vsub.f32 %v3060, %v3075
        %v3081 = vsub.f32 %v3065, %v3078
        %v3082 = vmul.f32 %v3079, 1.442695
        %v3083 = vpow.pop %v3082
        %v3084 = vmul.f32 %v3080, 1.442695
        %v3085 = vpow.pop %v3084
        %v3086 = vmul.f32 %v3081, 1.442695
        %v3087 = vpow.pop %v3086
        %v3088 = vsel %vm1094, %v3083, 0.0
        %3089 = vadd.xlane.f32.xlu0 %v3088
        %v3090 = vpop.xlane.xlu0 %3089
        %v3091 = vsel %vm1094, %v3085, 0.0
        %3092 = vadd.xlane.f32.xlu0 %v3091
        %v3093 = vpop.xlane.xlu0 %3092
        %v3094 = vsel %vm1094, %v3087, 0.0
        %3095 = vadd.xlane.f32.xlu0 %v3094
        %v3096 = vpop.xlane.xlu0 %3095
        %v3097 = vrcp.pop %v3090
        %v3098 = vrcp.pop %v3093
        %v3099 = vrcp.pop %v3096
        %v3100 = vmul.f32 %v3083, %v3097
        %v3101 = vmul.f32 %v3085, %v3098
        %v3102 = vmul.f32 %v3087, %v3099
        %v3103 = vpack.c.bf16 %v3101, %v3100
        %v3104 = vpack.c.bf16 %v3102, %v3102
        %v3106 = vsel %vm1094, %v3103, 0
        %v3109 = vsel %vm1094, %v3104, 0
        %v3112 = vsel %vm1136, %v2992, 0
        %3114 = vmatprep.subr.bf16.mxu0 0
        %3115 = vmatpush1.bf16.msra.mxu0 %v2991
        %3116 = vmatprep.subr.bf16.mxu0 0
        %3117 = vmatpush1.bf16.msra.mxu0 %v3112
        %3118 = vmatprep.subr.bf16.mxu0 0
        %3119 = vmatpush1.bf16.msra.mxu0 0
        %3120 = vmatprep.subr.bf16.mxu0 0
        %3121 = vmatpush1.bf16.msra.mxu0 0
        %3122 = vmatprep.subr.bf16.mxu0 0
        %3123 = vmatpush1.bf16.msra.mxu0 0
        %3124 = vmatprep.subr.bf16.mxu0 0
        %3125 = vmatpush1.bf16.msra.mxu0 0
        %3126 = vmatprep.subr.bf16.mxu0 0
        %3127 = vmatpush1.bf16.msra.mxu0 0
        %3128 = vmatprep.subr.bf16.mxu0 0
        %3129 = vmatpush1.bf16.msra.mxu0 0
        %3130 = vmatprep.subr.bf16.mxu0 0
        %3131 = vmatpush1.bf16.msra.mxu0 0
        %3132 = vmatprep.subr.bf16.mxu0 0
        %3133 = vmatpush1.bf16.msra.mxu0 0
        %3134 = vmatprep.subr.bf16.mxu0 0
        %3135 = vmatpush1.bf16.msra.mxu0 0
        %3136 = vmatprep.subr.bf16.mxu0 0
        %3137 = vmatpush1.bf16.msra.mxu0 0
        %3138 = vmatprep.subr.bf16.mxu0 0
        %3139 = vmatpush1.bf16.msra.mxu0 0
        %3140 = vmatprep.subr.bf16.mxu0 0
        %3141 = vmatpush1.bf16.msra.mxu0 0
        %3142 = vmatprep.subr.bf16.mxu0 0
        %3143 = vmatpush1.bf16.msra.mxu0 0
        %3144 = vmatprep.subr.bf16.mxu0 0
        %3145 = vmatpush1.bf16.msra.mxu0 0
        %3146 = vmatprep.mubr.bf16.mxu0 0
        %3147 = vmatmul.mubr.bf16.gmra.mrb[0].mxu0 %v3106
        %v3148 = vpop.f32.mrb[0].mxu0
        %v3149 = vadd.f32 0.0, %v3148
        %v3150 = vpop.f32.mrb[0].mxu0
        %v3151 = vpop.f32.mrb[0].mxu0
        %v3152 = vadd.f32 0.0, %v3151
        %v3153 = vpop.f32.mrb[0].mxu0
        %3154 = vmatprep.mubr.bf16.mxu0 0
        %3155 = vmatmul.mubr.bf16.gmra.mrb[0].mxu0 %v3109
        %v3156 = vpop.f32.mrb[0].mxu0
        %v3157 = vadd.f32 0.0, %v3156
        %v3158 = vpop.f32.mrb[0].mxu0
        %v3159 = vpop.f32.mrb[0].mxu0
        %v3160 = vpop.f32.mrb[0].mxu0
        %3161 = vdwg.mxu0
        %v3162 = vpack.c.bf16 %v3152, %v3149
        %v3163 = vpack.c.bf16 %v3157, %v3157
        %3166 = vrot.lane.b32.xlu0 %v2978, 96
        %v3167 = vpop.permute.xlu0 %3166
        %3168 = vrot.lane.b32.xlu0 %v2979, 96
        %v3169 = vpop.permute.xlu0 %3168
        %3172 = vrot.lane.b32.xlu0 %v2989, 96
        %v3173 = vpop.permute.xlu0 %3172
        %3174 = vrot.lane.b32.xlu0 %v2990, 96
        %v3175 = vpop.permute.xlu0 %3174
        %v3177 = vsel %vm1033, %v3167, 0
        %v3180 = vsel %vm1033, %v3169, 0
        %v3183 = vsel %vm1033, %v3173, 0
        %v3186 = vsel %vm1033, %v3175, 0
        %3188 = vmatprep.subr.bf16.mxu0 0
        %3189 = vmatpush1.bf16.xpose.msra.mxu0 %v3183
        %3190 = vmatprep.subr.bf16.mxu0 0
        %3191 = vmatpush1.bf16.xpose.msra.mxu0 %v3186
        %3192 = vmatprep.subr.bf16.mxu0 0
        %3193 = vmatpush1.bf16.xpose.msra.mxu0 0
        %3194 = vmatprep.subr.bf16.mxu0 0
        %3195 = vmatpush1.bf16.xpose.msra.mxu0 0
        %3196 = vmatprep.subr.bf16.mxu0 0
        %3197 = vmatpush1.bf16.xpose.msra.mxu0 0
        %3198 = vmatprep.subr.bf16.mxu0 0
        %3199 = vmatpush1.bf16.xpose.msra.mxu0 0
        %3200 = vmatprep.subr.bf16.mxu0 0
        %3201 = vmatpush1.bf16.xpose.msra.mxu0 0
        %3202 = vmatprep.subr.bf16.mxu0 0
        %3203 = vmatpush1.bf16.xpose.msra.mxu0 0
        %3204 = vmatprep.subr.bf16.mxu0 0
        %3205 = vmatpush1.bf16.xpose.msra.mxu0 0
        %3206 = vmatprep.subr.bf16.mxu0 0
        %3207 = vmatpush1.bf16.xpose.msra.mxu0 0
        %3208 = vmatprep.subr.bf16.mxu0 0
        %3209 = vmatpush1.bf16.xpose.msra.mxu0 0
        %3210 = vmatprep.subr.bf16.mxu0 0
        %3211 = vmatpush1.bf16.xpose.msra.mxu0 0
        %3212 = vmatprep.subr.bf16.mxu0 0
        %3213 = vmatpush1.bf16.xpose.msra.mxu0 0
        %3214 = vmatprep.subr.bf16.mxu0 0
        %3215 = vmatpush1.bf16.xpose.msra.mxu0 0
        %3216 = vmatprep.subr.bf16.mxu0 0
        %3217 = vmatpush1.bf16.xpose.msra.mxu0 0
        %3218 = vmatprep.subr.bf16.mxu0 0
        %3219 = vmatpush1.bf16.xpose.msra.mxu0 0
        %3220 = vmatprep.mubr.bf16.mxu0 0
        %3221 = vmatmul.mubr.bf16.gmra.mrb[0].mxu0 %v3177
        %v3222 = vpop.f32.mrb[0].mxu0
        %v3223 = vadd.f32 %v550, %v3222
        %v3224 = vpop.f32.mrb[0].mxu0
        %v3225 = vpop.f32.mrb[0].mxu0
        %v3226 = vadd.f32 %v551, %v3225
        %v3227 = vpop.f32.mrb[0].mxu0
        %3228 = vmatprep.mubr.bf16.mxu0 0
        %3229 = vmatmul.mubr.bf16.gmra.mrb[0].mxu0 %v3180
        %v3230 = vpop.f32.mrb[0].mxu0
        %v3231 = vadd.f32 %v552, %v3230
        %v3232 = vpop.f32.mrb[0].mxu0
        %v3233 = vpop.f32.mrb[0].mxu0
        %v3234 = vpop.f32.mrb[0].mxu0
        %3235 = vdwg.mxu0
        %v3236 = vsel %vm1094, %v3223, -inf
        %3237 = vmax.xlane.f32.xlu0 %v3236
        %v3238 = vpop.xlane.xlu0 %3237
        %v3239 = vsel %vm1094, %v3226, -inf
        %3240 = vmax.xlane.f32.xlu0 %v3239
        %v3241 = vpop.xlane.xlu0 %3240
        %v3242 = vsel %vm1094, %v3231, -inf
        %3243 = vmax.xlane.f32.xlu0 %v3242
        %v3244 = vpop.xlane.xlu0 %3243
        %v3245 = vsub.f32 %v3223, %v3238
        %v3246 = vsub.f32 %v3226, %v3241
        %v3247 = vsub.f32 %v3231, %v3244
        %v3248 = vmul.f32 %v3245, 1.442695
        %v3249 = vpow.pop %v3248
        %v3250 = vmul.f32 %v3246, 1.442695
        %v3251 = vpow.pop %v3250
        %v3252 = vmul.f32 %v3247, 1.442695
        %v3253 = vpow.pop %v3252
        %v3254 = vsel %vm1094, %v3249, 0.0
        %3255 = vadd.xlane.f32.xlu0 %v3254
        %v3256 = vpop.xlane.xlu0 %3255
        %v3257 = vsel %vm1094, %v3251, 0.0
        %3258 = vadd.xlane.f32.xlu0 %v3257
        %v3259 = vpop.xlane.xlu0 %3258
        %v3260 = vsel %vm1094, %v3253, 0.0
        %3261 = vadd.xlane.f32.xlu0 %v3260
        %v3262 = vpop.xlane.xlu0 %3261
        %v3263 = vrcp.pop %v3256
        %v3264 = vrcp.pop %v3259
        %v3265 = vrcp.pop %v3262
        %v3266 = vmul.f32 %v3249, %v3263
        %v3267 = vmul.f32 %v3251, %v3264
        %v3268 = vmul.f32 %v3253, %v3265
        %v3269 = vpack.c.bf16 %v3267, %v3266
        %v3270 = vpack.c.bf16 %v3268, %v3268
        %3273 = vrot.lane.b32.xlu0 %v2991, 96
        %v3274 = vpop.permute.xlu0 %3273
        %3275 = vrot.lane.b32.xlu0 %v2992, 96
        %v3276 = vpop.permute.xlu0 %3275
        %v3279 = vsel %vm1094, %v3269, 0
        %v3282 = vsel %vm1094, %v3270, 0
        %v3285 = vsel %vm1136, %v3276, 0
        %3287 = vmatprep.subr.bf16.mxu0 0
        %3288 = vmatpush1.bf16.msra.mxu0 %v3274
        %3289 = vmatprep.subr.bf16.mxu0 0
        %3290 = vmatpush1.bf16.msra.mxu0 %v3285
        %3291 = vmatprep.subr.bf16.mxu0 0
        %3292 = vmatpush1.bf16.msra.mxu0 0
        %3293 = vmatprep.subr.bf16.mxu0 0
        %3294 = vmatpush1.bf16.msra.mxu0 0
        %3295 = vmatprep.subr.bf16.mxu0 0
        %3296 = vmatpush1.bf16.msra.mxu0 0
        %3297 = vmatprep.subr.bf16.mxu0 0
        %3298 = vmatpush1.bf16.msra.mxu0 0
        %3299 = vmatprep.subr.bf16.mxu0 0
        %3300 = vmatpush1.bf16.msra.mxu0 0
        %3301 = vmatprep.subr.bf16.mxu0 0
        %3302 = vmatpush1.bf16.msra.mxu0 0
        %3303 = vmatprep.subr.bf16.mxu0 0
        %3304 = vmatpush1.bf16.msra.mxu0 0
        %3305 = vmatprep.subr.bf16.mxu0 0
        %3306 = vmatpush1.bf16.msra.mxu0 0
        %3307 = vmatprep.subr.bf16.mxu0 0
        %3308 = vmatpush1.bf16.msra.mxu0 0
        %3309 = vmatprep.subr.bf16.mxu0 0
        %3310 = vmatpush1.bf16.msra.mxu0 0
        %3311 = vmatprep.subr.bf16.mxu0 0
        %3312 = vmatpush1.bf16.msra.mxu0 0
        %3313 = vmatprep.subr.bf16.mxu0 0
        %3314 = vmatpush1.bf16.msra.mxu0 0
        %3315 = vmatprep.subr.bf16.mxu0 0
        %3316 = vmatpush1.bf16.msra.mxu0 0
        %3317 = vmatprep.subr.bf16.mxu0 0
        %3318 = vmatpush1.bf16.msra.mxu0 0
        %3319 = vmatprep.mubr.bf16.mxu0 0
        %3320 = vmatmul.mubr.bf16.gmra.mrb[0].mxu0 %v3279
        %v3321 = vpop.f32.mrb[0].mxu0
        %v3322 = vadd.f32 0.0, %v3321
        %v3323 = vpop.f32.mrb[0].mxu0
        %v3324 = vpop.f32.mrb[0].mxu0
        %v3325 = vadd.f32 0.0, %v3324
        %v3326 = vpop.f32.mrb[0].mxu0
        %3327 = vmatprep.mubr.bf16.mxu0 0
        %3328 = vmatmul.mubr.bf16.gmra.mrb[0].mxu0 %v3282
        %v3329 = vpop.f32.mrb[0].mxu0
        %v3330 = vadd.f32 0.0, %v3329
        %v3331 = vpop.f32.mrb[0].mxu0
        %v3332 = vpop.f32.mrb[0].mxu0
        %v3333 = vpop.f32.mrb[0].mxu0
        %3334 = vdwg.mxu0
        %v3335 = vpack.c.bf16 %v3325, %v3322
        %v3336 = vpack.c.bf16 %v3330, %v3330
        %v3341 = vunpack.c.l.b16 %v2998
        %v3342 = vunpack.c.l.b16 %v2999
        %v3343 = vunpack.c.l.b16 %v3000
        %v3344 = vunpack.c.l.b16 %v3001
        %v3345 = vpack.c.b16 %v3342, %v3341
        %v3346 = vpack.c.b16 %v3344, %v3343
        %v3350 = vsel %vm1033, %v3335, 0
        %v3353 = vsel %vm1033, %v3336, 0
        %3355 = vmatprep.subr.bf16.mxu0 0
        %3356 = vmatpush1.bf16.msra.mxu0 %v3345
        %3357 = vmatprep.subr.bf16.mxu0 0
        %3358 = vmatpush1.bf16.msra.mxu0 %v3346
        %3359 = vmatprep.subr.bf16.mxu0 0
        %3360 = vmatpush1.bf16.msra.mxu0 0
        %3361 = vmatprep.subr.bf16.mxu0 0
        %3362 = vmatpush1.bf16.msra.mxu0 0
        %3363 = vmatprep.subr.bf16.mxu0 0
        %3364 = vmatpush1.bf16.msra.mxu0 0
        %3365 = vmatprep.subr.bf16.mxu0 0
        %3366 = vmatpush1.bf16.msra.mxu0 0
        %3367 = vmatprep.subr.bf16.mxu0 0
        %3368 = vmatpush1.bf16.msra.mxu0 0
        %3369 = vmatprep.subr.bf16.mxu0 0
        %3370 = vmatpush1.bf16.msra.mxu0 0
        %3371 = vmatprep.subr.bf16.mxu0 0
        %3372 = vmatpush1.bf16.msra.mxu0 0
        %3373 = vmatprep.subr.bf16.mxu0 0
        %3374 = vmatpush1.bf16.msra.mxu0 0
        %3375 = vmatprep.subr.bf16.mxu0 0
        %3376 = vmatpush1.bf16.msra.mxu0 0
        %3377 = vmatprep.subr.bf16.mxu0 0
        %3378 = vmatpush1.bf16.msra.mxu0 0
        %3379 = vmatprep.subr.bf16.mxu0 0
        %3380 = vmatpush1.bf16.msra.mxu0 0
        %3381 = vmatprep.subr.bf16.mxu0 0
        %3382 = vmatpush1.bf16.msra.mxu0 0
        %3383 = vmatprep.subr.bf16.mxu0 0
        %3384 = vmatpush1.bf16.msra.mxu0 0
        %3385 = vmatprep.subr.bf16.mxu0 0
        %3386 = vmatpush1.bf16.msra.mxu0 0
        %3387 = vmatprep.mubr.bf16.mxu0 0
        %3388 = vmatmul.mubr.bf16.gmra.mrb[0].mxu0 %v3350
        %v3389 = vpop.f32.mrb[0].mxu0
        %v3390 = vadd.f32 0.0, %v3389
        %v3391 = vpop.f32.mrb[0].mxu0
        %v3392 = vpop.f32.mrb[0].mxu0
        %v3393 = vadd.f32 0.0, %v3392
        %v3394 = vpop.f32.mrb[0].mxu0
        %3395 = vmatprep.mubr.bf16.mxu0 0
        %3396 = vmatmul.mubr.bf16.gmra.mrb[0].mxu0 %v3353
        %v3397 = vpop.f32.mrb[0].mxu0
        %v3398 = vadd.f32 0.0, %v3397
        %v3399 = vpop.f32.mrb[0].mxu0
        %v3400 = vpop.f32.mrb[0].mxu0
        %v3401 = vpop.f32.mrb[0].mxu0
        %3402 = vdwg.mxu0
        %v3407 = vunpack.c.l.b16 %v2994
        %v3408 = vunpack.c.l.b16 %v2995
        %v3409 = vunpack.c.l.b16 %v2996
        %v3410 = vunpack.c.l.b16 %v2997
        %v3411 = vpack.c.b16 %v3408, %v3407
        %v3412 = vpack.c.b16 %v3410, %v3409
        %v3416 = vsel %vm1033, %v3162, 0
        %v3419 = vsel %vm1033, %v3163, 0
        %3421 = vmatprep.subr.bf16.mxu0 0
        %3422 = vmatpush1.bf16.msra.mxu0 %v3411
        %3423 = vmatprep.subr.bf16.mxu0 0
        %3424 = vmatpush1.bf16.msra.mxu0 %v3412
        %3425 = vmatprep.subr.bf16.mxu0 0
        %3426 = vmatpush1.bf16.msra.mxu0 0
        %3427 = vmatprep.subr.bf16.mxu0 0
        %3428 = vmatpush1.bf16.msra.mxu0 0
        %3429 = vmatprep.subr.bf16.mxu0 0
        %3430 = vmatpush1.bf16.msra.mxu0 0
        %3431 = vmatprep.subr.bf16.mxu0 0
        %3432 = vmatpush1.bf16.msra.mxu0 0
        %3433 = vmatprep.subr.bf16.mxu0 0
        %3434 = vmatpush1.bf16.msra.mxu0 0
        %3435 = vmatprep.subr.bf16.mxu0 0
        %3436 = vmatpush1.bf16.msra.mxu0 0
        %3437 = vmatprep.subr.bf16.mxu0 0
        %3438 = vmatpush1.bf16.msra.mxu0 0
        %3439 = vmatprep.subr.bf16.mxu0 0
        %3440 = vmatpush1.bf16.msra.mxu0 0
        %3441 = vmatprep.subr.bf16.mxu0 0
        %3442 = vmatpush1.bf16.msra.mxu0 0
        %3443 = vmatprep.subr.bf16.mxu0 0
        %3444 = vmatpush1.bf16.msra.mxu0 0
        %3445 = vmatprep.subr.bf16.mxu0 0
        %3446 = vmatpush1.bf16.msra.mxu0 0
        %3447 = vmatprep.subr.bf16.mxu0 0
        %3448 = vmatpush1.bf16.msra.mxu0 0
        %3449 = vmatprep.subr.bf16.mxu0 0
        %3450 = vmatpush1.bf16.msra.mxu0 0
        %3451 = vmatprep.subr.bf16.mxu0 0
        %3452 = vmatpush1.bf16.msra.mxu0 0
        %3453 = vmatprep.mubr.bf16.mxu0 0
        %3454 = vmatmul.mubr.bf16.gmra.mrb[0].mxu0 %v3416
        %v3455 = vpop.f32.mrb[0].mxu0
        %v3456 = vadd.f32 %v3390, %v3455
        %v3457 = vpop.f32.mrb[0].mxu0
        %v3458 = vpop.f32.mrb[0].mxu0
        %v3459 = vadd.f32 %v3393, %v3458
        %v3460 = vpop.f32.mrb[0].mxu0
        %3461 = vmatprep.mubr.bf16.mxu0 0
        %3462 = vmatmul.mubr.bf16.gmra.mrb[0].mxu0 %v3419
        %v3463 = vpop.f32.mrb[0].mxu0
        %v3464 = vadd.f32 %v3398, %v3463
        %v3465 = vpop.f32.mrb[0].mxu0
        %v3466 = vpop.f32.mrb[0].mxu0
        %v3467 = vpop.f32.mrb[0].mxu0
        %3468 = vdwg.mxu0
        %3469 = vrot.lane.b32.xlu0 %v2978, 64
        %v3470 = vpop.permute.xlu0 %3469
        %3471 = vrot.lane.b32.xlu0 %v2979, 64
        %v3472 = vpop.permute.xlu0 %3471
        %3473 = vrot.lane.b32.xlu0 %v2989, 64
        %v3474 = vpop.permute.xlu0 %3473
        %3475 = vrot.lane.b32.xlu0 %v2990, 64
        %v3476 = vpop.permute.xlu0 %3475
        %v3478 = vsel %vm1033, %v3470, 0
        %v3481 = vsel %vm1033, %v3472, 0
        %v3484 = vsel %vm1033, %v3474, 0
        %v3487 = vsel %vm1033, %v3476, 0
        %3489 = vmatprep.subr.bf16.mxu0 0
        %3490 = vmatpush1.bf16.xpose.msra.mxu0 %v3484
        %3491 = vmatprep.subr.bf16.mxu0 0
        %3492 = vmatpush1.bf16.xpose.msra.mxu0 %v3487
        %3493 = vmatprep.subr.bf16.mxu0 0
        %3494 = vmatpush1.bf16.xpose.msra.mxu0 0
        %3495 = vmatprep.subr.bf16.mxu0 0
        %3496 = vmatpush1.bf16.xpose.msra.mxu0 0
        %3497 = vmatprep.subr.bf16.mxu0 0
        %3498 = vmatpush1.bf16.xpose.msra.mxu0 0
        %3499 = vmatprep.subr.bf16.mxu0 0
        %3500 = vmatpush1.bf16.xpose.msra.mxu0 0
        %3501 = vmatprep.subr.bf16.mxu0 0
        %3502 = vmatpush1.bf16.xpose.msra.mxu0 0
        %3503 = vmatprep.subr.bf16.mxu0 0
        %3504 = vmatpush1.bf16.xpose.msra.mxu0 0
        %3505 = vmatprep.subr.bf16.mxu0 0
        %3506 = vmatpush1.bf16.xpose.msra.mxu0 0
        %3507 = vmatprep.subr.bf16.mxu0 0
        %3508 = vmatpush1.bf16.xpose.msra.mxu0 0
        %3509 = vmatprep.subr.bf16.mxu0 0
        %3510 = vmatpush1.bf16.xpose.msra.mxu0 0
        %3511 = vmatprep.subr.bf16.mxu0 0
        %3512 = vmatpush1.bf16.xpose.msra.mxu0 0
        %3513 = vmatprep.subr.bf16.mxu0 0
        %3514 = vmatpush1.bf16.xpose.msra.mxu0 0
        %3515 = vmatprep.subr.bf16.mxu0 0
        %3516 = vmatpush1.bf16.xpose.msra.mxu0 0
        %3517 = vmatprep.subr.bf16.mxu0 0
        %3518 = vmatpush1.bf16.xpose.msra.mxu0 0
        %3519 = vmatprep.subr.bf16.mxu0 0
        %3520 = vmatpush1.bf16.xpose.msra.mxu0 0
        %3521 = vmatprep.mubr.bf16.mxu0 0
        %3522 = vmatmul.mubr.bf16.gmra.mrb[0].mxu0 %v3478
        %v3523 = vpop.f32.mrb[0].mxu0
        %v3524 = vadd.f32 %v550, %v3523
        %v3525 = vpop.f32.mrb[0].mxu0
        %v3526 = vpop.f32.mrb[0].mxu0
        %v3527 = vadd.f32 %v551, %v3526
        %v3528 = vpop.f32.mrb[0].mxu0
        %3529 = vmatprep.mubr.bf16.mxu0 0
        %3530 = vmatmul.mubr.bf16.gmra.mrb[0].mxu0 %v3481
        %v3531 = vpop.f32.mrb[0].mxu0
        %v3532 = vadd.f32 %v552, %v3531
        %v3533 = vpop.f32.mrb[0].mxu0
        %v3534 = vpop.f32.mrb[0].mxu0
        %v3535 = vpop.f32.mrb[0].mxu0
        %3536 = vdwg.mxu0
        %v3537 = vsel %vm1094, %v3524, -inf
        %3538 = vmax.xlane.f32.xlu0 %v3537
        %v3539 = vpop.xlane.xlu0 %3538
        %v3540 = vsel %vm1094, %v3527, -inf
        %3541 = vmax.xlane.f32.xlu0 %v3540
        %v3542 = vpop.xlane.xlu0 %3541
        %v3543 = vsel %vm1094, %v3532, -inf
        %3544 = vmax.xlane.f32.xlu0 %v3543
        %v3545 = vpop.xlane.xlu0 %3544
        %v3546 = vsub.f32 %v3524, %v3539
        %v3547 = vsub.f32 %v3527, %v3542
        %v3548 = vsub.f32 %v3532, %v3545
        %v3549 = vmul.f32 %v3546, 1.442695
        %v3550 = vpow.pop %v3549
        %v3551 = vmul.f32 %v3547, 1.442695
        %v3552 = vpow.pop %v3551
        %v3553 = vmul.f32 %v3548, 1.442695
        %v3554 = vpow.pop %v3553
        %v3555 = vsel %vm1094, %v3550, 0.0
        %3556 = vadd.xlane.f32.xlu0 %v3555
        %v3557 = vpop.xlane.xlu0 %3556
        %v3558 = vsel %vm1094, %v3552, 0.0
        %3559 = vadd.xlane.f32.xlu0 %v3558
        %v3560 = vpop.xlane.xlu0 %3559
        %v3561 = vsel %vm1094, %v3554, 0.0
        %3562 = vadd.xlane.f32.xlu0 %v3561
        %v3563 = vpop.xlane.xlu0 %3562
        %v3564 = vrcp.pop %v3557
        %v3565 = vrcp.pop %v3560
        %v3566 = vrcp.pop %v3563
        %v3567 = vmul.f32 %v3550, %v3564
        %v3568 = vmul.f32 %v3552, %v3565
        %v3569 = vmul.f32 %v3554, %v3566
        %v3570 = vpack.c.bf16 %v3568, %v3567
        %v3571 = vpack.c.bf16 %v3569, %v3569
        %3572 = vrot.lane.b32.xlu0 %v2991, 64
        %v3573 = vpop.permute.xlu0 %3572
        %3574 = vrot.lane.b32.xlu0 %v2992, 64
        %v3575 = vpop.permute.xlu0 %3574
        %v3578 = vsel %vm1094, %v3570, 0
        %v3581 = vsel %vm1094, %v3571, 0
        %v3584 = vsel %vm1136, %v3575, 0
        %3586 = vmatprep.subr.bf16.mxu0 0
        %3587 = vmatpush1.bf16.msra.mxu0 %v3573
        %3588 = vmatprep.subr.bf16.mxu0 0
        %3589 = vmatpush1.bf16.msra.mxu0 %v3584
        %3590 = vmatprep.subr.bf16.mxu0 0
        %3591 = vmatpush1.bf16.msra.mxu0 0
        %3592 = vmatprep.subr.bf16.mxu0 0
        %3593 = vmatpush1.bf16.msra.mxu0 0
        %3594 = vmatprep.subr.bf16.mxu0 0
        %3595 = vmatpush1.bf16.msra.mxu0 0
        %3596 = vmatprep.subr.bf16.mxu0 0
        %3597 = vmatpush1.bf16.msra.mxu0 0
        %3598 = vmatprep.subr.bf16.mxu0 0
        %3599 = vmatpush1.bf16.msra.mxu0 0
        %3600 = vmatprep.subr.bf16.mxu0 0
        %3601 = vmatpush1.bf16.msra.mxu0 0
        %3602 = vmatprep.subr.bf16.mxu0 0
        %3603 = vmatpush1.bf16.msra.mxu0 0
        %3604 = vmatprep.subr.bf16.mxu0 0
        %3605 = vmatpush1.bf16.msra.mxu0 0
        %3606 = vmatprep.subr.bf16.mxu0 0
        %3607 = vmatpush1.bf16.msra.mxu0 0
        %3608 = vmatprep.subr.bf16.mxu0 0
        %3609 = vmatpush1.bf16.msra.mxu0 0
        %3610 = vmatprep.subr.bf16.mxu0 0
        %3611 = vmatpush1.bf16.msra.mxu0 0
        %3612 = vmatprep.subr.bf16.mxu0 0
        %3613 = vmatpush1.bf16.msra.mxu0 0
        %3614 = vmatprep.subr.bf16.mxu0 0
        %3615 = vmatpush1.bf16.msra.mxu0 0
        %3616 = vmatprep.subr.bf16.mxu0 0
        %3617 = vmatpush1.bf16.msra.mxu0 0
        %3618 = vmatprep.mubr.bf16.mxu0 0
        %3619 = vmatmul.mubr.bf16.gmra.mrb[0].mxu0 %v3578
        %v3620 = vpop.f32.mrb[0].mxu0
        %v3621 = vadd.f32 0.0, %v3620
        %v3622 = vpop.f32.mrb[0].mxu0
        %v3623 = vpop.f32.mrb[0].mxu0
        %v3624 = vadd.f32 0.0, %v3623
        %v3625 = vpop.f32.mrb[0].mxu0
        %3626 = vmatprep.mubr.bf16.mxu0 0
        %3627 = vmatmul.mubr.bf16.gmra.mrb[0].mxu0 %v3581
        %v3628 = vpop.f32.mrb[0].mxu0
        %v3629 = vadd.f32 0.0, %v3628
        %v3630 = vpop.f32.mrb[0].mxu0
        %v3631 = vpop.f32.mrb[0].mxu0
        %v3632 = vpop.f32.mrb[0].mxu0
        %3633 = vdwg.mxu0
        %v3634 = vpack.c.bf16 %v3624, %v3621
        %v3635 = vpack.c.bf16 %v3629, %v3629
        %v3640 = vunpack.c.l.b16 %v3002
        %v3641 = vunpack.c.l.b16 %v3003
        %v3642 = vunpack.c.l.b16 %v3004
        %v3643 = vunpack.c.l.b16 %v3005
        %v3644 = vpack.c.b16 %v3641, %v3640
        %v3645 = vpack.c.b16 %v3643, %v3642
        %v3649 = vsel %vm1033, %v3634, 0
        %v3652 = vsel %vm1033, %v3635, 0
        %3654 = vmatprep.subr.bf16.mxu0 0
        %3655 = vmatpush1.bf16.msra.mxu0 %v3644
        %3656 = vmatprep.subr.bf16.mxu0 0
        %3657 = vmatpush1.bf16.msra.mxu0 %v3645
        %3658 = vmatprep.subr.bf16.mxu0 0
        %3659 = vmatpush1.bf16.msra.mxu0 0
        %3660 = vmatprep.subr.bf16.mxu0 0
        %3661 = vmatpush1.bf16.msra.mxu0 0
        %3662 = vmatprep.subr.bf16.mxu0 0
        %3663 = vmatpush1.bf16.msra.mxu0 0
        %3664 = vmatprep.subr.bf16.mxu0 0
        %3665 = vmatpush1.bf16.msra.mxu0 0
        %3666 = vmatprep.subr.bf16.mxu0 0
        %3667 = vmatpush1.bf16.msra.mxu0 0
        %3668 = vmatprep.subr.bf16.mxu0 0
        %3669 = vmatpush1.bf16.msra.mxu0 0
        %3670 = vmatprep.subr.bf16.mxu0 0
        %3671 = vmatpush1.bf16.msra.mxu0 0
        %3672 = vmatprep.subr.bf16.mxu0 0
        %3673 = vmatpush1.bf16.msra.mxu0 0
        %3674 = vmatprep.subr.bf16.mxu0 0
        %3675 = vmatpush1.bf16.msra.mxu0 0
        %3676 = vmatprep.subr.bf16.mxu0 0
        %3677 = vmatpush1.bf16.msra.mxu0 0
        %3678 = vmatprep.subr.bf16.mxu0 0
        %3679 = vmatpush1.bf16.msra.mxu0 0
        %3680 = vmatprep.subr.bf16.mxu0 0
        %3681 = vmatpush1.bf16.msra.mxu0 0
        %3682 = vmatprep.subr.bf16.mxu0 0
        %3683 = vmatpush1.bf16.msra.mxu0 0
        %3684 = vmatprep.subr.bf16.mxu0 0
        %3685 = vmatpush1.bf16.msra.mxu0 0
        %3686 = vmatprep.mubr.bf16.mxu0 0
        %3687 = vmatmul.mubr.bf16.gmra.mrb[0].mxu0 %v3649
        %v3688 = vpop.f32.mrb[0].mxu0
        %v3689 = vadd.f32 0.0, %v3688
        %v3690 = vpop.f32.mrb[0].mxu0
        %v3691 = vpop.f32.mrb[0].mxu0
        %v3692 = vadd.f32 0.0, %v3691
        %v3693 = vpop.f32.mrb[0].mxu0
        %3694 = vmatprep.mubr.bf16.mxu0 0
        %3695 = vmatmul.mubr.bf16.gmra.mrb[0].mxu0 %v3652
        %v3696 = vpop.f32.mrb[0].mxu0
        %v3697 = vadd.f32 0.0, %v3696
        %v3698 = vpop.f32.mrb[0].mxu0
        %v3699 = vpop.f32.mrb[0].mxu0
        %v3700 = vpop.f32.mrb[0].mxu0
        %3701 = vdwg.mxu0
        %v3702 = vadd.f32 %v3456, %v3689
        %v3703 = vadd.f32 %v3459, %v3692
        %v3704 = vadd.f32 %v3464, %v3697
        %3705 = vrot.lane.b32.xlu0 %v2978, 32
        %v3706 = vpop.permute.xlu0 %3705
        %3707 = vrot.lane.b32.xlu0 %v2979, 32
        %v3708 = vpop.permute.xlu0 %3707
        %3709 = vrot.lane.b32.xlu0 %v2989, 32
        %v3710 = vpop.permute.xlu0 %3709
        %3711 = vrot.lane.b32.xlu0 %v2990, 32
        %v3712 = vpop.permute.xlu0 %3711
        %v3714 = vsel %vm1033, %v3706, 0
        %v3717 = vsel %vm1033, %v3708, 0
        %v3720 = vsel %vm1033, %v3710, 0
        %v3723 = vsel %vm1033, %v3712, 0
        %3725 = vmatprep.subr.bf16.mxu0 0
        %3726 = vmatpush1.bf16.xpose.msra.mxu0 %v3720
        %3727 = vmatprep.subr.bf16.mxu0 0
        %3728 = vmatpush1.bf16.xpose.msra.mxu0 %v3723
        %3729 = vmatprep.subr.bf16.mxu0 0
        %3730 = vmatpush1.bf16.xpose.msra.mxu0 0
        %3731 = vmatprep.subr.bf16.mxu0 0
        %3732 = vmatpush1.bf16.xpose.msra.mxu0 0
        %3733 = vmatprep.subr.bf16.mxu0 0
        %3734 = vmatpush1.bf16.xpose.msra.mxu0 0
        %3735 = vmatprep.subr.bf16.mxu0 0
        %3736 = vmatpush1.bf16.xpose.msra.mxu0 0
        %3737 = vmatprep.subr.bf16.mxu0 0
        %3738 = vmatpush1.bf16.xpose.msra.mxu0 0
        %3739 = vmatprep.subr.bf16.mxu0 0
        %3740 = vmatpush1.bf16.xpose.msra.mxu0 0
        %3741 = vmatprep.subr.bf16.mxu0 0
        %3742 = vmatpush1.bf16.xpose.msra.mxu0 0
        %3743 = vmatprep.subr.bf16.mxu0 0
        %3744 = vmatpush1.bf16.xpose.msra.mxu0 0
        %3745 = vmatprep.subr.bf16.mxu0 0
        %3746 = vmatpush1.bf16.xpose.msra.mxu0 0
        %3747 = vmatprep.subr.bf16.mxu0 0
        %3748 = vmatpush1.bf16.xpose.msra.mxu0 0
        %3749 = vmatprep.subr.bf16.mxu0 0
        %3750 = vmatpush1.bf16.xpose.msra.mxu0 0
        %3751 = vmatprep.subr.bf16.mxu0 0
        %3752 = vmatpush1.bf16.xpose.msra.mxu0 0
        %3753 = vmatprep.subr.bf16.mxu0 0
        %3754 = vmatpush1.bf16.xpose.msra.mxu0 0
        %3755 = vmatprep.subr.bf16.mxu0 0
        %3756 = vmatpush1.bf16.xpose.msra.mxu0 0
        %3757 = vmatprep.mubr.bf16.mxu0 0
        %3758 = vmatmul.mubr.bf16.gmra.mrb[0].mxu0 %v3714
        %v3759 = vpop.f32.mrb[0].mxu0
        %v3760 = vadd.f32 %v550, %v3759
        %v3761 = vpop.f32.mrb[0].mxu0
        %v3762 = vpop.f32.mrb[0].mxu0
        %v3763 = vadd.f32 %v551, %v3762
        %v3764 = vpop.f32.mrb[0].mxu0
        %3765 = vmatprep.mubr.bf16.mxu0 0
        %3766 = vmatmul.mubr.bf16.gmra.mrb[0].mxu0 %v3717
        %v3767 = vpop.f32.mrb[0].mxu0
        %v3768 = vadd.f32 %v552, %v3767
        %v3769 = vpop.f32.mrb[0].mxu0
        %v3770 = vpop.f32.mrb[0].mxu0
        %v3771 = vpop.f32.mrb[0].mxu0
        %3772 = vdwg.mxu0
        %v3773 = vsel %vm1094, %v3760, -inf
        %3774 = vmax.xlane.f32.xlu0 %v3773
        %v3775 = vpop.xlane.xlu0 %3774
        %v3776 = vsel %vm1094, %v3763, -inf
        %3777 = vmax.xlane.f32.xlu0 %v3776
        %v3778 = vpop.xlane.xlu0 %3777
        %v3779 = vsel %vm1094, %v3768, -inf
        %3780 = vmax.xlane.f32.xlu0 %v3779
        %v3781 = vpop.xlane.xlu0 %3780
        %v3782 = vsub.f32 %v3760, %v3775
        %v3783 = vsub.f32 %v3763, %v3778
        %v3784 = vsub.f32 %v3768, %v3781
        %v3785 = vmul.f32 %v3782, 1.442695
        %v3786 = vpow.pop %v3785
        %v3787 = vmul.f32 %v3783, 1.442695
        %v3788 = vpow.pop %v3787
        %v3789 = vmul.f32 %v3784, 1.442695
        %v3790 = vpow.pop %v3789
        %v3791 = vsel %vm1094, %v3786, 0.0
        %3792 = vadd.xlane.f32.xlu0 %v3791
        %v3793 = vpop.xlane.xlu0 %3792
        %v3794 = vsel %vm1094, %v3788, 0.0
        %3795 = vadd.xlane.f32.xlu0 %v3794
        %v3796 = vpop.xlane.xlu0 %3795
        %v3797 = vsel %vm1094, %v3790, 0.0
        %3798 = vadd.xlane.f32.xlu0 %v3797
        %v3799 = vpop.xlane.xlu0 %3798
        %v3800 = vrcp.pop %v3793
        %v3801 = vrcp.pop %v3796
        %v3802 = vrcp.pop %v3799
        %v3803 = vmul.f32 %v3786, %v3800
        %v3804 = vmul.f32 %v3788, %v3801
        %v3805 = vmul.f32 %v3790, %v3802
        %v3806 = vpack.c.bf16 %v3804, %v3803
        %v3807 = vpack.c.bf16 %v3805, %v3805
        %3808 = vrot.lane.b32.xlu0 %v2991, 32
        %v3809 = vpop.permute.xlu0 %3808
        %3810 = vrot.lane.b32.xlu0 %v2992, 32
        %v3811 = vpop.permute.xlu0 %3810
        %v3814 = vsel %vm1094, %v3806, 0
        %v3817 = vsel %vm1094, %v3807, 0
        %v3820 = vsel %vm1136, %v3811, 0
        %3822 = vmatprep.subr.bf16.mxu0 0
        %3823 = vmatpush1.bf16.msra.mxu0 %v3809
        %3824 = vmatprep.subr.bf16.mxu0 0
        %3825 = vmatpush1.bf16.msra.mxu0 %v3820
        %3826 = vmatprep.subr.bf16.mxu0 0
        %3827 = vmatpush1.bf16.msra.mxu0 0
        %3828 = vmatprep.subr.bf16.mxu0 0
        %3829 = vmatpush1.bf16.msra.mxu0 0
        %3830 = vmatprep.subr.bf16.mxu0 0
        %3831 = vmatpush1.bf16.msra.mxu0 0
        %3832 = vmatprep.subr.bf16.mxu0 0
        %3833 = vmatpush1.bf16.msra.mxu0 0
        %3834 = vmatprep.subr.bf16.mxu0 0
        %3835 = vmatpush1.bf16.msra.mxu0 0
        %3836 = vmatprep.subr.bf16.mxu0 0
        %3837 = vmatpush1.bf16.msra.mxu0 0
        %3838 = vmatprep.subr.bf16.mxu0 0
        %3839 = vmatpush1.bf16.msra.mxu0 0
        %3840 = vmatprep.subr.bf16.mxu0 0
        %3841 = vmatpush1.bf16.msra.mxu0 0
        %3842 = vmatprep.subr.bf16.mxu0 0
        %3843 = vmatpush1.bf16.msra.mxu0 0
        %3844 = vmatprep.subr.bf16.mxu0 0
        %3845 = vmatpush1.bf16.msra.mxu0 0
        %3846 = vmatprep.subr.bf16.mxu0 0
        %3847 = vmatpush1.bf16.msra.mxu0 0
        %3848 = vmatprep.subr.bf16.mxu0 0
        %3849 = vmatpush1.bf16.msra.mxu0 0
        %3850 = vmatprep.subr.bf16.mxu0 0
        %3851 = vmatpush1.bf16.msra.mxu0 0
        %3852 = vmatprep.subr.bf16.mxu0 0
        %3853 = vmatpush1.bf16.msra.mxu0 0
        %3854 = vmatprep.mubr.bf16.mxu0 0
        %3855 = vmatmul.mubr.bf16.gmra.mrb[0].mxu0 %v3814
        %v3856 = vpop.f32.mrb[0].mxu0
        %v3857 = vadd.f32 0.0, %v3856
        %v3858 = vpop.f32.mrb[0].mxu0
        %v3859 = vpop.f32.mrb[0].mxu0
        %v3860 = vadd.f32 0.0, %v3859
        %v3861 = vpop.f32.mrb[0].mxu0
        %3862 = vmatprep.mubr.bf16.mxu0 0
        %3863 = vmatmul.mubr.bf16.gmra.mrb[0].mxu0 %v3817
        %v3864 = vpop.f32.mrb[0].mxu0
        %v3865 = vadd.f32 0.0, %v3864
        %v3866 = vpop.f32.mrb[0].mxu0
        %v3867 = vpop.f32.mrb[0].mxu0
        %v3868 = vpop.f32.mrb[0].mxu0
        %3869 = vdwg.mxu0
        %v3870 = vpack.c.bf16 %v3860, %v3857
        %v3871 = vpack.c.bf16 %v3865, %v3865
        %v3876 = vunpack.c.l.b16 %v3006
        %v3877 = vunpack.c.l.b16 %v3007
        %v3878 = vunpack.c.l.b16 %v3008
        %v3879 = vunpack.c.l.b16 %v3009
        %v3880 = vpack.c.b16 %v3877, %v3876
        %v3881 = vpack.c.b16 %v3879, %v3878
        %v3885 = vsel %vm1033, %v3870, 0
        %v3888 = vsel %vm1033, %v3871, 0
        %3890 = vmatprep.subr.bf16.mxu0 0
        %3891 = vmatpush1.bf16.msra.mxu0 %v3880
        %3892 = vmatprep.subr.bf16.mxu0 0
        %3893 = vmatpush1.bf16.msra.mxu0 %v3881
        %3894 = vmatprep.subr.bf16.mxu0 0
        %3895 = vmatpush1.bf16.msra.mxu0 0
        %3896 = vmatprep.subr.bf16.mxu0 0
        %3897 = vmatpush1.bf16.msra.mxu0 0
        %3898 = vmatprep.subr.bf16.mxu0 0
        %3899 = vmatpush1.bf16.msra.mxu0 0
        %3900 = vmatprep.subr.bf16.mxu0 0
        %3901 = vmatpush1.bf16.msra.mxu0 0
        %3902 = vmatprep.subr.bf16.mxu0 0
        %3903 = vmatpush1.bf16.msra.mxu0 0
        %3904 = vmatprep.subr.bf16.mxu0 0
        %3905 = vmatpush1.bf16.msra.mxu0 0
        %3906 = vmatprep.subr.bf16.mxu0 0
        %3907 = vmatpush1.bf16.msra.mxu0 0
        %3908 = vmatprep.subr.bf16.mxu0 0
        %3909 = vmatpush1.bf16.msra.mxu0 0
        %3910 = vmatprep.subr.bf16.mxu0 0
        %3911 = vmatpush1.bf16.msra.mxu0 0
        %3912 = vmatprep.subr.bf16.mxu0 0
        %3913 = vmatpush1.bf16.msra.mxu0 0
        %3914 = vmatprep.subr.bf16.mxu0 0
        %3915 = vmatpush1.bf16.msra.mxu0 0
        %3916 = vmatprep.subr.bf16.mxu0 0
        %3917 = vmatpush1.bf16.msra.mxu0 0
        %3918 = vmatprep.subr.bf16.mxu0 0
        %3919 = vmatpush1.bf16.msra.mxu0 0
        %3920 = vmatprep.subr.bf16.mxu0 0
        %3921 = vmatpush1.bf16.msra.mxu0 0
        %3922 = vmatprep.mubr.bf16.mxu0 0
        %3923 = vmatmul.mubr.bf16.gmra.mrb[0].mxu0 %v3885
        %v3924 = vpop.f32.mrb[0].mxu0
        %v3925 = vadd.f32 0.0, %v3924
        %v3926 = vpop.f32.mrb[0].mxu0
        %v3927 = vpop.f32.mrb[0].mxu0
        %v3928 = vadd.f32 0.0, %v3927
        %v3929 = vpop.f32.mrb[0].mxu0
        %3930 = vmatprep.mubr.bf16.mxu0 0
        %3931 = vmatmul.mubr.bf16.gmra.mrb[0].mxu0 %v3888
        %v3932 = vpop.f32.mrb[0].mxu0
        %v3933 = vadd.f32 0.0, %v3932
        %v3934 = vpop.f32.mrb[0].mxu0
        %v3935 = vpop.f32.mrb[0].mxu0
        %v3936 = vpop.f32.mrb[0].mxu0
        %3937 = vdwg.mxu0
        %v3938 = vadd.f32 %v3702, %v3925
        %v3939 = vadd.f32 %v3703, %v3928
        %v3940 = vadd.f32 %v3704, %v3933
        %v3941 = vadd.f32 %v2525, %v3938
        %v3942 = vadd.f32 %v2526, %v3939
        %v3943 = vadd.f32 %v2527, %v3940
        %s3944 = scalar_lea.vmem %s7, 1
        %v3945 = vld [vmem:[%s3944] sm:$0x1]
        %v3946 = vmul.f32 %v3941, %v3941
        %v3947 = vmul.f32 %v3942, %v3942
        %v3948 = vmul.f32 %v3943, %v3943
        %3949 = vadd.xlane.f32.xlu0 %v3946
        %v3950 = vpop.xlane.xlu0 %3949
        %3951 = vadd.xlane.f32.xlu0 %v3947
        %v3952 = vpop.xlane.xlu0 %3951
        %3953 = vadd.xlane.f32.xlu0 %v3948
        %v3954 = vpop.xlane.xlu0 %3953
        %v3955 = vmul.f32 %v3950, %v563
        %v3956 = vmul.f32 %v3952, %v563
        %v3957 = vmul.f32 %v3954, %v563
        %v3958 = vadd.f32 %v3955, 1e-05
        %v3959 = vadd.f32 %v3956, 1e-05
        %v3960 = vadd.f32 %v3957, 1e-05
        %v3961 = vrsqrt.pop %v3958
        %v3962 = vrsqrt.pop %v3959
        %v3963 = vrsqrt.pop %v3960
        %v3964 = vmul.f32 %v3941, %v3961
        %v3965 = vmul.f32 %v3942, %v3962
        %v3966 = vmul.f32 %v3943, %v3963
        %v3968 = vlaneseq
        %v3969 = vshrl.u32 %v3968, 7
        %v3970 = vsub.s32 0, %v3969
        %v3971 = vrot.slane %v3945, %v3970
        %v3973 = vmul.f32 %v3964, %v3971
        %v3974 = vmul.f32 %v3965, %v3971
        %v3975 = vmul.f32 %v3966, %v3971
        %v3976 = vpack.c.bf16 %v3974, %v3973
        %v3977 = vpack.c.bf16 %v3975, %v3975
        %s3978 = scalar_lea.vmem %s8, 256
        %v3979 = vld [vmem:[%s3978] sm:$0xff]
        %v3980 = vld [vmem:[%s3978 + $0x8] sm:$0xff]
        %v3981 = vld [vmem:[%s3978 + $0x10] sm:$0xff]
        %v3982 = vld [vmem:[%s3978 + $0x18] sm:$0xff]
        %v3983 = vld [vmem:[%s3978 + $0x20] sm:$0xff]
        %v3984 = vld [vmem:[%s3978 + $0x28] sm:$0xff]
        %v3985 = vld [vmem:[%s3978 + $0x30] sm:$0xff]
        %v3986 = vld [vmem:[%s3978 + $0x38] sm:$0xff]
        %v3987 = vld [vmem:[%s3978 + $0x40] sm:$0xff]
        %v3988 = vld [vmem:[%s3978 + $0x48] sm:$0xff]
        %v3989 = vld [vmem:[%s3978 + $0x50] sm:$0xff]
        %v3990 = vld [vmem:[%s3978 + $0x58] sm:$0xff]
        %v3991 = vld [vmem:[%s3978 + $0x60] sm:$0xff]
        %v3992 = vld [vmem:[%s3978 + $0x68] sm:$0xff]
        %v3993 = vld [vmem:[%s3978 + $0x70] sm:$0xff]
        %v3994 = vld [vmem:[%s3978 + $0x78] sm:$0xff]
        %v3995 = vld [vmem:[%s3978 + $0x80] sm:$0xff]
        %v3996 = vld [vmem:[%s3978 + $0x88] sm:$0xff]
        %v3997 = vld [vmem:[%s3978 + $0x90] sm:$0xff]
        %v3998 = vld [vmem:[%s3978 + $0x98] sm:$0xff]
        %v3999 = vld [vmem:[%s3978 + $0xa0] sm:$0xff]
        %v4000 = vld [vmem:[%s3978 + $0xa8] sm:$0xff]
        %v4001 = vld [vmem:[%s3978 + $0xb0] sm:$0xff]
        %v4002 = vld [vmem:[%s3978 + $0xb8] sm:$0xff]
        %v4003 = vld [vmem:[%s3978 + $0xc0] sm:$0xff]
        %v4004 = vld [vmem:[%s3978 + $0xc8] sm:$0xff]
        %v4005 = vld [vmem:[%s3978 + $0xd0] sm:$0xff]
        %v4006 = vld [vmem:[%s3978 + $0xd8] sm:$0xff]
        %v4007 = vld [vmem:[%s3978 + $0xe0] sm:$0xff]
        %v4008 = vld [vmem:[%s3978 + $0xe8] sm:$0xff]
        %v4009 = vld [vmem:[%s3978 + $0xf0] sm:$0xff]
        %v4010 = vld [vmem:[%s3978 + $0xf8] sm:$0xff]
        %v4043 = vunpack.c.l.b16 %v3979
        %v4044 = vunpack.c.h.b16 %v3979
        %v4045 = vunpack.c.l.b16 %v3980
        %v4046 = vunpack.c.h.b16 %v3980
        %v4047 = vunpack.c.l.b16 %v3981
        %v4048 = vunpack.c.h.b16 %v3981
        %v4049 = vunpack.c.l.b16 %v3982
        %v4050 = vunpack.c.h.b16 %v3982
        %v4051 = vunpack.c.l.b16 %v3983
        %v4052 = vunpack.c.h.b16 %v3983
        %v4053 = vunpack.c.l.b16 %v3984
        %v4054 = vunpack.c.h.b16 %v3984
        %v4055 = vunpack.c.l.b16 %v3985
        %v4056 = vunpack.c.h.b16 %v3985
        %v4057 = vunpack.c.l.b16 %v3986
        %v4058 = vunpack.c.h.b16 %v3986
        %v4059 = vunpack.c.l.b16 %v3987
        %v4060 = vunpack.c.h.b16 %v3987
        %v4061 = vunpack.c.l.b16 %v3988
        %v4062 = vunpack.c.h.b16 %v3988
        %v4063 = vunpack.c.l.b16 %v3989
        %v4064 = vunpack.c.h.b16 %v3989
        %v4065 = vunpack.c.l.b16 %v3990
        %v4066 = vunpack.c.h.b16 %v3990
        %v4067 = vunpack.c.l.b16 %v3991
        %v4068 = vunpack.c.h.b16 %v3991
        %v4069 = vunpack.c.l.b16 %v3992
        %v4070 = vunpack.c.h.b16 %v3992
        %v4071 = vunpack.c.l.b16 %v3993
        %v4072 = vunpack.c.h.b16 %v3993
        %v4073 = vunpack.c.l.b16 %v3994
        %v4074 = vunpack.c.h.b16 %v3994
        %v4075 = vunpack.c.l.b16 %v3995
        %v4076 = vunpack.c.h.b16 %v3995
        %v4077 = vunpack.c.l.b16 %v3996
        %v4078 = vunpack.c.h.b16 %v3996
        %v4079 = vunpack.c.l.b16 %v3997
        %v4080 = vunpack.c.h.b16 %v3997
        %v4081 = vunpack.c.l.b16 %v3998
        %v4082 = vunpack.c.h.b16 %v3998
        %v4083 = vunpack.c.l.b16 %v3999
        %v4084 = vunpack.c.h.b16 %v3999
        %v4085 = vunpack.c.l.b16 %v4000
        %v4086 = vunpack.c.h.b16 %v4000
        %v4087 = vunpack.c.l.b16 %v4001
        %v4088 = vunpack.c.h.b16 %v4001
        %v4089 = vunpack.c.l.b16 %v4002
        %v4090 = vunpack.c.h.b16 %v4002
        %v4091 = vunpack.c.l.b16 %v4003
        %v4092 = vunpack.c.h.b16 %v4003
        %v4093 = vunpack.c.l.b16 %v4004
        %v4094 = vunpack.c.h.b16 %v4004
        %v4095 = vunpack.c.l.b16 %v4005
        %v4096 = vunpack.c.h.b16 %v4005
        %v4097 = vunpack.c.l.b16 %v4006
        %v4098 = vunpack.c.h.b16 %v4006
        %v4099 = vunpack.c.l.b16 %v4007
        %v4100 = vunpack.c.h.b16 %v4007
        %v4101 = vunpack.c.l.b16 %v4008
        %v4102 = vunpack.c.h.b16 %v4008
        %v4103 = vunpack.c.l.b16 %v4009
        %v4104 = vunpack.c.h.b16 %v4009
        %v4105 = vunpack.c.l.b16 %v4010
        %v4106 = vunpack.c.h.b16 %v4010
        %v4107 = vpack.c.b16 %v4047, %v4043
        %v4108 = vpack.c.b16 %v4048, %v4044
        %v4109 = vpack.c.b16 %v4049, %v4045
        %v4110 = vpack.c.b16 %v4050, %v4046
        %v4111 = vpack.c.b16 %v4055, %v4051
        %v4112 = vpack.c.b16 %v4056, %v4052
        %v4113 = vpack.c.b16 %v4057, %v4053
        %v4114 = vpack.c.b16 %v4058, %v4054
        %v4115 = vpack.c.b16 %v4063, %v4059
        %v4116 = vpack.c.b16 %v4064, %v4060
        %v4117 = vpack.c.b16 %v4065, %v4061
        %v4118 = vpack.c.b16 %v4066, %v4062
        %v4119 = vpack.c.b16 %v4071, %v4067
        %v4120 = vpack.c.b16 %v4072, %v4068
        %v4121 = vpack.c.b16 %v4073, %v4069
        %v4122 = vpack.c.b16 %v4074, %v4070
        %v4123 = vpack.c.b16 %v4079, %v4075
        %v4124 = vpack.c.b16 %v4080, %v4076
        %v4125 = vpack.c.b16 %v4081, %v4077
        %v4126 = vpack.c.b16 %v4082, %v4078
        %v4127 = vpack.c.b16 %v4087, %v4083
        %v4128 = vpack.c.b16 %v4088, %v4084
        %v4129 = vpack.c.b16 %v4089, %v4085
        %v4130 = vpack.c.b16 %v4090, %v4086
        %v4131 = vpack.c.b16 %v4095, %v4091
        %v4132 = vpack.c.b16 %v4096, %v4092
        %v4133 = vpack.c.b16 %v4097, %v4093
        %v4134 = vpack.c.b16 %v4098, %v4094
        %v4135 = vpack.c.b16 %v4103, %v4099
        %v4136 = vpack.c.b16 %v4104, %v4100
        %v4137 = vpack.c.b16 %v4105, %v4101
        %v4138 = vpack.c.b16 %v4106, %v4102
        %4171 = vmatprep.subr.bf16.mxu0 %v4108
        %4172 = vmatpush1.bf16.msra.mxu0 %v4107
        %4173 = vmatprep.subr.bf16.mxu0 %v4112
        %4174 = vmatpush1.bf16.msra.mxu0 %v4111
        %4175 = vmatprep.subr.bf16.mxu0 %v4116
        %4176 = vmatpush1.bf16.msra.mxu0 %v4115
        %4177 = vmatprep.subr.bf16.mxu0 %v4120
        %4178 = vmatpush1.bf16.msra.mxu0 %v4119
        %4179 = vmatprep.subr.bf16.mxu0 %v4124
        %4180 = vmatpush1.bf16.msra.mxu0 %v4123
        %4181 = vmatprep.subr.bf16.mxu0 %v4128
        %4182 = vmatpush1.bf16.msra.mxu0 %v4127
        %4183 = vmatprep.subr.bf16.mxu0 %v4132
        %4184 = vmatpush1.bf16.msra.mxu0 %v4131
        %4185 = vmatprep.subr.bf16.mxu0 %v4136
        %4186 = vmatpush1.bf16.msra.mxu0 %v4135
        %4187 = vmatprep.subr.bf16.mxu0 0
        %4188 = vmatpush1.bf16.msra.mxu0 0
        %4189 = vmatprep.subr.bf16.mxu0 0
        %4190 = vmatpush1.bf16.msra.mxu0 0
        %4191 = vmatprep.subr.bf16.mxu0 0
        %4192 = vmatpush1.bf16.msra.mxu0 0
        %4193 = vmatprep.subr.bf16.mxu0 0
        %4194 = vmatpush1.bf16.msra.mxu0 0
        %4195 = vmatprep.subr.bf16.mxu0 0
        %4196 = vmatpush1.bf16.msra.mxu0 0
        %4197 = vmatprep.subr.bf16.mxu0 0
        %4198 = vmatpush1.bf16.msra.mxu0 0
        %4199 = vmatprep.subr.bf16.mxu0 0
        %4200 = vmatpush1.bf16.msra.mxu0 0
        %4201 = vmatprep.subr.bf16.mxu0 0
        %4202 = vmatpush1.bf16.msra.mxu0 0
        %4203 = vmatprep.mubr.bf16.mxu0 0
        %4204 = vmatmul.mubr.bf16.gmra.mrb[0].mxu0 %v3976
        %v4205 = vpop.f32.mrb[0].mxu0
        %v4206 = vadd.f32 0.0, %v4205
        %v4207 = vpop.f32.mrb[0].mxu0
        %v4208 = vadd.f32 0.0, %v4207
        %v4209 = vpop.f32.mrb[0].mxu0
        %v4210 = vadd.f32 0.0, %v4209
        %v4211 = vpop.f32.mrb[0].mxu0
        %v4212 = vadd.f32 0.0, %v4211
        %4213 = vmatprep.mubr.bf16.mxu0 0
        %4214 = vmatmul.mubr.bf16.gmra.mrb[0].mxu0 %v3977
        %v4215 = vpop.f32.mrb[0].mxu0
        %v4216 = vadd.f32 0.0, %v4215
        %v4217 = vpop.f32.mrb[0].mxu0
        %v4218 = vadd.f32 0.0, %v4217
        %v4219 = vpop.f32.mrb[0].mxu0
        %v4220 = vpop.f32.mrb[0].mxu0
        %4221 = vdwg.mxu0
        %4222 = vmatprep.subr.bf16.mxu0 %v4110
        %4223 = vmatpush1.bf16.msra.mxu0 %v4109
        %4224 = vmatprep.subr.bf16.mxu0 %v4114
        %4225 = vmatpush1.bf16.msra.mxu0 %v4113
        %4226 = vmatprep.subr.bf16.mxu0 %v4118
        %4227 = vmatpush1.bf16.msra.mxu0 %v4117
        %4228 = vmatprep.subr.bf16.mxu0 %v4122
        %4229 = vmatpush1.bf16.msra.mxu0 %v4121
        %4230 = vmatprep.subr.bf16.mxu0 %v4126
        %4231 = vmatpush1.bf16.msra.mxu0 %v4125
        %4232 = vmatprep.subr.bf16.mxu0 %v4130
        %4233 = vmatpush1.bf16.msra.mxu0 %v4129
        %4234 = vmatprep.subr.bf16.mxu0 %v4134
        %4235 = vmatpush1.bf16.msra.mxu0 %v4133
        %4236 = vmatprep.subr.bf16.mxu0 %v4138
        %4237 = vmatpush1.bf16.msra.mxu0 %v4137
        %4238 = vmatprep.subr.bf16.mxu0 0
        %4239 = vmatpush1.bf16.msra.mxu0 0
        %4240 = vmatprep.subr.bf16.mxu0 0
        %4241 = vmatpush1.bf16.msra.mxu0 0
        %4242 = vmatprep.subr.bf16.mxu0 0
        %4243 = vmatpush1.bf16.msra.mxu0 0
        %4244 = vmatprep.subr.bf16.mxu0 0
        %4245 = vmatpush1.bf16.msra.mxu0 0
        %4246 = vmatprep.subr.bf16.mxu0 0
        %4247 = vmatpush1.bf16.msra.mxu0 0
        %4248 = vmatprep.subr.bf16.mxu0 0
        %4249 = vmatpush1.bf16.msra.mxu0 0
        %4250 = vmatprep.subr.bf16.mxu0 0
        %4251 = vmatpush1.bf16.msra.mxu0 0
        %4252 = vmatprep.subr.bf16.mxu0 0
        %4253 = vmatpush1.bf16.msra.mxu0 0
        %4254 = vmatprep.mubr.bf16.mxu0 0
        %4255 = vmatmul.mubr.bf16.gmra.mrb[0].mxu0 %v3976
        %v4256 = vpop.f32.mrb[0].mxu0
        %v4257 = vadd.f32 0.0, %v4256
        %v4258 = vpop.f32.mrb[0].mxu0
        %v4259 = vadd.f32 0.0, %v4258
        %v4260 = vpop.f32.mrb[0].mxu0
        %v4261 = vadd.f32 0.0, %v4260
        %v4262 = vpop.f32.mrb[0].mxu0
        %v4263 = vadd.f32 0.0, %v4262
        %4264 = vmatprep.mubr.bf16.mxu0 0
        %4265 = vmatmul.mubr.bf16.gmra.mrb[0].mxu0 %v3977
        %v4266 = vpop.f32.mrb[0].mxu0
        %v4267 = vadd.f32 0.0, %v4266
        %v4268 = vpop.f32.mrb[0].mxu0
        %v4269 = vadd.f32 0.0, %v4268
        %v4270 = vpop.f32.mrb[0].mxu0
        %v4271 = vpop.f32.mrb[0].mxu0
        %4272 = vdwg.mxu0
        %v4273 = vxor.u32 %v4206, 2147483648
        %v4274 = vxor.u32 %v4208, 2147483648
        %v4275 = vxor.u32 %v4210, 2147483648
        %v4276 = vxor.u32 %v4212, 2147483648
        %v4277 = vxor.u32 %v4216, 2147483648
        %v4278 = vxor.u32 %v4218, 2147483648
        %v4279 = vmul.f32 %v4273, 1.442695
        %v4280 = vpow.pop %v4279
        %v4281 = vmul.f32 %v4274, 1.442695
        %v4282 = vpow.pop %v4281
        %v4283 = vmul.f32 %v4275, 1.442695
        %v4284 = vpow.pop %v4283
        %v4285 = vmul.f32 %v4276, 1.442695
        %v4286 = vpow.pop %v4285
        %v4287 = vmul.f32 %v4277, 1.442695
        %v4288 = vpow.pop %v4287
        %v4289 = vmul.f32 %v4278, 1.442695
        %v4290 = vpow.pop %v4289
        %v4291 = vadd.f32 %v4280, 1.0
        %v4292 = vadd.f32 %v4282, 1.0
        %v4293 = vadd.f32 %v4284, 1.0
        %v4294 = vadd.f32 %v4286, 1.0
        %v4295 = vadd.f32 %v4288, 1.0
        %v4296 = vadd.f32 %v4290, 1.0
        %v4297 = vrcp.pop %v4291
        %v4298 = vmul.f32 1.0, %v4297
        %v4299 = vrcp.pop %v4292
        %v4300 = vmul.f32 1.0, %v4299
        %v4301 = vrcp.pop %v4293
        %v4302 = vmul.f32 1.0, %v4301
        %v4303 = vrcp.pop %v4294
        %v4304 = vmul.f32 1.0, %v4303
        %v4305 = vrcp.pop %v4295
        %v4306 = vmul.f32 1.0, %v4305
        %v4307 = vrcp.pop %v4296
        %v4308 = vmul.f32 1.0, %v4307
        %v4309 = vmul.f32 %v4206, %v4298
        %v4310 = vmul.f32 %v4208, %v4300
        %v4311 = vmul.f32 %v4210, %v4302
        %v4312 = vmul.f32 %v4212, %v4304
        %v4313 = vmul.f32 %v4216, %v4306
        %v4314 = vmul.f32 %v4218, %v4308
        %v4315 = vmul.f32 %v4309, %v4257
        %v4316 = vmul.f32 %v4310, %v4259
        %v4317 = vmul.f32 %v4311, %v4261
        %v4318 = vmul.f32 %v4312, %v4263
        %v4319 = vmul.f32 %v4313, %v4267
        %v4320 = vmul.f32 %v4314, %v4269
        %v4321 = vpack.c.bf16 %v4317, %v4315
        %v4322 = vpack.c.bf16 %v4318, %v4316
        %v4323 = vpack.c.bf16 %v4319, %v4319
        %v4324 = vpack.c.bf16 %v4320, %v4320
        %s4325 = scalar_lea.vmem [#allocation4], 128
        %v4326 = vld [vmem:[%s4325] sm:$0xf]
        %v4327 = vld [vmem:[%s4325 + $0x4] sm:$0xf]
        %v4328 = vld [vmem:[%s4325 + $0x8] sm:$0xf]
        %v4329 = vld [vmem:[%s4325 + $0xc] sm:$0xf]
        %v4330 = vld [vmem:[%s4325 + $0x10] sm:$0xf]
        %v4331 = vld [vmem:[%s4325 + $0x14] sm:$0xf]
        %v4332 = vld [vmem:[%s4325 + $0x18] sm:$0xf]
        %v4333 = vld [vmem:[%s4325 + $0x1c] sm:$0xf]
        %v4334 = vld [vmem:[%s4325 + $0x20] sm:$0xf]
        %v4335 = vld [vmem:[%s4325 + $0x24] sm:$0xf]
        %v4336 = vld [vmem:[%s4325 + $0x28] sm:$0xf]
        %v4337 = vld [vmem:[%s4325 + $0x2c] sm:$0xf]
        %v4338 = vld [vmem:[%s4325 + $0x30] sm:$0xf]
        %v4339 = vld [vmem:[%s4325 + $0x34] sm:$0xf]
        %v4340 = vld [vmem:[%s4325 + $0x38] sm:$0xf]
        %v4341 = vld [vmem:[%s4325 + $0x3c] sm:$0xf]
        %v4342 = vld [vmem:[%s4325 + $0x40] sm:$0xf]
        %v4343 = vld [vmem:[%s4325 + $0x44] sm:$0xf]
        %v4344 = vld [vmem:[%s4325 + $0x48] sm:$0xf]
        %v4345 = vld [vmem:[%s4325 + $0x4c] sm:$0xf]
        %v4346 = vld [vmem:[%s4325 + $0x50] sm:$0xf]
        %v4347 = vld [vmem:[%s4325 + $0x54] sm:$0xf]
        %v4348 = vld [vmem:[%s4325 + $0x58] sm:$0xf]
        %v4349 = vld [vmem:[%s4325 + $0x5c] sm:$0xf]
        %v4350 = vld [vmem:[%s4325 + $0x60] sm:$0xf]
        %v4351 = vld [vmem:[%s4325 + $0x64] sm:$0xf]
        %v4352 = vld [vmem:[%s4325 + $0x68] sm:$0xf]
        %v4353 = vld [vmem:[%s4325 + $0x6c] sm:$0xf]
        %v4354 = vld [vmem:[%s4325 + $0x70] sm:$0xf]
        %v4355 = vld [vmem:[%s4325 + $0x74] sm:$0xf]
        %v4356 = vld [vmem:[%s4325 + $0x78] sm:$0xf]
        %v4357 = vld [vmem:[%s4325 + $0x7c] sm:$0xf]
        %v4390 = vunpack.c.l.b16 %v4326
        %v4391 = vunpack.c.l.b16 %v4327
        %v4392 = vunpack.c.l.b16 %v4328
        %v4393 = vunpack.c.l.b16 %v4329
        %v4394 = vunpack.c.l.b16 %v4330
        %v4395 = vunpack.c.l.b16 %v4331
        %v4396 = vunpack.c.l.b16 %v4332
        %v4397 = vunpack.c.l.b16 %v4333
        %v4398 = vunpack.c.l.b16 %v4334
        %v4399 = vunpack.c.l.b16 %v4335
        %v4400 = vunpack.c.l.b16 %v4336
        %v4401 = vunpack.c.l.b16 %v4337
        %v4402 = vunpack.c.l.b16 %v4338
        %v4403 = vunpack.c.l.b16 %v4339
        %v4404 = vunpack.c.l.b16 %v4340
        %v4405 = vunpack.c.l.b16 %v4341
        %v4406 = vunpack.c.l.b16 %v4342
        %v4407 = vunpack.c.l.b16 %v4343
        %v4408 = vunpack.c.l.b16 %v4344
        %v4409 = vunpack.c.l.b16 %v4345
        %v4410 = vunpack.c.l.b16 %v4346
        %v4411 = vunpack.c.l.b16 %v4347
        %v4412 = vunpack.c.l.b16 %v4348
        %v4413 = vunpack.c.l.b16 %v4349
        %v4414 = vunpack.c.l.b16 %v4350
        %v4415 = vunpack.c.l.b16 %v4351
        %v4416 = vunpack.c.l.b16 %v4352
        %v4417 = vunpack.c.l.b16 %v4353
        %v4418 = vunpack.c.l.b16 %v4354
        %v4419 = vunpack.c.l.b16 %v4355
        %v4420 = vunpack.c.l.b16 %v4356
        %v4421 = vunpack.c.l.b16 %v4357
        %v4422 = vpack.c.b16 %v4391, %v4390
        %v4423 = vpack.c.b16 %v4393, %v4392
        %v4424 = vpack.c.b16 %v4395, %v4394
        %v4425 = vpack.c.b16 %v4397, %v4396
        %v4426 = vpack.c.b16 %v4399, %v4398
        %v4427 = vpack.c.b16 %v4401, %v4400
        %v4428 = vpack.c.b16 %v4403, %v4402
        %v4429 = vpack.c.b16 %v4405, %v4404
        %v4430 = vpack.c.b16 %v4407, %v4406
        %v4431 = vpack.c.b16 %v4409, %v4408
        %v4432 = vpack.c.b16 %v4411, %v4410
        %v4433 = vpack.c.b16 %v4413, %v4412
        %v4434 = vpack.c.b16 %v4415, %v4414
        %v4435 = vpack.c.b16 %v4417, %v4416
        %v4436 = vpack.c.b16 %v4419, %v4418
        %v4437 = vpack.c.b16 %v4421, %v4420
        %4454 = vmatprep.subr.bf16.mxu0 0
        %4455 = vmatpush1.bf16.msra.mxu0 %v4422
        %4456 = vmatprep.subr.bf16.mxu0 0
        %4457 = vmatpush1.bf16.msra.mxu0 %v4423
        %4458 = vmatprep.subr.bf16.mxu0 0
        %4459 = vmatpush1.bf16.msra.mxu0 %v4424
        %4460 = vmatprep.subr.bf16.mxu0 0
        %4461 = vmatpush1.bf16.msra.mxu0 %v4425
        %4462 = vmatprep.subr.bf16.mxu0 0
        %4463 = vmatpush1.bf16.msra.mxu0 %v4426
        %4464 = vmatprep.subr.bf16.mxu0 0
        %4465 = vmatpush1.bf16.msra.mxu0 %v4427
        %4466 = vmatprep.subr.bf16.mxu0 0
        %4467 = vmatpush1.bf16.msra.mxu0 %v4428
        %4468 = vmatprep.subr.bf16.mxu0 0
        %4469 = vmatpush1.bf16.msra.mxu0 %v4429
        %4470 = vmatprep.subr.bf16.mxu0 0
        %4471 = vmatpush1.bf16.msra.mxu0 %v4430
        %4472 = vmatprep.subr.bf16.mxu0 0
        %4473 = vmatpush1.bf16.msra.mxu0 %v4431
        %4474 = vmatprep.subr.bf16.mxu0 0
        %4475 = vmatpush1.bf16.msra.mxu0 %v4432
        %4476 = vmatprep.subr.bf16.mxu0 0
        %4477 = vmatpush1.bf16.msra.mxu0 %v4433
        %4478 = vmatprep.subr.bf16.mxu0 0
        %4479 = vmatpush1.bf16.msra.mxu0 %v4434
        %4480 = vmatprep.subr.bf16.mxu0 0
        %4481 = vmatpush1.bf16.msra.mxu0 %v4435
        %4482 = vmatprep.subr.bf16.mxu0 0
        %4483 = vmatpush1.bf16.msra.mxu0 %v4436
        %4484 = vmatprep.subr.bf16.mxu0 0
        %4485 = vmatpush1.bf16.msra.mxu0 %v4437
        %4486 = vmatprep.mubr.bf16.mxu0 %v4322
        %4487 = vmatmul.mubr.bf16.gmra.mrb[0].mxu0 %v4321
        %v4488 = vpop.f32.mrb[0].mxu0
        %v4489 = vadd.f32 0.0, %v4488
        %v4490 = vpop.f32.mrb[0].mxu0
        %v4491 = vpop.f32.mrb[0].mxu0
        %v4492 = vadd.f32 0.0, %v4491
        %v4493 = vpop.f32.mrb[0].mxu0
        %4494 = vmatprep.mubr.bf16.mxu0 %v4324
        %4495 = vmatmul.mubr.bf16.gmra.mrb[0].mxu0 %v4323
        %v4496 = vpop.f32.mrb[0].mxu0
        %v4497 = vadd.f32 0.0, %v4496
        %v4498 = vpop.f32.mrb[0].mxu0
        %v4499 = vpop.f32.mrb[0].mxu0
        %v4500 = vpop.f32.mrb[0].mxu0
        %4501 = vdwg.mxu0
        %v4502 = vadd.f32 %v3941, %v4489
        %v4503 = vadd.f32 %v3942, %v4492
        %v4504 = vadd.f32 %v3943, %v4497
        %v4505 = vld [vmem:[#allocation6] sm:$0x1]
        %v4506 = vmul.f32 %v4502, %v4502
        %v4507 = vmul.f32 %v4503, %v4503
        %v4508 = vmul.f32 %v4504, %v4504
        %4509 = vadd.xlane.f32.xlu0 %v4506
        %v4510 = vpop.xlane.xlu0 %4509
        %4511 = vadd.xlane.f32.xlu0 %v4507
        %v4512 = vpop.xlane.xlu0 %4511
        %4513 = vadd.xlane.f32.xlu0 %v4508
        %v4514 = vpop.xlane.xlu0 %4513
        %v4515 = vmul.f32 %v4510, %v563
        %v4516 = vmul.f32 %v4512, %v563
        %v4517 = vmul.f32 %v4514, %v563
        %v4518 = vadd.f32 %v4515, 1e-05
        %v4519 = vadd.f32 %v4516, 1e-05
        %v4520 = vadd.f32 %v4517, 1e-05
        %v4521 = vrsqrt.pop %v4518
        %v4522 = vrsqrt.pop %v4519
        %v4523 = vrsqrt.pop %v4520
        %v4524 = vmul.f32 %v4502, %v4521
        %v4525 = vmul.f32 %v4503, %v4522
        %v4526 = vmul.f32 %v4504, %v4523
        %v4528 = vlaneseq
        %v4529 = vshrl.u32 %v4528, 7
        %v4530 = vsub.s32 0, %v4529
        %v4531 = vrot.slane %v4505, %v4530
        %v4533 = vmul.f32 %v4524, %v4531
        %v4534 = vmul.f32 %v4525, %v4531
        %v4535 = vmul.f32 %v4526, %v4531
        %4536 = vst [vmem:[%s525] sm:$0xff] %v4533
        %4537 = vst [vmem:[%s525 + $0x8] sm:$0xff] %v4534
        %4538 = vst [vmem:[%s525 + $0x10] sm:$0xff] %v4535
        %v4539 = vld [vmem:[%s520] sm:$0xff]
        %v4540 = vld [vmem:[%s520 + $0x8] sm:$0xff]
        %v4541 = vld [vmem:[%s520 + $0x10] sm:$0xff]
        %4543 = vset.pattern.permute.xlu0 0
        %4544 = vperm.xlu0 %4543, %v4539
        %v4545 = vpop.permute.xlu0 %4544
        %4548 = vset.pattern.permute.xlu0 0
        %4549 = vperm.xlu0 %4548, %v4540
        %v4550 = vpop.permute.xlu0 %4549
        %4553 = vset.pattern.permute.xlu0 0
        %4554 = vperm.xlu0 %4553, %v4541
        %v4555 = vpop.permute.xlu0 %4554
        %v4557 = vmul.f32 %v4533, %v4545
        %v4558 = vmul.f32 %v4534, %v4550
        %v4559 = vmul.f32 %v4535, %v4555
        %v4560 = vpack.c.bf16 %v4558, %v4557
        %v4561 = vpack.c.bf16 %v4559, %v4559
        %v4562 = vld [vmem:[#allocation7] sm:$0xff]
        %v4563 = vld [vmem:[#allocation7 + $0x8] sm:$0xff]
        %v4564 = vld [vmem:[#allocation7 + $0x10] sm:$0xff]
        %v4565 = vld [vmem:[#allocation7 + $0x18] sm:$0xff]
        %v4566 = vld [vmem:[#allocation7 + $0x20] sm:$0xff]
        %v4567 = vld [vmem:[#allocation7 + $0x28] sm:$0xff]
        %v4568 = vld [vmem:[#allocation7 + $0x30] sm:$0xff]
        %v4569 = vld [vmem:[#allocation7 + $0x38] sm:$0xff]
        %v4570 = vld [vmem:[#allocation7 + $0x40] sm:$0xff]
        %v4571 = vld [vmem:[#allocation7 + $0x48] sm:$0xff]
        %v4572 = vld [vmem:[#allocation7 + $0x50] sm:$0xff]
        %v4573 = vld [vmem:[#allocation7 + $0x58] sm:$0xff]
        %v4574 = vld [vmem:[#allocation7 + $0x60] sm:$0xff]
        %v4575 = vld [vmem:[#allocation7 + $0x68] sm:$0xff]
        %v4576 = vld [vmem:[#allocation7 + $0x70] sm:$0xff]
        %v4577 = vld [vmem:[#allocation7 + $0x78] sm:$0xff]
        %v4594 = vunpack.c.l.b16 %v4562
        %v4595 = vunpack.c.h.b16 %v4562
        %v4596 = vunpack.c.l.b16 %v4563
        %v4597 = vunpack.c.h.b16 %v4563
        %v4598 = vunpack.c.l.b16 %v4564
        %v4599 = vunpack.c.h.b16 %v4564
        %v4600 = vunpack.c.l.b16 %v4565
        %v4601 = vunpack.c.h.b16 %v4565
        %v4602 = vunpack.c.l.b16 %v4566
        %v4603 = vunpack.c.h.b16 %v4566
        %v4604 = vunpack.c.l.b16 %v4567
        %v4605 = vunpack.c.h.b16 %v4567
        %v4606 = vunpack.c.l.b16 %v4568
        %v4607 = vunpack.c.h.b16 %v4568
        %v4608 = vunpack.c.l.b16 %v4569
        %v4609 = vunpack.c.h.b16 %v4569
        %v4610 = vunpack.c.l.b16 %v4570
        %v4611 = vunpack.c.h.b16 %v4570
        %v4612 = vunpack.c.l.b16 %v4571
        %v4613 = vunpack.c.h.b16 %v4571
        %v4614 = vunpack.c.l.b16 %v4572
        %v4615 = vunpack.c.h.b16 %v4572
        %v4616 = vunpack.c.l.b16 %v4573
        %v4617 = vunpack.c.h.b16 %v4573
        %v4618 = vunpack.c.l.b16 %v4574
        %v4619 = vunpack.c.h.b16 %v4574
        %v4620 = vunpack.c.l.b16 %v4575
        %v4621 = vunpack.c.h.b16 %v4575
        %v4622 = vunpack.c.l.b16 %v4576
        %v4623 = vunpack.c.h.b16 %v4576
        %v4624 = vunpack.c.l.b16 %v4577
        %v4625 = vunpack.c.h.b16 %v4577
        %v4626 = vpack.c.b16 %v4596, %v4594
        %v4627 = vpack.c.b16 %v4597, %v4595
        %v4628 = vpack.c.b16 %v4600, %v4598
        %v4629 = vpack.c.b16 %v4601, %v4599
        %v4630 = vpack.c.b16 %v4604, %v4602
        %v4631 = vpack.c.b16 %v4605, %v4603
        %v4632 = vpack.c.b16 %v4608, %v4606
        %v4633 = vpack.c.b16 %v4609, %v4607
        %v4634 = vpack.c.b16 %v4612, %v4610
        %v4635 = vpack.c.b16 %v4613, %v4611
        %v4636 = vpack.c.b16 %v4616, %v4614
        %v4637 = vpack.c.b16 %v4617, %v4615
        %v4638 = vpack.c.b16 %v4620, %v4618
        %v4639 = vpack.c.b16 %v4621, %v4619
        %v4640 = vpack.c.b16 %v4624, %v4622
        %v4641 = vpack.c.b16 %v4625, %v4623
        %4658 = vmatprep.subr.bf16.mxu0 %v4627
        %4659 = vmatpush1.bf16.msra.mxu0 %v4626
        %4660 = vmatprep.subr.bf16.mxu0 %v4629
        %4661 = vmatpush1.bf16.msra.mxu0 %v4628
        %4662 = vmatprep.subr.bf16.mxu0 %v4631
        %4663 = vmatpush1.bf16.msra.mxu0 %v4630
        %4664 = vmatprep.subr.bf16.mxu0 %v4633
        %4665 = vmatpush1.bf16.msra.mxu0 %v4632
        %4666 = vmatprep.subr.bf16.mxu0 %v4635
        %4667 = vmatpush1.bf16.msra.mxu0 %v4634
        %4668 = vmatprep.subr.bf16.mxu0 %v4637
        %4669 = vmatpush1.bf16.msra.mxu0 %v4636
        %4670 = vmatprep.subr.bf16.mxu0 %v4639
        %4671 = vmatpush1.bf16.msra.mxu0 %v4638
        %4672 = vmatprep.subr.bf16.mxu0 %v4641
        %4673 = vmatpush1.bf16.msra.mxu0 %v4640
        %4674 = vmatprep.subr.bf16.mxu0 0
        %4675 = vmatpush1.bf16.msra.mxu0 0
        %4676 = vmatprep.subr.bf16.mxu0 0
        %4677 = vmatpush1.bf16.msra.mxu0 0
        %4678 = vmatprep.subr.bf16.mxu0 0
        %4679 = vmatpush1.bf16.msra.mxu0 0
        %4680 = vmatprep.subr.bf16.mxu0 0
        %4681 = vmatpush1.bf16.msra.mxu0 0
        %4682 = vmatprep.subr.bf16.mxu0 0
        %4683 = vmatpush1.bf16.msra.mxu0 0
        %4684 = vmatprep.subr.bf16.mxu0 0
        %4685 = vmatpush1.bf16.msra.mxu0 0
        %4686 = vmatprep.subr.bf16.mxu0 0
        %4687 = vmatpush1.bf16.msra.mxu0 0
        %4688 = vmatprep.subr.bf16.mxu0 0
        %4689 = vmatpush1.bf16.msra.mxu0 0
        %4690 = vmatprep.mubr.bf16.mxu0 0
        %4691 = vmatmul.mubr.bf16.gmra.mrb[0].mxu0 %v4560
        %v4692 = vpop.f32.mrb[0].mxu0
        %v4693 = vadd.f32 0.0, %v4692
        %v4694 = vpop.f32.mrb[0].mxu0
        %v4695 = vadd.f32 0.0, %v4694
        %v4696 = vpop.f32.mrb[0].mxu0
        %v4697 = vadd.f32 0.0, %v4696
        %v4698 = vpop.f32.mrb[0].mxu0
        %v4699 = vadd.f32 0.0, %v4698
        %4700 = vmatprep.mubr.bf16.mxu0 0
        %4701 = vmatmul.mubr.bf16.gmra.mrb[0].mxu0 %v4561
        %v4702 = vpop.f32.mrb[0].mxu0
        %v4703 = vadd.f32 0.0, %v4702
        %v4704 = vpop.f32.mrb[0].mxu0
        %v4705 = vadd.f32 0.0, %v4704
        %v4706 = vpop.f32.mrb[0].mxu0
        %v4707 = vpop.f32.mrb[0].mxu0
        %4708 = vdwg.mxu0
        %4709 = vst [vmem:[%s530] sm:$0xff] %v4693
        %4710 = vst [vmem:[%s530 + $0x8] sm:$0xff] %v4695
        %4711 = vst [vmem:[%s530 + $0x10] sm:$0xff] %v4697
        %4712 = vst [vmem:[%s530 + $0x18] sm:$0xff] %v4699
        %4713 = vst [vmem:[%s530 + $0x20] sm:$0xff] %v4703
        %4714 = vst [vmem:[%s530 + $0x28] sm:$0xff] %v4705
        %p4715 = scmp.lt.s32.totalorder %s28, 1
        %s4716 = scalar_select %p4715, %s28, 1
        %s4717 = smul.addr %s4716, 3
        %s4718 = smul.addr %s4717, 8
        %s4719 = scalar_lea.vmem %s12, %s4718
        %p4720 = scmp.lt.s32.totalorder %s28, 1
        %s4721 = scalar_select %p4720, %s28, 1
        %s4722 = smul.addr %s4721, 6
        %s4723 = smul.addr %s4722, 8
        %s4724 = scalar_lea.vmem %s13, %s4723
        // Predicated region
        $region85: #{t3_forward.1} parent=67 // pred_check
          %p4725 = pneg %p308
        $region86: #{t3_forward.1} parent=67 // pred_check_branch
          %4727 = sbr.rel (%p4725) target = $region88
        $region87: #{t3_forward.1} parent=67 // pred_region
          _
        $region88: #{t3_forward.1} parent=67 // pred_fallthru
          _
        // Predicated region
        $region89: #{t3_forward.1} parent=67 // pred_check
          %p4728 = pneg %p334
        $region90: #{t3_forward.1} parent=67 // pred_check_branch
          %4730 = sbr.rel (%p4728) target = $region92
        $region91: #{t3_forward.1} parent=67 // pred_region
          _
        $region92: #{t3_forward.1} parent=67 // pred_fallthru
          _
      $region68: #{t3_forward.1} parent=5 // pred_fallthru
        _
      %p4731 = scmp.le.s32.totalorder 2, %s23
      // Predicated region
      $region93: #{t3_forward.1} parent=5 // pred_check
        %p4732 = pneg %p4731
      $region94: #{t3_forward.1} parent=5 // pred_check_branch
        %4734 = sbr.rel (%p4732) target = $region96
      $region95: #{t3_forward.1} parent=5 // pred_region
        %s4735 = ssub.s32 %s23, 2
        // Predicated region
        $region97: #{t3_forward.1} parent=95 // pred_check
          %p4736 = pneg %p314
        $region98: #{t3_forward.1} parent=95 // pred_check_branch
          %4738 = sbr.rel (%p4736) target = $region100
        $region99: #{t3_forward.1} parent=95 // pred_region
          %p4739 = scmp.lt.s32.totalorder %s29, 1
          %s4740 = scalar_select %p4739, %s29, 1
          %s4741 = smul.addr %s4740, 3
          %s4742 = smul.addr %s4741, 8
          %s4743 = scalar_lea.vmem %s12, %s4742
        $region100: #{t3_forward.1} parent=95 // pred_fallthru
          _
        // Predicated region
        $region101: #{t3_forward.1} parent=95 // pred_check
          %p4744 = pneg %p340
        $region102: #{t3_forward.1} parent=95 // pred_check_branch
          %4746 = sbr.rel (%p4744) target = $region104
        $region103: #{t3_forward.1} parent=95 // pred_region
          %p4747 = scmp.lt.s32.totalorder %s29, 1
          %s4748 = scalar_select %p4747, %s29, 1
          %s4749 = smul.addr %s4748, 6
          %s4750 = smul.addr %s4749, 8
          %s4751 = scalar_lea.vmem %s13, %s4750
        $region104: #{t3_forward.1} parent=95 // pred_fallthru
          _
      $region96: #{t3_forward.1} parent=5 // pred_fallthru
        _
    $region6: #{t3_forward.1} parent=1 // loop_footer
      %s27 = sadd.s32 1, %s23
    $region7: #{t3_forward.1} parent=1 // loop_footer_branch
      %22 = sbr.rel target = $region3
    $region8: #{t3_forward.1} parent=1 // loop_exit
      _
    %4752 = vsyncpa [#allocation3], 1
    %s4753 = scalar_lea.sflag [#allocation3], 1
    %4754 = vsyncpa %s4753, 1
    %4755 = vsyncpa [#allocation5], 1
    %4756 = vsyncpa [#allocation8], 1

</llo_original>
